<compile_context>
chip_gen: v7x
topology: tpu7x:2x2x1
jax: 0.10.0
libtpu: 0.0.40
codegen_flags: <defaults>
</compile_context>

<pallas_src>
import jax
import jax.numpy as jnp
from jax.experimental import pallas as pl
from jax.experimental.pallas import tpu as pltpu

INPUT_SIZE = 8
HIDDEN_SIZE = 5
OUTPUT_SIZE = 8
NUM_LAYERS = 2  # kernel below is written for exactly 2 layers (module default)


# ----------------------------------------------------------------------------
# Pallas kernel
# ----------------------------------------------------------------------------
def _lstm_decoder_kernel(
    x_ref,        # (T, B, D)   time-major input
    h_init_ref,   # (2, B, H)
    c_init_ref,   # (2, B, H)
    w0x_ref,      # (D, 4H)  layer-0 input->hidden, gates [i|f|g|o] along lanes
    w0h_ref,      # (H, 4H)  layer-0 hidden->hidden
    b0_ref,       # (1, 4H)  b_ih + b_hh, layer 0
    w1x_ref,      # (H, 4H)  layer-1 input (= layer-0 h) -> hidden
    w1h_ref,      # (H, 4H)  layer-1 hidden->hidden
    b1_ref,       # (1, 4H)
    wfc_ref,      # (H, O)
    bfc_ref,      # (1, O)
    pred_ref,     # out: (T, B, O)
    h_out_ref,    # out: (2, B, H)
    c_out_ref,    # out: (2, B, H)
    xproj_s,      # scratch: (T, B, 4H) f32  -- hoisted layer-0 input projection
    h1_all_s,     # scratch: (T, B, H)  f32  -- top-layer hidden per step
):
    T, B, _ = x_ref.shape
    H = h_init_ref.shape[2]
    G = 4 * H
    O = pred_ref.shape[2]

    # ---- hoist all (tiny) weights / biases into values once (stay in vregs) ----
    w0x = w0x_ref[...]
    w0h = w0h_ref[...]
    w1x = w1x_ref[...]
    w1h = w1h_ref[...]
    b0 = jnp.broadcast_to(b0_ref[...], (B, G))
    b1 = jnp.broadcast_to(b1_ref[...], (B, G))
    wfc = wfc_ref[...]
    bfc = jnp.broadcast_to(bfc_ref[...], (B, O))

    # ---- hoisted layer-0 input projection (independent of the recurrence) ----
    # T independent (B,D)x(D,4H) matmuls issued back-to-back before the serial
    # loop; bias b0 folded in here so the recurrent loop never touches it.
    for t in range(T):                        # static, off the critical path
        xproj_s[t] = (
            jnp.dot(x_ref[t], w0x, preferred_element_type=jnp.float32) + b0
        )

    def gate_update(gates, c_prev):
        # gates: (B, 4H) fused [i|f|g|o]
        sig = jax.nn.sigmoid(gates)
        i_g = sig[:, 0:H]
        f_g = sig[:, H:2 * H]
        o_g = sig[:, 3 * H:4 * H]
        g_g = jnp.tanh(gates[:, 2 * H:3 * H])
        c_new = f_g * c_prev + i_g * g_g
        h_new = o_g * jnp.tanh(c_new)
        return h_new, c_new

    def step(t, carry):
        h0, c0, h1, c1 = carry                # (B, H) each, carried in vregs
        # layer 0: only the recurrent term remains (input proj precomputed)
        g0 = xproj_s[t] + jnp.dot(h0, w0h, preferred_element_type=jnp.float32)
        h0, c0 = gate_update(g0, c0)
        # layer 1: fused-gate matmuls on fresh layer-0 output + own state
        g1 = (jnp.dot(h0, w1x, preferred_element_type=jnp.float32)
              + jnp.dot(h1, w1h, preferred_element_type=jnp.float32)
              + b1)
        h1, c1 = gate_update(g1, c1)
        h1_all_s[t] = h1                      # stash for the hoisted FC head
        return h0, c0, h1, c1

    init = (h_init_ref[0], c_init_ref[0], h_init_ref[1], c_init_ref[1])
    h0, c0, h1, c1 = jax.lax.fori_loop(0, T, step, init, unroll=True)

    h_out_ref[0] = h0
    h_out_ref[1] = h1
    c_out_ref[0] = c0
    c_out_ref[1] = c1

    # ---- hoisted FC head: T independent matmuls after the recurrence ----
    for t in range(T):
        pred_ref[t] = (
            jnp.dot(h1_all_s[t], wfc, preferred_element_type=jnp.float32) + bfc
        )


# ----------------------------------------------------------------------------
# Wrapper (plain-JAX glue: layout + pallas_call)
# ----------------------------------------------------------------------------
@jax.jit
def lstm_auto_decoder(x, params, h_init=None, c_init=None):
    """x: (B, T, input_size).  Returns (prediction, (hidden, cell)) like PyTorch."""
    x = x.astype(jnp.float32)
    B, T, _ = x.shape
    H, O = HIDDEN_SIZE, OUTPUT_SIZE

    if h_init is None:
        h_init = jnp.zeros((NUM_LAYERS, B, H), jnp.float32)
    if c_init is None:
        c_init = jnp.zeros((NUM_LAYERS, B, H), jnp.float32)

    x_tm = jnp.transpose(x, (1, 0, 2))                 # time-major (T, B, D)

    vmem = pl.BlockSpec(memory_space=pltpu.MemorySpace.VMEM)
    n_in = 11

    pred_tm, hidden, cell = pl.pallas_call(
        _lstm_decoder_kernel,
        out_shape=(
            jax.ShapeDtypeStruct((T, B, O), jnp.float32),
            jax.ShapeDtypeStruct((NUM_LAYERS, B, H), jnp.float32),
            jax.ShapeDtypeStruct((NUM_LAYERS, B, H), jnp.float32),
        ),
        in_specs=[vmem] * n_in,
        out_specs=(vmem, vmem, vmem),
        scratch_shapes=[
            pltpu.VMEM((T, B, 4 * H), jnp.float32),    # hoisted layer-0 x-proj
            pltpu.VMEM((T, B, H), jnp.float32),        # top-layer h per step
        ],
    )(
        x_tm, h_init, c_init,
        params["w0x"], params["w0h"], params["b0"],
        params["w1x"], params["w1h"], params["b1"],
        params["wfc"], params["bfc"],
    )

    prediction = jnp.transpose(pred_tm, (1, 0, 2))     # back to (B, T, O)
    return prediction, (hidden, cell)


# ----------------------------------------------------------------------------
# Deterministic parameter construction (matches nn.LSTM / nn.Linear layout)
# ----------------------------------------------------------------------------
def make_params(key):
    H, D, O = HIDDEN_SIZE, INPUT_SIZE, OUTPUT_SIZE
    bound = 1.0 / jnp.sqrt(H)
    keys = jax.random.split(key, 10)

    def u(k, shape):
        return jax.random.uniform(k, shape, jnp.float32, -bound, bound)

    # PyTorch layout: weight_ih_l{l}: (4H, D_l), weight_hh_l{l}: (4H, H),
    # bias_ih/bias_hh: (4H,), gate order i,f,g,o.  We repack to
    # (D_l, 4H)/(H, 4H) with gates concatenated along the last axis and a
    # single combined bias (1, 4H), so each layer needs one fused gate matmul
    # per operand inside the kernel.
    w_ih0, w_hh0 = u(keys[0], (4 * H, D)), u(keys[1], (4 * H, H))
    b_ih0, b_hh0 = u(keys[2], (4 * H,)), u(keys[3], (4 * H,))
    w_ih1, w_hh1 = u(keys[4], (4 * H, H)), u(keys[5], (4 * H, H))
    b_ih1, b_hh1 = u(keys[6], (4 * H,)), u(keys[7], (4 * H,))

    # nn.Linear(H, O): weight (O, H), bias (O,)
    w_fc = u(keys[8], (O, H))
    b_fc = u(keys[9], (O,))

    return {
        "w0x": jnp.transpose(w_ih0),                   # (D, 4H)
        "w0h": jnp.transpose(w_hh0),                   # (H, 4H)
        "b0": (b_ih0 + b_hh0).reshape(1, 4 * H),
        "w1x": jnp.transpose(w_ih1),                   # (H, 4H)
        "w1h": jnp.transpose(w_hh1),                   # (H, 4H)
        "b1": (b_ih1 + b_hh1).reshape(1, 4 * H),
        "wfc": jnp.transpose(w_fc),                    # (H, O)
        "bfc": b_fc.reshape(1, O),
    }


# ----------------------------------------------------------------------------
# Pure-JAX reference for correctness check (same math as PyTorch LSTM + Linear)
# ----------------------------------------------------------------------------
def reference(x, params, h_init, c_init):
    B, T, _ = x.shape
    H = HIDDEN_SIZE

    def cell(gates, c):
        i = jax.nn.sigmoid(gates[:, 0:H])
        f = jax.nn.sigmoid(gates[:, H:2 * H])
        g = jnp.tanh(gates[:, 2 * H:3 * H])
        o = jax.nn.sigmoid(gates[:, 3 * H:4 * H])
        c_new = f * c + i * g
        return o * jnp.tanh(c_new), c_new

    h0, c0 = h_init[0], c_init[0]
    h1, c1 = h_init[1], c_init[1]
    preds = []
    for t in range(T):
        x_t = x[:, t, :]
        g0 = x_t @ params["w0x"] + h0 @ params["w0h"] + params["b0"]
        h0, c0 = cell(g0, c0)
        g1 = h0 @ params["w1x"] + h1 @ params["w1h"] + params["b1"]
        h1, c1 = cell(g1, c1)
        preds.append(h1 @ params["wfc"] + params["bfc"])
    pred = jnp.stack(preds, axis=1)
    return pred, (jnp.stack([h0, h1]), jnp.stack([c0, c1]))


# ----------------------------------------------------------------------------
if __name__ == "__main__":
    key = jax.random.PRNGKey(0)
    k_param, k_x = jax.random.split(key)

    B, T = 2, 8
    x = jax.random.normal(k_x, (B, T, INPUT_SIZE), jnp.float32)
    params = make_params(k_param)

    # hidden=None path of the PyTorch forward -> zero initial state
    h_init = jnp.zeros((NUM_LAYERS, B, HIDDEN_SIZE), jnp.float32)
    c_init = jnp.zeros((NUM_LAYERS, B, HIDDEN_SIZE), jnp.float32)

    pred, (hidden, cell) = lstm_auto_decoder(x, params, h_init, c_init)
    jax.block_until_ready((pred, hidden, cell))

    pred_ref, (h_ref, c_ref) = reference(x, params, h_init, c_init)
    assert pred.shape == (B, T, OUTPUT_SIZE)
    assert hidden.shape == (NUM_LAYERS, B, HIDDEN_SIZE)
    assert cell.shape == (NUM_LAYERS, B, HIDDEN_SIZE)
    assert jnp.allclose(pred, pred_ref, atol=1e-4, rtol=1e-4)
    assert jnp.allclose(hidden, h_ref, atol=1e-4, rtol=1e-4)
    assert jnp.allclose(cell, c_ref, atol=1e-4, rtol=1e-4)

    print("KERNEL_OK")
</pallas_src>

<mosaic_0001>
module attributes {stable_mosaic.version = 11 : i64} {
  func.func @_lstm_decoder_kernel(%arg0: memref<8x2x8xf32, #tpu.memory_space<vmem>>, %arg1: memref<2x2x5xf32, #tpu.memory_space<vmem>>, %arg2: memref<2x2x5xf32, #tpu.memory_space<vmem>>, %arg3: memref<8x20xf32, #tpu.memory_space<vmem>>, %arg4: memref<5x20xf32, #tpu.memory_space<vmem>>, %arg5: memref<1x20xf32, #tpu.memory_space<vmem>>, %arg6: memref<5x20xf32, #tpu.memory_space<vmem>>, %arg7: memref<5x20xf32, #tpu.memory_space<vmem>>, %arg8: memref<1x20xf32, #tpu.memory_space<vmem>>, %arg9: memref<5x8xf32, #tpu.memory_space<vmem>>, %arg10: memref<1x8xf32, #tpu.memory_space<vmem>>, %arg11: memref<8x2x8xf32, #tpu.memory_space<vmem>>, %arg12: memref<2x2x5xf32, #tpu.memory_space<vmem>>, %arg13: memref<2x2x5xf32, #tpu.memory_space<vmem>>, %arg14: memref<8x2x20xf32, #tpu.memory_space<vmem>>, %arg15: memref<8x2x5xf32, #tpu.memory_space<vmem>>) attributes {dimension_semantics = [], scalar_prefetch = 0 : i64, scratch_operands = 2 : i64, tpu.core_type = #tpu.core_type<tc>} {
    %c0 = arith.constant 0 : index
    %c0_0 = arith.constant 0 : index
    %0 = vector.load %arg3[%c0, %c0_0] : memref<8x20xf32, #tpu.memory_space<vmem>>, vector<8x20xf32>
    %c0_1 = arith.constant 0 : index
    %c0_2 = arith.constant 0 : index
    %1 = vector.load %arg4[%c0_1, %c0_2] : memref<5x20xf32, #tpu.memory_space<vmem>>, vector<5x20xf32>
    %c0_3 = arith.constant 0 : index
    %c0_4 = arith.constant 0 : index
    %2 = vector.load %arg6[%c0_3, %c0_4] : memref<5x20xf32, #tpu.memory_space<vmem>>, vector<5x20xf32>
    %c0_5 = arith.constant 0 : index
    %c0_6 = arith.constant 0 : index
    %3 = vector.load %arg7[%c0_5, %c0_6] : memref<5x20xf32, #tpu.memory_space<vmem>>, vector<5x20xf32>
    %c0_7 = arith.constant 0 : index
    %c0_8 = arith.constant 0 : index
    %4 = vector.load %arg5[%c0_7, %c0_8] : memref<1x20xf32, #tpu.memory_space<vmem>>, vector<1x20xf32>
    %5 = vector.shape_cast %4 : vector<1x20xf32> to vector<1x20xf32>
    %6 = vector.broadcast %5 : vector<1x20xf32> to vector<2x20xf32>
    %c0_9 = arith.constant 0 : index
    %c0_10 = arith.constant 0 : index
    %7 = vector.load %arg8[%c0_9, %c0_10] : memref<1x20xf32, #tpu.memory_space<vmem>>, vector<1x20xf32>
    %8 = vector.shape_cast %7 : vector<1x20xf32> to vector<1x20xf32>
    %9 = vector.broadcast %8 : vector<1x20xf32> to vector<2x20xf32>
    %c0_11 = arith.constant 0 : index
    %c0_12 = arith.constant 0 : index
    %10 = vector.load %arg9[%c0_11, %c0_12] : memref<5x8xf32, #tpu.memory_space<vmem>>, vector<5x8xf32>
    %c0_13 = arith.constant 0 : index
    %c0_14 = arith.constant 0 : index
    %11 = vector.load %arg10[%c0_13, %c0_14] : memref<1x8xf32, #tpu.memory_space<vmem>>, vector<1x8xf32>
    %12 = vector.shape_cast %11 : vector<1x8xf32> to vector<1x8xf32>
    %13 = vector.broadcast %12 : vector<1x8xf32> to vector<2x8xf32>
    %c0_15 = arith.constant 0 : index
    %c0_16 = arith.constant 0 : index
    %c0_17 = arith.constant 0 : index
    %14 = vector.load %arg0[%c0_15, %c0_16, %c0_17] : memref<8x2x8xf32, #tpu.memory_space<vmem>>, vector<1x2x8xf32>
    %15 = vector.shape_cast %14 : vector<1x2x8xf32> to vector<2x8xf32>
    %cst = arith.constant dense<0.000000e+00> : vector<2x20xf32>
    %16 = tpu.matmul %15, %0, %cst {dimension_numbers = #tpu.dot_dimension_numbers<[1], [0], [0], [1], [0, 0, 1, 1], [], []>} : vector<2x8xf32>, vector<8x20xf32>, vector<2x20xf32> -> vector<2x20xf32>
    %17 = arith.addf %16, %6 : vector<2x20xf32>
    %c0_18 = arith.constant 0 : index
    %c0_19 = arith.constant 0 : index
    %c0_20 = arith.constant 0 : index
    %18 = vector.load %arg14[%c0_18, %c0_19, %c0_20] : memref<8x2x20xf32, #tpu.memory_space<vmem>>, vector<1x2x20xf32>
    %19 = vector.shape_cast %18 : vector<1x2x20xf32> to vector<2x20xf32>
    %20 = vector.shape_cast %17 : vector<2x20xf32> to vector<1x2x20xf32>
    tpu.vector_store %arg14[%c0_18, %c0_19, %c0_20], %20 {strides = array<i32>} : memref<8x2x20xf32, #tpu.memory_space<vmem>>, vector<1x2x20xf32>,
    %c1 = arith.constant 1 : index
    %c0_21 = arith.constant 0 : index
    %c0_22 = arith.constant 0 : index
    %21 = vector.load %arg0[%c1, %c0_21, %c0_22] : memref<8x2x8xf32, #tpu.memory_space<vmem>>, vector<1x2x8xf32>
    %22 = vector.shape_cast %21 : vector<1x2x8xf32> to vector<2x8xf32>
    %cst_23 = arith.constant dense<0.000000e+00> : vector<2x20xf32>
    %23 = tpu.matmul %22, %0, %cst_23 {dimension_numbers = #tpu.dot_dimension_numbers<[1], [0], [0], [1], [0, 0, 1, 1], [], []>} : vector<2x8xf32>, vector<8x20xf32>, vector<2x20xf32> -> vector<2x20xf32>
    %24 = arith.addf %23, %6 : vector<2x20xf32>
    %c1_24 = arith.constant 1 : index
    %c0_25 = arith.constant 0 : index
    %c0_26 = arith.constant 0 : index
    %25 = vector.load %arg14[%c1_24, %c0_25, %c0_26] : memref<8x2x20xf32, #tpu.memory_space<vmem>>, vector<1x2x20xf32>
    %26 = vector.shape_cast %25 : vector<1x2x20xf32> to vector<2x20xf32>
    %27 = vector.shape_cast %24 : vector<2x20xf32> to vector<1x2x20xf32>
    tpu.vector_store %arg14[%c1_24, %c0_25, %c0_26], %27 {strides = array<i32>} : memref<8x2x20xf32, #tpu.memory_space<vmem>>, vector<1x2x20xf32>,
    %c2 = arith.constant 2 : index
    %c0_27 = arith.constant 0 : index
    %c0_28 = arith.constant 0 : index
    %28 = vector.load %arg0[%c2, %c0_27, %c0_28] : memref<8x2x8xf32, #tpu.memory_space<vmem>>, vector<1x2x8xf32>
    %29 = vector.shape_cast %28 : vector<1x2x8xf32> to vector<2x8xf32>
    %cst_29 = arith.constant dense<0.000000e+00> : vector<2x20xf32>
    %30 = tpu.matmul %29, %0, %cst_29 {dimension_numbers = #tpu.dot_dimension_numbers<[1], [0], [0], [1], [0, 0, 1, 1], [], []>} : vector<2x8xf32>, vector<8x20xf32>, vector<2x20xf32> -> vector<2x20xf32>
    %31 = arith.addf %30, %6 : vector<2x20xf32>
    %c2_30 = arith.constant 2 : index
    %c0_31 = arith.constant 0 : index
    %c0_32 = arith.constant 0 : index
    %32 = vector.load %arg14[%c2_30, %c0_31, %c0_32] : memref<8x2x20xf32, #tpu.memory_space<vmem>>, vector<1x2x20xf32>
    %33 = vector.shape_cast %32 : vector<1x2x20xf32> to vector<2x20xf32>
    %34 = vector.shape_cast %31 : vector<2x20xf32> to vector<1x2x20xf32>
    tpu.vector_store %arg14[%c2_30, %c0_31, %c0_32], %34 {strides = array<i32>} : memref<8x2x20xf32, #tpu.memory_space<vmem>>, vector<1x2x20xf32>,
    %c3 = arith.constant 3 : index
    %c0_33 = arith.constant 0 : index
    %c0_34 = arith.constant 0 : index
    %35 = vector.load %arg0[%c3, %c0_33, %c0_34] : memref<8x2x8xf32, #tpu.memory_space<vmem>>, vector<1x2x8xf32>
    %36 = vector.shape_cast %35 : vector<1x2x8xf32> to vector<2x8xf32>
    %cst_35 = arith.constant dense<0.000000e+00> : vector<2x20xf32>
    %37 = tpu.matmul %36, %0, %cst_35 {dimension_numbers = #tpu.dot_dimension_numbers<[1], [0], [0], [1], [0, 0, 1, 1], [], []>} : vector<2x8xf32>, vector<8x20xf32>, vector<2x20xf32> -> vector<2x20xf32>
    %38 = arith.addf %37, %6 : vector<2x20xf32>
    %c3_36 = arith.constant 3 : index
    %c0_37 = arith.constant 0 : index
    %c0_38 = arith.constant 0 : index
    %39 = vector.load %arg14[%c3_36, %c0_37, %c0_38] : memref<8x2x20xf32, #tpu.memory_space<vmem>>, vector<1x2x20xf32>
    %40 = vector.shape_cast %39 : vector<1x2x20xf32> to vector<2x20xf32>
    %41 = vector.shape_cast %38 : vector<2x20xf32> to vector<1x2x20xf32>
    tpu.vector_store %arg14[%c3_36, %c0_37, %c0_38], %41 {strides = array<i32>} : memref<8x2x20xf32, #tpu.memory_space<vmem>>, vector<1x2x20xf32>,
    %c4 = arith.constant 4 : index
    %c0_39 = arith.constant 0 : index
    %c0_40 = arith.constant 0 : index
    %42 = vector.load %arg0[%c4, %c0_39, %c0_40] : memref<8x2x8xf32, #tpu.memory_space<vmem>>, vector<1x2x8xf32>
    %43 = vector.shape_cast %42 : vector<1x2x8xf32> to vector<2x8xf32>
    %cst_41 = arith.constant dense<0.000000e+00> : vector<2x20xf32>
    %44 = tpu.matmul %43, %0, %cst_41 {dimension_numbers = #tpu.dot_dimension_numbers<[1], [0], [0], [1], [0, 0, 1, 1], [], []>} : vector<2x8xf32>, vector<8x20xf32>, vector<2x20xf32> -> vector<2x20xf32>
    %45 = arith.addf %44, %6 : vector<2x20xf32>
    %c4_42 = arith.constant 4 : index
    %c0_43 = arith.constant 0 : index
    %c0_44 = arith.constant 0 : index
    %46 = vector.load %arg14[%c4_42, %c0_43, %c0_44] : memref<8x2x20xf32, #tpu.memory_space<vmem>>, vector<1x2x20xf32>
    %47 = vector.shape_cast %46 : vector<1x2x20xf32> to vector<2x20xf32>
    %48 = vector.shape_cast %45 : vector<2x20xf32> to vector<1x2x20xf32>
    tpu.vector_store %arg14[%c4_42, %c0_43, %c0_44], %48 {strides = array<i32>} : memref<8x2x20xf32, #tpu.memory_space<vmem>>, vector<1x2x20xf32>,
    %c5 = arith.constant 5 : index
    %c0_45 = arith.constant 0 : index
    %c0_46 = arith.constant 0 : index
    %49 = vector.load %arg0[%c5, %c0_45, %c0_46] : memref<8x2x8xf32, #tpu.memory_space<vmem>>, vector<1x2x8xf32>
    %50 = vector.shape_cast %49 : vector<1x2x8xf32> to vector<2x8xf32>
    %cst_47 = arith.constant dense<0.000000e+00> : vector<2x20xf32>
    %51 = tpu.matmul %50, %0, %cst_47 {dimension_numbers = #tpu.dot_dimension_numbers<[1], [0], [0], [1], [0, 0, 1, 1], [], []>} : vector<2x8xf32>, vector<8x20xf32>, vector<2x20xf32> -> vector<2x20xf32>
    %52 = arith.addf %51, %6 : vector<2x20xf32>
    %c5_48 = arith.constant 5 : index
    %c0_49 = arith.constant 0 : index
    %c0_50 = arith.constant 0 : index
    %53 = vector.load %arg14[%c5_48, %c0_49, %c0_50] : memref<8x2x20xf32, #tpu.memory_space<vmem>>, vector<1x2x20xf32>
    %54 = vector.shape_cast %53 : vector<1x2x20xf32> to vector<2x20xf32>
    %55 = vector.shape_cast %52 : vector<2x20xf32> to vector<1x2x20xf32>
    tpu.vector_store %arg14[%c5_48, %c0_49, %c0_50], %55 {strides = array<i32>} : memref<8x2x20xf32, #tpu.memory_space<vmem>>, vector<1x2x20xf32>,
    %c6 = arith.constant 6 : index
    %c0_51 = arith.constant 0 : index
    %c0_52 = arith.constant 0 : index
    %56 = vector.load %arg0[%c6, %c0_51, %c0_52] : memref<8x2x8xf32, #tpu.memory_space<vmem>>, vector<1x2x8xf32>
    %57 = vector.shape_cast %56 : vector<1x2x8xf32> to vector<2x8xf32>
    %cst_53 = arith.constant dense<0.000000e+00> : vector<2x20xf32>
    %58 = tpu.matmul %57, %0, %cst_53 {dimension_numbers = #tpu.dot_dimension_numbers<[1], [0], [0], [1], [0, 0, 1, 1], [], []>} : vector<2x8xf32>, vector<8x20xf32>, vector<2x20xf32> -> vector<2x20xf32>
    %59 = arith.addf %58, %6 : vector<2x20xf32>
    %c6_54 = arith.constant 6 : index
    %c0_55 = arith.constant 0 : index
    %c0_56 = arith.constant 0 : index
    %60 = vector.load %arg14[%c6_54, %c0_55, %c0_56] : memref<8x2x20xf32, #tpu.memory_space<vmem>>, vector<1x2x20xf32>
    %61 = vector.shape_cast %60 : vector<1x2x20xf32> to vector<2x20xf32>
    %62 = vector.shape_cast %59 : vector<2x20xf32> to vector<1x2x20xf32>
    tpu.vector_store %arg14[%c6_54, %c0_55, %c0_56], %62 {strides = array<i32>} : memref<8x2x20xf32, #tpu.memory_space<vmem>>, vector<1x2x20xf32>,
    %c7 = arith.constant 7 : index
    %c0_57 = arith.constant 0 : index
    %c0_58 = arith.constant 0 : index
    %63 = vector.load %arg0[%c7, %c0_57, %c0_58] : memref<8x2x8xf32, #tpu.memory_space<vmem>>, vector<1x2x8xf32>
    %64 = vector.shape_cast %63 : vector<1x2x8xf32> to vector<2x8xf32>
    %cst_59 = arith.constant dense<0.000000e+00> : vector<2x20xf32>
    %65 = tpu.matmul %64, %0, %cst_59 {dimension_numbers = #tpu.dot_dimension_numbers<[1], [0], [0], [1], [0, 0, 1, 1], [], []>} : vector<2x8xf32>, vector<8x20xf32>, vector<2x20xf32> -> vector<2x20xf32>
    %66 = arith.addf %65, %6 : vector<2x20xf32>
    %c7_60 = arith.constant 7 : index
    %c0_61 = arith.constant 0 : index
    %c0_62 = arith.constant 0 : index
    %67 = vector.load %arg14[%c7_60, %c0_61, %c0_62] : memref<8x2x20xf32, #tpu.memory_space<vmem>>, vector<1x2x20xf32>
    %68 = vector.shape_cast %67 : vector<1x2x20xf32> to vector<2x20xf32>
    %69 = vector.shape_cast %66 : vector<2x20xf32> to vector<1x2x20xf32>
    tpu.vector_store %arg14[%c7_60, %c0_61, %c0_62], %69 {strides = array<i32>} : memref<8x2x20xf32, #tpu.memory_space<vmem>>, vector<1x2x20xf32>,
    %c0_63 = arith.constant 0 : index
    %c0_64 = arith.constant 0 : index
    %c0_65 = arith.constant 0 : index
    %70 = vector.load %arg1[%c0_63, %c0_64, %c0_65] : memref<2x2x5xf32, #tpu.memory_space<vmem>>, vector<1x2x5xf32>
    %71 = vector.shape_cast %70 : vector<1x2x5xf32> to vector<2x5xf32>
    %c0_66 = arith.constant 0 : index
    %c0_67 = arith.constant 0 : index
    %c0_68 = arith.constant 0 : index
    %72 = vector.load %arg2[%c0_66, %c0_67, %c0_68] : memref<2x2x5xf32, #tpu.memory_space<vmem>>, vector<1x2x5xf32>
    %73 = vector.shape_cast %72 : vector<1x2x5xf32> to vector<2x5xf32>
    %c1_69 = arith.constant 1 : index
    %c0_70 = arith.constant 0 : index
    %c0_71 = arith.constant 0 : index
    %74 = vector.load %arg1[%c1_69, %c0_70, %c0_71] : memref<2x2x5xf32, #tpu.memory_space<vmem>>, vector<1x2x5xf32>
    %75 = vector.shape_cast %74 : vector<1x2x5xf32> to vector<2x5xf32>
    %c1_72 = arith.constant 1 : index
    %c0_73 = arith.constant 0 : index
    %c0_74 = arith.constant 0 : index
    %76 = vector.load %arg2[%c1_72, %c0_73, %c0_74] : memref<2x2x5xf32, #tpu.memory_space<vmem>>, vector<1x2x5xf32>
    %77 = vector.shape_cast %76 : vector<1x2x5xf32> to vector<2x5xf32>
    %c0_i32 = arith.constant 0 : i32
    %78 = arith.index_cast %c0_i32 : i32 to index
    %c0_75 = arith.constant 0 : index
    %c0_76 = arith.constant 0 : index
    %79 = vector.load %arg14[%78, %c0_75, %c0_76] : memref<8x2x20xf32, #tpu.memory_space<vmem>>, vector<1x2x20xf32>
    %80 = vector.shape_cast %79 : vector<1x2x20xf32> to vector<2x20xf32>
    %cst_77 = arith.constant dense<0.000000e+00> : vector<2x20xf32>
    %81 = tpu.matmul %71, %1, %cst_77 {dimension_numbers = #tpu.dot_dimension_numbers<[1], [0], [0], [1], [0, 0, 1, 1], [], []>} : vector<2x5xf32>, vector<5x20xf32>, vector<2x20xf32> -> vector<2x20xf32>
    %82 = arith.addf %80, %81 : vector<2x20xf32>
    %83 = arith.negf %82 : vector<2x20xf32>
    %84 = math.exp %83 : vector<2x20xf32>
    %cst_78 = arith.constant 1.000000e+00 : f32
    %85 = vector.broadcast %cst_78 : f32 to vector<2x20xf32>
    %86 = arith.addf %85, %84 : vector<2x20xf32>
    %87 = arith.divf %85, %86 : vector<2x20xf32>
    %88 = vector.extract_strided_slice %87 {offsets = [0, 0], sizes = [2, 5], strides = [1, 1]} : vector<2x20xf32> to vector<2x5xf32>
    %89 = vector.extract_strided_slice %87 {offsets = [0, 5], sizes = [2, 5], strides = [1, 1]} : vector<2x20xf32> to vector<2x5xf32>
    %90 = vector.extract_strided_slice %87 {offsets = [0, 15], sizes = [2, 5], strides = [1, 1]} : vector<2x20xf32> to vector<2x5xf32>
    %91 = vector.extract_strided_slice %82 {offsets = [0, 10], sizes = [2, 5], strides = [1, 1]} : vector<2x20xf32> to vector<2x5xf32>
    %92 = math.tanh %91 : vector<2x5xf32>
    %93 = arith.mulf %89, %73 : vector<2x5xf32>
    %94 = arith.mulf %88, %92 : vector<2x5xf32>
    %95 = arith.addf %93, %94 : vector<2x5xf32>
    %96 = math.tanh %95 : vector<2x5xf32>
    %97 = arith.mulf %90, %96 : vector<2x5xf32>
    %cst_79 = arith.constant dense<0.000000e+00> : vector<2x20xf32>
    %98 = tpu.matmul %97, %2, %cst_79 {dimension_numbers = #tpu.dot_dimension_numbers<[1], [0], [0], [1], [0, 0, 1, 1], [], []>} : vector<2x5xf32>, vector<5x20xf32>, vector<2x20xf32> -> vector<2x20xf32>
    %cst_80 = arith.constant dense<0.000000e+00> : vector<2x20xf32>
    %99 = tpu.matmul %75, %3, %cst_80 {dimension_numbers = #tpu.dot_dimension_numbers<[1], [0], [0], [1], [0, 0, 1, 1], [], []>} : vector<2x5xf32>, vector<5x20xf32>, vector<2x20xf32> -> vector<2x20xf32>
    %100 = arith.addf %98, %99 : vector<2x20xf32>
    %101 = arith.addf %100, %9 : vector<2x20xf32>
    %102 = arith.negf %101 : vector<2x20xf32>
    %103 = math.exp %102 : vector<2x20xf32>
    %cst_81 = arith.constant 1.000000e+00 : f32
    %104 = vector.broadcast %cst_81 : f32 to vector<2x20xf32>
    %105 = arith.addf %104, %103 : vector<2x20xf32>
    %106 = arith.divf %104, %105 : vector<2x20xf32>
    %107 = vector.extract_strided_slice %106 {offsets = [0, 0], sizes = [2, 5], strides = [1, 1]} : vector<2x20xf32> to vector<2x5xf32>
    %108 = vector.extract_strided_slice %106 {offsets = [0, 5], sizes = [2, 5], strides = [1, 1]} : vector<2x20xf32> to vector<2x5xf32>
    %109 = vector.extract_strided_slice %106 {offsets = [0, 15], sizes = [2, 5], strides = [1, 1]} : vector<2x20xf32> to vector<2x5xf32>
    %110 = vector.extract_strided_slice %101 {offsets = [0, 10], sizes = [2, 5], strides = [1, 1]} : vector<2x20xf32> to vector<2x5xf32>
    %111 = math.tanh %110 : vector<2x5xf32>
    %112 = arith.mulf %108, %77 : vector<2x5xf32>
    %113 = arith.mulf %107, %111 : vector<2x5xf32>
    %114 = arith.addf %112, %113 : vector<2x5xf32>
    %115 = math.tanh %114 : vector<2x5xf32>
    %116 = arith.mulf %109, %115 : vector<2x5xf32>
    %117 = arith.index_cast %c0_i32 : i32 to index
    %c0_82 = arith.constant 0 : index
    %c0_83 = arith.constant 0 : index
    %118 = vector.load %arg15[%117, %c0_82, %c0_83] : memref<8x2x5xf32, #tpu.memory_space<vmem>>, vector<1x2x5xf32>
    %119 = vector.shape_cast %118 : vector<1x2x5xf32> to vector<2x5xf32>
    %120 = vector.shape_cast %116 : vector<2x5xf32> to vector<1x2x5xf32>
    tpu.vector_store %arg15[%117, %c0_82, %c0_83], %120 {strides = array<i32>} : memref<8x2x5xf32, #tpu.memory_space<vmem>>, vector<1x2x5xf32>,
    %c1_i32 = arith.constant 1 : i32
    %121 = arith.index_cast %c1_i32 : i32 to index
    %c0_84 = arith.constant 0 : index
    %c0_85 = arith.constant 0 : index
    %122 = vector.load %arg14[%121, %c0_84, %c0_85] : memref<8x2x20xf32, #tpu.memory_space<vmem>>, vector<1x2x20xf32>
    %123 = vector.shape_cast %122 : vector<1x2x20xf32> to vector<2x20xf32>
    %cst_86 = arith.constant dense<0.000000e+00> : vector<2x20xf32>
    %124 = tpu.matmul %97, %1, %cst_86 {dimension_numbers = #tpu.dot_dimension_numbers<[1], [0], [0], [1], [0, 0, 1, 1], [], []>} : vector<2x5xf32>, vector<5x20xf32>, vector<2x20xf32> -> vector<2x20xf32>
    %125 = arith.addf %123, %124 : vector<2x20xf32>
    %126 = arith.negf %125 : vector<2x20xf32>
    %127 = math.exp %126 : vector<2x20xf32>
    %cst_87 = arith.constant 1.000000e+00 : f32
    %128 = vector.broadcast %cst_87 : f32 to vector<2x20xf32>
    %129 = arith.addf %128, %127 : vector<2x20xf32>
    %130 = arith.divf %128, %129 : vector<2x20xf32>
    %131 = vector.extract_strided_slice %130 {offsets = [0, 0], sizes = [2, 5], strides = [1, 1]} : vector<2x20xf32> to vector<2x5xf32>
    %132 = vector.extract_strided_slice %130 {offsets = [0, 5], sizes = [2, 5], strides = [1, 1]} : vector<2x20xf32> to vector<2x5xf32>
    %133 = vector.extract_strided_slice %130 {offsets = [0, 15], sizes = [2, 5], strides = [1, 1]} : vector<2x20xf32> to vector<2x5xf32>
    %134 = vector.extract_strided_slice %125 {offsets = [0, 10], sizes = [2, 5], strides = [1, 1]} : vector<2x20xf32> to vector<2x5xf32>
    %135 = math.tanh %134 : vector<2x5xf32>
    %136 = arith.mulf %132, %95 : vector<2x5xf32>
    %137 = arith.mulf %131, %135 : vector<2x5xf32>
    %138 = arith.addf %136, %137 : vector<2x5xf32>
    %139 = math.tanh %138 : vector<2x5xf32>
    %140 = arith.mulf %133, %139 : vector<2x5xf32>
    %cst_88 = arith.constant dense<0.000000e+00> : vector<2x20xf32>
    %141 = tpu.matmul %140, %2, %cst_88 {dimension_numbers = #tpu.dot_dimension_numbers<[1], [0], [0], [1], [0, 0, 1, 1], [], []>} : vector<2x5xf32>, vector<5x20xf32>, vector<2x20xf32> -> vector<2x20xf32>
    %cst_89 = arith.constant dense<0.000000e+00> : vector<2x20xf32>
    %142 = tpu.matmul %116, %3, %cst_89 {dimension_numbers = #tpu.dot_dimension_numbers<[1], [0], [0], [1], [0, 0, 1, 1], [], []>} : vector<2x5xf32>, vector<5x20xf32>, vector<2x20xf32> -> vector<2x20xf32>
    %143 = arith.addf %141, %142 : vector<2x20xf32>
    %144 = arith.addf %143, %9 : vector<2x20xf32>
    %145 = arith.negf %144 : vector<2x20xf32>
    %146 = math.exp %145 : vector<2x20xf32>
    %cst_90 = arith.constant 1.000000e+00 : f32
    %147 = vector.broadcast %cst_90 : f32 to vector<2x20xf32>
    %148 = arith.addf %147, %146 : vector<2x20xf32>
    %149 = arith.divf %147, %148 : vector<2x20xf32>
    %150 = vector.extract_strided_slice %149 {offsets = [0, 0], sizes = [2, 5], strides = [1, 1]} : vector<2x20xf32> to vector<2x5xf32>
    %151 = vector.extract_strided_slice %149 {offsets = [0, 5], sizes = [2, 5], strides = [1, 1]} : vector<2x20xf32> to vector<2x5xf32>
    %152 = vector.extract_strided_slice %149 {offsets = [0, 15], sizes = [2, 5], strides = [1, 1]} : vector<2x20xf32> to vector<2x5xf32>
    %153 = vector.extract_strided_slice %144 {offsets = [0, 10], sizes = [2, 5], strides = [1, 1]} : vector<2x20xf32> to vector<2x5xf32>
    %154 = math.tanh %153 : vector<2x5xf32>
    %155 = arith.mulf %151, %114 : vector<2x5xf32>
    %156 = arith.mulf %150, %154 : vector<2x5xf32>
    %157 = arith.addf %155, %156 : vector<2x5xf32>
    %158 = math.tanh %157 : vector<2x5xf32>
    %159 = arith.mulf %152, %158 : vector<2x5xf32>
    %160 = arith.index_cast %c1_i32 : i32 to index
    %c0_91 = arith.constant 0 : index
    %c0_92 = arith.constant 0 : index
    %161 = vector.load %arg15[%160, %c0_91, %c0_92] : memref<8x2x5xf32, #tpu.memory_space<vmem>>, vector<1x2x5xf32>
    %162 = vector.shape_cast %161 : vector<1x2x5xf32> to vector<2x5xf32>
    %163 = vector.shape_cast %159 : vector<2x5xf32> to vector<1x2x5xf32>
    tpu.vector_store %arg15[%160, %c0_91, %c0_92], %163 {strides = array<i32>} : memref<8x2x5xf32, #tpu.memory_space<vmem>>, vector<1x2x5xf32>,
    %c2_i32 = arith.constant 2 : i32
    %164 = arith.index_cast %c2_i32 : i32 to index
    %c0_93 = arith.constant 0 : index
    %c0_94 = arith.constant 0 : index
    %165 = vector.load %arg14[%164, %c0_93, %c0_94] : memref<8x2x20xf32, #tpu.memory_space<vmem>>, vector<1x2x20xf32>
    %166 = vector.shape_cast %165 : vector<1x2x20xf32> to vector<2x20xf32>
    %cst_95 = arith.constant dense<0.000000e+00> : vector<2x20xf32>
    %167 = tpu.matmul %140, %1, %cst_95 {dimension_numbers = #tpu.dot_dimension_numbers<[1], [0], [0], [1], [0, 0, 1, 1], [], []>} : vector<2x5xf32>, vector<5x20xf32>, vector<2x20xf32> -> vector<2x20xf32>
    %168 = arith.addf %166, %167 : vector<2x20xf32>
    %169 = arith.negf %168 : vector<2x20xf32>
    %170 = math.exp %169 : vector<2x20xf32>
    %cst_96 = arith.constant 1.000000e+00 : f32
    %171 = vector.broadcast %cst_96 : f32 to vector<2x20xf32>
    %172 = arith.addf %171, %170 : vector<2x20xf32>
    %173 = arith.divf %171, %172 : vector<2x20xf32>
    %174 = vector.extract_strided_slice %173 {offsets = [0, 0], sizes = [2, 5], strides = [1, 1]} : vector<2x20xf32> to vector<2x5xf32>
    %175 = vector.extract_strided_slice %173 {offsets = [0, 5], sizes = [2, 5], strides = [1, 1]} : vector<2x20xf32> to vector<2x5xf32>
    %176 = vector.extract_strided_slice %173 {offsets = [0, 15], sizes = [2, 5], strides = [1, 1]} : vector<2x20xf32> to vector<2x5xf32>
    %177 = vector.extract_strided_slice %168 {offsets = [0, 10], sizes = [2, 5], strides = [1, 1]} : vector<2x20xf32> to vector<2x5xf32>
    %178 = math.tanh %177 : vector<2x5xf32>
    %179 = arith.mulf %175, %138 : vector<2x5xf32>
    %180 = arith.mulf %174, %178 : vector<2x5xf32>
    %181 = arith.addf %179, %180 : vector<2x5xf32>
    %182 = math.tanh %181 : vector<2x5xf32>
    %183 = arith.mulf %176, %182 : vector<2x5xf32>
    %cst_97 = arith.constant dense<0.000000e+00> : vector<2x20xf32>
    %184 = tpu.matmul %183, %2, %cst_97 {dimension_numbers = #tpu.dot_dimension_numbers<[1], [0], [0], [1], [0, 0, 1, 1], [], []>} : vector<2x5xf32>, vector<5x20xf32>, vector<2x20xf32> -> vector<2x20xf32>
    %cst_98 = arith.constant dense<0.000000e+00> : vector<2x20xf32>
    %185 = tpu.matmul %159, %3, %cst_98 {dimension_numbers = #tpu.dot_dimension_numbers<[1], [0], [0], [1], [0, 0, 1, 1], [], []>} : vector<2x5xf32>, vector<5x20xf32>, vector<2x20xf32> -> vector<2x20xf32>
    %186 = arith.addf %184, %185 : vector<2x20xf32>
    %187 = arith.addf %186, %9 : vector<2x20xf32>
    %188 = arith.negf %187 : vector<2x20xf32>
    %189 = math.exp %188 : vector<2x20xf32>
    %cst_99 = arith.constant 1.000000e+00 : f32
    %190 = vector.broadcast %cst_99 : f32 to vector<2x20xf32>
    %191 = arith.addf %190, %189 : vector<2x20xf32>
    %192 = arith.divf %190, %191 : vector<2x20xf32>
    %193 = vector.extract_strided_slice %192 {offsets = [0, 0], sizes = [2, 5], strides = [1, 1]} : vector<2x20xf32> to vector<2x5xf32>
    %194 = vector.extract_strided_slice %192 {offsets = [0, 5], sizes = [2, 5], strides = [1, 1]} : vector<2x20xf32> to vector<2x5xf32>
    %195 = vector.extract_strided_slice %192 {offsets = [0, 15], sizes = [2, 5], strides = [1, 1]} : vector<2x20xf32> to vector<2x5xf32>
    %196 = vector.extract_strided_slice %187 {offsets = [0, 10], sizes = [2, 5], strides = [1, 1]} : vector<2x20xf32> to vector<2x5xf32>
    %197 = math.tanh %196 : vector<2x5xf32>
    %198 = arith.mulf %194, %157 : vector<2x5xf32>
    %199 = arith.mulf %193, %197 : vector<2x5xf32>
    %200 = arith.addf %198, %199 : vector<2x5xf32>
    %201 = math.tanh %200 : vector<2x5xf32>
    %202 = arith.mulf %195, %201 : vector<2x5xf32>
    %203 = arith.index_cast %c2_i32 : i32 to index
    %c0_100 = arith.constant 0 : index
    %c0_101 = arith.constant 0 : index
    %204 = vector.load %arg15[%203, %c0_100, %c0_101] : memref<8x2x5xf32, #tpu.memory_space<vmem>>, vector<1x2x5xf32>
    %205 = vector.shape_cast %204 : vector<1x2x5xf32> to vector<2x5xf32>
    %206 = vector.shape_cast %202 : vector<2x5xf32> to vector<1x2x5xf32>
    tpu.vector_store %arg15[%203, %c0_100, %c0_101], %206 {strides = array<i32>} : memref<8x2x5xf32, #tpu.memory_space<vmem>>, vector<1x2x5xf32>,
    %c3_i32 = arith.constant 3 : i32
    %207 = arith.index_cast %c3_i32 : i32 to index
    %c0_102 = arith.constant 0 : index
    %c0_103 = arith.constant 0 : index
    %208 = vector.load %arg14[%207, %c0_102, %c0_103] : memref<8x2x20xf32, #tpu.memory_space<vmem>>, vector<1x2x20xf32>
    %209 = vector.shape_cast %208 : vector<1x2x20xf32> to vector<2x20xf32>
    %cst_104 = arith.constant dense<0.000000e+00> : vector<2x20xf32>
    %210 = tpu.matmul %183, %1, %cst_104 {dimension_numbers = #tpu.dot_dimension_numbers<[1], [0], [0], [1], [0, 0, 1, 1], [], []>} : vector<2x5xf32>, vector<5x20xf32>, vector<2x20xf32> -> vector<2x20xf32>
    %211 = arith.addf %209, %210 : vector<2x20xf32>
    %212 = arith.negf %211 : vector<2x20xf32>
    %213 = math.exp %212 : vector<2x20xf32>
    %cst_105 = arith.constant 1.000000e+00 : f32
    %214 = vector.broadcast %cst_105 : f32 to vector<2x20xf32>
    %215 = arith.addf %214, %213 : vector<2x20xf32>
    %216 = arith.divf %214, %215 : vector<2x20xf32>
    %217 = vector.extract_strided_slice %216 {offsets = [0, 0], sizes = [2, 5], strides = [1, 1]} : vector<2x20xf32> to vector<2x5xf32>
    %218 = vector.extract_strided_slice %216 {offsets = [0, 5], sizes = [2, 5], strides = [1, 1]} : vector<2x20xf32> to vector<2x5xf32>
    %219 = vector.extract_strided_slice %216 {offsets = [0, 15], sizes = [2, 5], strides = [1, 1]} : vector<2x20xf32> to vector<2x5xf32>
    %220 = vector.extract_strided_slice %211 {offsets = [0, 10], sizes = [2, 5], strides = [1, 1]} : vector<2x20xf32> to vector<2x5xf32>
    %221 = math.tanh %220 : vector<2x5xf32>
    %222 = arith.mulf %218, %181 : vector<2x5xf32>
    %223 = arith.mulf %217, %221 : vector<2x5xf32>
    %224 = arith.addf %222, %223 : vector<2x5xf32>
    %225 = math.tanh %224 : vector<2x5xf32>
    %226 = arith.mulf %219, %225 : vector<2x5xf32>
    %cst_106 = arith.constant dense<0.000000e+00> : vector<2x20xf32>
    %227 = tpu.matmul %226, %2, %cst_106 {dimension_numbers = #tpu.dot_dimension_numbers<[1], [0], [0], [1], [0, 0, 1, 1], [], []>} : vector<2x5xf32>, vector<5x20xf32>, vector<2x20xf32> -> vector<2x20xf32>
    %cst_107 = arith.constant dense<0.000000e+00> : vector<2x20xf32>
    %228 = tpu.matmul %202, %3, %cst_107 {dimension_numbers = #tpu.dot_dimension_numbers<[1], [0], [0], [1], [0, 0, 1, 1], [], []>} : vector<2x5xf32>, vector<5x20xf32>, vector<2x20xf32> -> vector<2x20xf32>
    %229 = arith.addf %227, %228 : vector<2x20xf32>
    %230 = arith.addf %229, %9 : vector<2x20xf32>
    %231 = arith.negf %230 : vector<2x20xf32>
    %232 = math.exp %231 : vector<2x20xf32>
    %cst_108 = arith.constant 1.000000e+00 : f32
    %233 = vector.broadcast %cst_108 : f32 to vector<2x20xf32>
    %234 = arith.addf %233, %232 : vector<2x20xf32>
    %235 = arith.divf %233, %234 : vector<2x20xf32>
    %236 = vector.extract_strided_slice %235 {offsets = [0, 0], sizes = [2, 5], strides = [1, 1]} : vector<2x20xf32> to vector<2x5xf32>
    %237 = vector.extract_strided_slice %235 {offsets = [0, 5], sizes = [2, 5], strides = [1, 1]} : vector<2x20xf32> to vector<2x5xf32>
    %238 = vector.extract_strided_slice %235 {offsets = [0, 15], sizes = [2, 5], strides = [1, 1]} : vector<2x20xf32> to vector<2x5xf32>
    %239 = vector.extract_strided_slice %230 {offsets = [0, 10], sizes = [2, 5], strides = [1, 1]} : vector<2x20xf32> to vector<2x5xf32>
    %240 = math.tanh %239 : vector<2x5xf32>
    %241 = arith.mulf %237, %200 : vector<2x5xf32>
    %242 = arith.mulf %236, %240 : vector<2x5xf32>
    %243 = arith.addf %241, %242 : vector<2x5xf32>
    %244 = math.tanh %243 : vector<2x5xf32>
    %245 = arith.mulf %238, %244 : vector<2x5xf32>
    %246 = arith.index_cast %c3_i32 : i32 to index
    %c0_109 = arith.constant 0 : index
    %c0_110 = arith.constant 0 : index
    %247 = vector.load %arg15[%246, %c0_109, %c0_110] : memref<8x2x5xf32, #tpu.memory_space<vmem>>, vector<1x2x5xf32>
    %248 = vector.shape_cast %247 : vector<1x2x5xf32> to vector<2x5xf32>
    %249 = vector.shape_cast %245 : vector<2x5xf32> to vector<1x2x5xf32>
    tpu.vector_store %arg15[%246, %c0_109, %c0_110], %249 {strides = array<i32>} : memref<8x2x5xf32, #tpu.memory_space<vmem>>, vector<1x2x5xf32>,
    %c4_i32 = arith.constant 4 : i32
    %250 = arith.index_cast %c4_i32 : i32 to index
    %c0_111 = arith.constant 0 : index
    %c0_112 = arith.constant 0 : index
    %251 = vector.load %arg14[%250, %c0_111, %c0_112] : memref<8x2x20xf32, #tpu.memory_space<vmem>>, vector<1x2x20xf32>
    %252 = vector.shape_cast %251 : vector<1x2x20xf32> to vector<2x20xf32>
    %cst_113 = arith.constant dense<0.000000e+00> : vector<2x20xf32>
    %253 = tpu.matmul %226, %1, %cst_113 {dimension_numbers = #tpu.dot_dimension_numbers<[1], [0], [0], [1], [0, 0, 1, 1], [], []>} : vector<2x5xf32>, vector<5x20xf32>, vector<2x20xf32> -> vector<2x20xf32>
    %254 = arith.addf %252, %253 : vector<2x20xf32>
    %255 = arith.negf %254 : vector<2x20xf32>
    %256 = math.exp %255 : vector<2x20xf32>
    %cst_114 = arith.constant 1.000000e+00 : f32
    %257 = vector.broadcast %cst_114 : f32 to vector<2x20xf32>
    %258 = arith.addf %257, %256 : vector<2x20xf32>
    %259 = arith.divf %257, %258 : vector<2x20xf32>
    %260 = vector.extract_strided_slice %259 {offsets = [0, 0], sizes = [2, 5], strides = [1, 1]} : vector<2x20xf32> to vector<2x5xf32>
    %261 = vector.extract_strided_slice %259 {offsets = [0, 5], sizes = [2, 5], strides = [1, 1]} : vector<2x20xf32> to vector<2x5xf32>
    %262 = vector.extract_strided_slice %259 {offsets = [0, 15], sizes = [2, 5], strides = [1, 1]} : vector<2x20xf32> to vector<2x5xf32>
    %263 = vector.extract_strided_slice %254 {offsets = [0, 10], sizes = [2, 5], strides = [1, 1]} : vector<2x20xf32> to vector<2x5xf32>
    %264 = math.tanh %263 : vector<2x5xf32>
    %265 = arith.mulf %261, %224 : vector<2x5xf32>
    %266 = arith.mulf %260, %264 : vector<2x5xf32>
    %267 = arith.addf %265, %266 : vector<2x5xf32>
    %268 = math.tanh %267 : vector<2x5xf32>
    %269 = arith.mulf %262, %268 : vector<2x5xf32>
    %cst_115 = arith.constant dense<0.000000e+00> : vector<2x20xf32>
    %270 = tpu.matmul %269, %2, %cst_115 {dimension_numbers = #tpu.dot_dimension_numbers<[1], [0], [0], [1], [0, 0, 1, 1], [], []>} : vector<2x5xf32>, vector<5x20xf32>, vector<2x20xf32> -> vector<2x20xf32>
    %cst_116 = arith.constant dense<0.000000e+00> : vector<2x20xf32>
    %271 = tpu.matmul %245, %3, %cst_116 {dimension_numbers = #tpu.dot_dimension_numbers<[1], [0], [0], [1], [0, 0, 1, 1], [], []>} : vector<2x5xf32>, vector<5x20xf32>, vector<2x20xf32> -> vector<2x20xf32>
    %272 = arith.addf %270, %271 : vector<2x20xf32>
    %273 = arith.addf %272, %9 : vector<2x20xf32>
    %274 = arith.negf %273 : vector<2x20xf32>
    %275 = math.exp %274 : vector<2x20xf32>
    %cst_117 = arith.constant 1.000000e+00 : f32
    %276 = vector.broadcast %cst_117 : f32 to vector<2x20xf32>
    %277 = arith.addf %276, %275 : vector<2x20xf32>
    %278 = arith.divf %276, %277 : vector<2x20xf32>
    %279 = vector.extract_strided_slice %278 {offsets = [0, 0], sizes = [2, 5], strides = [1, 1]} : vector<2x20xf32> to vector<2x5xf32>
    %280 = vector.extract_strided_slice %278 {offsets = [0, 5], sizes = [2, 5], strides = [1, 1]} : vector<2x20xf32> to vector<2x5xf32>
    %281 = vector.extract_strided_slice %278 {offsets = [0, 15], sizes = [2, 5], strides = [1, 1]} : vector<2x20xf32> to vector<2x5xf32>
    %282 = vector.extract_strided_slice %273 {offsets = [0, 10], sizes = [2, 5], strides = [1, 1]} : vector<2x20xf32> to vector<2x5xf32>
    %283 = math.tanh %282 : vector<2x5xf32>
    %284 = arith.mulf %280, %243 : vector<2x5xf32>
    %285 = arith.mulf %279, %283 : vector<2x5xf32>
    %286 = arith.addf %284, %285 : vector<2x5xf32>
    %287 = math.tanh %286 : vector<2x5xf32>
    %288 = arith.mulf %281, %287 : vector<2x5xf32>
    %289 = arith.index_cast %c4_i32 : i32 to index
    %c0_118 = arith.constant 0 : index
    %c0_119 = arith.constant 0 : index
    %290 = vector.load %arg15[%289, %c0_118, %c0_119] : memref<8x2x5xf32, #tpu.memory_space<vmem>>, vector<1x2x5xf32>
    %291 = vector.shape_cast %290 : vector<1x2x5xf32> to vector<2x5xf32>
    %292 = vector.shape_cast %288 : vector<2x5xf32> to vector<1x2x5xf32>
    tpu.vector_store %arg15[%289, %c0_118, %c0_119], %292 {strides = array<i32>} : memref<8x2x5xf32, #tpu.memory_space<vmem>>, vector<1x2x5xf32>,
    %c5_i32 = arith.constant 5 : i32
    %293 = arith.index_cast %c5_i32 : i32 to index
    %c0_120 = arith.constant 0 : index
    %c0_121 = arith.constant 0 : index
    %294 = vector.load %arg14[%293, %c0_120, %c0_121] : memref<8x2x20xf32, #tpu.memory_space<vmem>>, vector<1x2x20xf32>
    %295 = vector.shape_cast %294 : vector<1x2x20xf32> to vector<2x20xf32>
    %cst_122 = arith.constant dense<0.000000e+00> : vector<2x20xf32>
    %296 = tpu.matmul %269, %1, %cst_122 {dimension_numbers = #tpu.dot_dimension_numbers<[1], [0], [0], [1], [0, 0, 1, 1], [], []>} : vector<2x5xf32>, vector<5x20xf32>, vector<2x20xf32> -> vector<2x20xf32>
    %297 = arith.addf %295, %296 : vector<2x20xf32>
    %298 = arith.negf %297 : vector<2x20xf32>
    %299 = math.exp %298 : vector<2x20xf32>
    %cst_123 = arith.constant 1.000000e+00 : f32
    %300 = vector.broadcast %cst_123 : f32 to vector<2x20xf32>
    %301 = arith.addf %300, %299 : vector<2x20xf32>
    %302 = arith.divf %300, %301 : vector<2x20xf32>
    %303 = vector.extract_strided_slice %302 {offsets = [0, 0], sizes = [2, 5], strides = [1, 1]} : vector<2x20xf32> to vector<2x5xf32>
    %304 = vector.extract_strided_slice %302 {offsets = [0, 5], sizes = [2, 5], strides = [1, 1]} : vector<2x20xf32> to vector<2x5xf32>
    %305 = vector.extract_strided_slice %302 {offsets = [0, 15], sizes = [2, 5], strides = [1, 1]} : vector<2x20xf32> to vector<2x5xf32>
    %306 = vector.extract_strided_slice %297 {offsets = [0, 10], sizes = [2, 5], strides = [1, 1]} : vector<2x20xf32> to vector<2x5xf32>
    %307 = math.tanh %306 : vector<2x5xf32>
    %308 = arith.mulf %304, %267 : vector<2x5xf32>
    %309 = arith.mulf %303, %307 : vector<2x5xf32>
    %310 = arith.addf %308, %309 : vector<2x5xf32>
    %311 = math.tanh %310 : vector<2x5xf32>
    %312 = arith.mulf %305, %311 : vector<2x5xf32>
    %cst_124 = arith.constant dense<0.000000e+00> : vector<2x20xf32>
    %313 = tpu.matmul %312, %2, %cst_124 {dimension_numbers = #tpu.dot_dimension_numbers<[1], [0], [0], [1], [0, 0, 1, 1], [], []>} : vector<2x5xf32>, vector<5x20xf32>, vector<2x20xf32> -> vector<2x20xf32>
    %cst_125 = arith.constant dense<0.000000e+00> : vector<2x20xf32>
    %314 = tpu.matmul %288, %3, %cst_125 {dimension_numbers = #tpu.dot_dimension_numbers<[1], [0], [0], [1], [0, 0, 1, 1], [], []>} : vector<2x5xf32>, vector<5x20xf32>, vector<2x20xf32> -> vector<2x20xf32>
    %315 = arith.addf %313, %314 : vector<2x20xf32>
    %316 = arith.addf %315, %9 : vector<2x20xf32>
    %317 = arith.negf %316 : vector<2x20xf32>
    %318 = math.exp %317 : vector<2x20xf32>
    %cst_126 = arith.constant 1.000000e+00 : f32
    %319 = vector.broadcast %cst_126 : f32 to vector<2x20xf32>
    %320 = arith.addf %319, %318 : vector<2x20xf32>
    %321 = arith.divf %319, %320 : vector<2x20xf32>
    %322 = vector.extract_strided_slice %321 {offsets = [0, 0], sizes = [2, 5], strides = [1, 1]} : vector<2x20xf32> to vector<2x5xf32>
    %323 = vector.extract_strided_slice %321 {offsets = [0, 5], sizes = [2, 5], strides = [1, 1]} : vector<2x20xf32> to vector<2x5xf32>
    %324 = vector.extract_strided_slice %321 {offsets = [0, 15], sizes = [2, 5], strides = [1, 1]} : vector<2x20xf32> to vector<2x5xf32>
    %325 = vector.extract_strided_slice %316 {offsets = [0, 10], sizes = [2, 5], strides = [1, 1]} : vector<2x20xf32> to vector<2x5xf32>
    %326 = math.tanh %325 : vector<2x5xf32>
    %327 = arith.mulf %323, %286 : vector<2x5xf32>
    %328 = arith.mulf %322, %326 : vector<2x5xf32>
    %329 = arith.addf %327, %328 : vector<2x5xf32>
    %330 = math.tanh %329 : vector<2x5xf32>
    %331 = arith.mulf %324, %330 : vector<2x5xf32>
    %332 = arith.index_cast %c5_i32 : i32 to index
    %c0_127 = arith.constant 0 : index
    %c0_128 = arith.constant 0 : index
    %333 = vector.load %arg15[%332, %c0_127, %c0_128] : memref<8x2x5xf32, #tpu.memory_space<vmem>>, vector<1x2x5xf32>
    %334 = vector.shape_cast %333 : vector<1x2x5xf32> to vector<2x5xf32>
    %335 = vector.shape_cast %331 : vector<2x5xf32> to vector<1x2x5xf32>
    tpu.vector_store %arg15[%332, %c0_127, %c0_128], %335 {strides = array<i32>} : memref<8x2x5xf32, #tpu.memory_space<vmem>>, vector<1x2x5xf32>,
    %c6_i32 = arith.constant 6 : i32
    %336 = arith.index_cast %c6_i32 : i32 to index
    %c0_129 = arith.constant 0 : index
    %c0_130 = arith.constant 0 : index
    %337 = vector.load %arg14[%336, %c0_129, %c0_130] : memref<8x2x20xf32, #tpu.memory_space<vmem>>, vector<1x2x20xf32>
    %338 = vector.shape_cast %337 : vector<1x2x20xf32> to vector<2x20xf32>
    %cst_131 = arith.constant dense<0.000000e+00> : vector<2x20xf32>
    %339 = tpu.matmul %312, %1, %cst_131 {dimension_numbers = #tpu.dot_dimension_numbers<[1], [0], [0], [1], [0, 0, 1, 1], [], []>} : vector<2x5xf32>, vector<5x20xf32>, vector<2x20xf32> -> vector<2x20xf32>
    %340 = arith.addf %338, %339 : vector<2x20xf32>
    %341 = arith.negf %340 : vector<2x20xf32>
    %342 = math.exp %341 : vector<2x20xf32>
    %cst_132 = arith.constant 1.000000e+00 : f32
    %343 = vector.broadcast %cst_132 : f32 to vector<2x20xf32>
    %344 = arith.addf %343, %342 : vector<2x20xf32>
    %345 = arith.divf %343, %344 : vector<2x20xf32>
    %346 = vector.extract_strided_slice %345 {offsets = [0, 0], sizes = [2, 5], strides = [1, 1]} : vector<2x20xf32> to vector<2x5xf32>
    %347 = vector.extract_strided_slice %345 {offsets = [0, 5], sizes = [2, 5], strides = [1, 1]} : vector<2x20xf32> to vector<2x5xf32>
    %348 = vector.extract_strided_slice %345 {offsets = [0, 15], sizes = [2, 5], strides = [1, 1]} : vector<2x20xf32> to vector<2x5xf32>
    %349 = vector.extract_strided_slice %340 {offsets = [0, 10], sizes = [2, 5], strides = [1, 1]} : vector<2x20xf32> to vector<2x5xf32>
    %350 = math.tanh %349 : vector<2x5xf32>
    %351 = arith.mulf %347, %310 : vector<2x5xf32>
    %352 = arith.mulf %346, %350 : vector<2x5xf32>
    %353 = arith.addf %351, %352 : vector<2x5xf32>
    %354 = math.tanh %353 : vector<2x5xf32>
    %355 = arith.mulf %348, %354 : vector<2x5xf32>
    %cst_133 = arith.constant dense<0.000000e+00> : vector<2x20xf32>
    %356 = tpu.matmul %355, %2, %cst_133 {dimension_numbers = #tpu.dot_dimension_numbers<[1], [0], [0], [1], [0, 0, 1, 1], [], []>} : vector<2x5xf32>, vector<5x20xf32>, vector<2x20xf32> -> vector<2x20xf32>
    %cst_134 = arith.constant dense<0.000000e+00> : vector<2x20xf32>
    %357 = tpu.matmul %331, %3, %cst_134 {dimension_numbers = #tpu.dot_dimension_numbers<[1], [0], [0], [1], [0, 0, 1, 1], [], []>} : vector<2x5xf32>, vector<5x20xf32>, vector<2x20xf32> -> vector<2x20xf32>
    %358 = arith.addf %356, %357 : vector<2x20xf32>
    %359 = arith.addf %358, %9 : vector<2x20xf32>
    %360 = arith.negf %359 : vector<2x20xf32>
    %361 = math.exp %360 : vector<2x20xf32>
    %cst_135 = arith.constant 1.000000e+00 : f32
    %362 = vector.broadcast %cst_135 : f32 to vector<2x20xf32>
    %363 = arith.addf %362, %361 : vector<2x20xf32>
    %364 = arith.divf %362, %363 : vector<2x20xf32>
    %365 = vector.extract_strided_slice %364 {offsets = [0, 0], sizes = [2, 5], strides = [1, 1]} : vector<2x20xf32> to vector<2x5xf32>
    %366 = vector.extract_strided_slice %364 {offsets = [0, 5], sizes = [2, 5], strides = [1, 1]} : vector<2x20xf32> to vector<2x5xf32>
    %367 = vector.extract_strided_slice %364 {offsets = [0, 15], sizes = [2, 5], strides = [1, 1]} : vector<2x20xf32> to vector<2x5xf32>
    %368 = vector.extract_strided_slice %359 {offsets = [0, 10], sizes = [2, 5], strides = [1, 1]} : vector<2x20xf32> to vector<2x5xf32>
    %369 = math.tanh %368 : vector<2x5xf32>
    %370 = arith.mulf %366, %329 : vector<2x5xf32>
    %371 = arith.mulf %365, %369 : vector<2x5xf32>
    %372 = arith.addf %370, %371 : vector<2x5xf32>
    %373 = math.tanh %372 : vector<2x5xf32>
    %374 = arith.mulf %367, %373 : vector<2x5xf32>
    %375 = arith.index_cast %c6_i32 : i32 to index
    %c0_136 = arith.constant 0 : index
    %c0_137 = arith.constant 0 : index
    %376 = vector.load %arg15[%375, %c0_136, %c0_137] : memref<8x2x5xf32, #tpu.memory_space<vmem>>, vector<1x2x5xf32>
    %377 = vector.shape_cast %376 : vector<1x2x5xf32> to vector<2x5xf32>
    %378 = vector.shape_cast %374 : vector<2x5xf32> to vector<1x2x5xf32>
    tpu.vector_store %arg15[%375, %c0_136, %c0_137], %378 {strides = array<i32>} : memref<8x2x5xf32, #tpu.memory_space<vmem>>, vector<1x2x5xf32>,
    %c7_i32 = arith.constant 7 : i32
    %379 = arith.index_cast %c7_i32 : i32 to index
    %c0_138 = arith.constant 0 : index
    %c0_139 = arith.constant 0 : index
    %380 = vector.load %arg14[%379, %c0_138, %c0_139] : memref<8x2x20xf32, #tpu.memory_space<vmem>>, vector<1x2x20xf32>
    %381 = vector.shape_cast %380 : vector<1x2x20xf32> to vector<2x20xf32>
    %cst_140 = arith.constant dense<0.000000e+00> : vector<2x20xf32>
    %382 = tpu.matmul %355, %1, %cst_140 {dimension_numbers = #tpu.dot_dimension_numbers<[1], [0], [0], [1], [0, 0, 1, 1], [], []>} : vector<2x5xf32>, vector<5x20xf32>, vector<2x20xf32> -> vector<2x20xf32>
    %383 = arith.addf %381, %382 : vector<2x20xf32>
    %384 = arith.negf %383 : vector<2x20xf32>
    %385 = math.exp %384 : vector<2x20xf32>
    %cst_141 = arith.constant 1.000000e+00 : f32
    %386 = vector.broadcast %cst_141 : f32 to vector<2x20xf32>
    %387 = arith.addf %386, %385 : vector<2x20xf32>
    %388 = arith.divf %386, %387 : vector<2x20xf32>
    %389 = vector.extract_strided_slice %388 {offsets = [0, 0], sizes = [2, 5], strides = [1, 1]} : vector<2x20xf32> to vector<2x5xf32>
    %390 = vector.extract_strided_slice %388 {offsets = [0, 5], sizes = [2, 5], strides = [1, 1]} : vector<2x20xf32> to vector<2x5xf32>
    %391 = vector.extract_strided_slice %388 {offsets = [0, 15], sizes = [2, 5], strides = [1, 1]} : vector<2x20xf32> to vector<2x5xf32>
    %392 = vector.extract_strided_slice %383 {offsets = [0, 10], sizes = [2, 5], strides = [1, 1]} : vector<2x20xf32> to vector<2x5xf32>
    %393 = math.tanh %392 : vector<2x5xf32>
    %394 = arith.mulf %390, %353 : vector<2x5xf32>
    %395 = arith.mulf %389, %393 : vector<2x5xf32>
    %396 = arith.addf %394, %395 : vector<2x5xf32>
    %397 = math.tanh %396 : vector<2x5xf32>
    %398 = arith.mulf %391, %397 : vector<2x5xf32>
    %cst_142 = arith.constant dense<0.000000e+00> : vector<2x20xf32>
    %399 = tpu.matmul %398, %2, %cst_142 {dimension_numbers = #tpu.dot_dimension_numbers<[1], [0], [0], [1], [0, 0, 1, 1], [], []>} : vector<2x5xf32>, vector<5x20xf32>, vector<2x20xf32> -> vector<2x20xf32>
    %cst_143 = arith.constant dense<0.000000e+00> : vector<2x20xf32>
    %400 = tpu.matmul %374, %3, %cst_143 {dimension_numbers = #tpu.dot_dimension_numbers<[1], [0], [0], [1], [0, 0, 1, 1], [], []>} : vector<2x5xf32>, vector<5x20xf32>, vector<2x20xf32> -> vector<2x20xf32>
    %401 = arith.addf %399, %400 : vector<2x20xf32>
    %402 = arith.addf %401, %9 : vector<2x20xf32>
    %403 = arith.negf %402 : vector<2x20xf32>
    %404 = math.exp %403 : vector<2x20xf32>
    %cst_144 = arith.constant 1.000000e+00 : f32
    %405 = vector.broadcast %cst_144 : f32 to vector<2x20xf32>
    %406 = arith.addf %405, %404 : vector<2x20xf32>
    %407 = arith.divf %405, %406 : vector<2x20xf32>
    %408 = vector.extract_strided_slice %407 {offsets = [0, 0], sizes = [2, 5], strides = [1, 1]} : vector<2x20xf32> to vector<2x5xf32>
    %409 = vector.extract_strided_slice %407 {offsets = [0, 5], sizes = [2, 5], strides = [1, 1]} : vector<2x20xf32> to vector<2x5xf32>
    %410 = vector.extract_strided_slice %407 {offsets = [0, 15], sizes = [2, 5], strides = [1, 1]} : vector<2x20xf32> to vector<2x5xf32>
    %411 = vector.extract_strided_slice %402 {offsets = [0, 10], sizes = [2, 5], strides = [1, 1]} : vector<2x20xf32> to vector<2x5xf32>
    %412 = math.tanh %411 : vector<2x5xf32>
    %413 = arith.mulf %409, %372 : vector<2x5xf32>
    %414 = arith.mulf %408, %412 : vector<2x5xf32>
    %415 = arith.addf %413, %414 : vector<2x5xf32>
    %416 = math.tanh %415 : vector<2x5xf32>
    %417 = arith.mulf %410, %416 : vector<2x5xf32>
    %418 = arith.index_cast %c7_i32 : i32 to index
    %c0_145 = arith.constant 0 : index
    %c0_146 = arith.constant 0 : index
    %419 = vector.load %arg15[%418, %c0_145, %c0_146] : memref<8x2x5xf32, #tpu.memory_space<vmem>>, vector<1x2x5xf32>
    %420 = vector.shape_cast %419 : vector<1x2x5xf32> to vector<2x5xf32>
    %421 = vector.shape_cast %417 : vector<2x5xf32> to vector<1x2x5xf32>
    tpu.vector_store %arg15[%418, %c0_145, %c0_146], %421 {strides = array<i32>} : memref<8x2x5xf32, #tpu.memory_space<vmem>>, vector<1x2x5xf32>,
    %c8_i32 = arith.constant 8 : i32
    %c0_147 = arith.constant 0 : index
    %c0_148 = arith.constant 0 : index
    %c0_149 = arith.constant 0 : index
    %422 = vector.load %arg12[%c0_147, %c0_148, %c0_149] : memref<2x2x5xf32, #tpu.memory_space<vmem>>, vector<1x2x5xf32>
    %423 = vector.shape_cast %422 : vector<1x2x5xf32> to vector<2x5xf32>
    %424 = vector.shape_cast %398 : vector<2x5xf32> to vector<1x2x5xf32>
    tpu.vector_store %arg12[%c0_147, %c0_148, %c0_149], %424 {strides = array<i32>} : memref<2x2x5xf32, #tpu.memory_space<vmem>>, vector<1x2x5xf32>,
    %c1_150 = arith.constant 1 : index
    %c0_151 = arith.constant 0 : index
    %c0_152 = arith.constant 0 : index
    %425 = vector.load %arg12[%c1_150, %c0_151, %c0_152] : memref<2x2x5xf32, #tpu.memory_space<vmem>>, vector<1x2x5xf32>
    %426 = vector.shape_cast %425 : vector<1x2x5xf32> to vector<2x5xf32>
    %427 = vector.shape_cast %417 : vector<2x5xf32> to vector<1x2x5xf32>
    tpu.vector_store %arg12[%c1_150, %c0_151, %c0_152], %427 {strides = array<i32>} : memref<2x2x5xf32, #tpu.memory_space<vmem>>, vector<1x2x5xf32>,
    %c0_153 = arith.constant 0 : index
    %c0_154 = arith.constant 0 : index
    %c0_155 = arith.constant 0 : index
    %428 = vector.load %arg13[%c0_153, %c0_154, %c0_155] : memref<2x2x5xf32, #tpu.memory_space<vmem>>, vector<1x2x5xf32>
    %429 = vector.shape_cast %428 : vector<1x2x5xf32> to vector<2x5xf32>
    %430 = vector.shape_cast %396 : vector<2x5xf32> to vector<1x2x5xf32>
    tpu.vector_store %arg13[%c0_153, %c0_154, %c0_155], %430 {strides = array<i32>} : memref<2x2x5xf32, #tpu.memory_space<vmem>>, vector<1x2x5xf32>,
    %c1_156 = arith.constant 1 : index
    %c0_157 = arith.constant 0 : index
    %c0_158 = arith.constant 0 : index
    %431 = vector.load %arg13[%c1_156, %c0_157, %c0_158] : memref<2x2x5xf32, #tpu.memory_space<vmem>>, vector<1x2x5xf32>
    %432 = vector.shape_cast %431 : vector<1x2x5xf32> to vector<2x5xf32>
    %433 = vector.shape_cast %415 : vector<2x5xf32> to vector<1x2x5xf32>
    tpu.vector_store %arg13[%c1_156, %c0_157, %c0_158], %433 {strides = array<i32>} : memref<2x2x5xf32, #tpu.memory_space<vmem>>, vector<1x2x5xf32>,
    %c0_159 = arith.constant 0 : index
    %c0_160 = arith.constant 0 : index
    %c0_161 = arith.constant 0 : index
    %434 = vector.load %arg15[%c0_159, %c0_160, %c0_161] : memref<8x2x5xf32, #tpu.memory_space<vmem>>, vector<1x2x5xf32>
    %435 = vector.shape_cast %434 : vector<1x2x5xf32> to vector<2x5xf32>
    %cst_162 = arith.constant dense<0.000000e+00> : vector<2x8xf32>
    %436 = tpu.matmul %435, %10, %cst_162 {dimension_numbers = #tpu.dot_dimension_numbers<[1], [0], [0], [1], [0, 0, 1, 1], [], []>} : vector<2x5xf32>, vector<5x8xf32>, vector<2x8xf32> -> vector<2x8xf32>
    %437 = arith.addf %436, %13 : vector<2x8xf32>
    %c0_163 = arith.constant 0 : index
    %c0_164 = arith.constant 0 : index
    %c0_165 = arith.constant 0 : index
    %438 = vector.load %arg11[%c0_163, %c0_164, %c0_165] : memref<8x2x8xf32, #tpu.memory_space<vmem>>, vector<1x2x8xf32>
    %439 = vector.shape_cast %438 : vector<1x2x8xf32> to vector<2x8xf32>
    %440 = vector.shape_cast %437 : vector<2x8xf32> to vector<1x2x8xf32>
    tpu.vector_store %arg11[%c0_163, %c0_164, %c0_165], %440 {strides = array<i32>} : memref<8x2x8xf32, #tpu.memory_space<vmem>>, vector<1x2x8xf32>,
    %c1_166 = arith.constant 1 : index
    %c0_167 = arith.constant 0 : index
    %c0_168 = arith.constant 0 : index
    %441 = vector.load %arg15[%c1_166, %c0_167, %c0_168] : memref<8x2x5xf32, #tpu.memory_space<vmem>>, vector<1x2x5xf32>
    %442 = vector.shape_cast %441 : vector<1x2x5xf32> to vector<2x5xf32>
    %cst_169 = arith.constant dense<0.000000e+00> : vector<2x8xf32>
    %443 = tpu.matmul %442, %10, %cst_169 {dimension_numbers = #tpu.dot_dimension_numbers<[1], [0], [0], [1], [0, 0, 1, 1], [], []>} : vector<2x5xf32>, vector<5x8xf32>, vector<2x8xf32> -> vector<2x8xf32>
    %444 = arith.addf %443, %13 : vector<2x8xf32>
    %c1_170 = arith.constant 1 : index
    %c0_171 = arith.constant 0 : index
    %c0_172 = arith.constant 0 : index
    %445 = vector.load %arg11[%c1_170, %c0_171, %c0_172] : memref<8x2x8xf32, #tpu.memory_space<vmem>>, vector<1x2x8xf32>
    %446 = vector.shape_cast %445 : vector<1x2x8xf32> to vector<2x8xf32>
    %447 = vector.shape_cast %444 : vector<2x8xf32> to vector<1x2x8xf32>
    tpu.vector_store %arg11[%c1_170, %c0_171, %c0_172], %447 {strides = array<i32>} : memref<8x2x8xf32, #tpu.memory_space<vmem>>, vector<1x2x8xf32>,
    %c2_173 = arith.constant 2 : index
    %c0_174 = arith.constant 0 : index
    %c0_175 = arith.constant 0 : index
    %448 = vector.load %arg15[%c2_173, %c0_174, %c0_175] : memref<8x2x5xf32, #tpu.memory_space<vmem>>, vector<1x2x5xf32>
    %449 = vector.shape_cast %448 : vector<1x2x5xf32> to vector<2x5xf32>
    %cst_176 = arith.constant dense<0.000000e+00> : vector<2x8xf32>
    %450 = tpu.matmul %449, %10, %cst_176 {dimension_numbers = #tpu.dot_dimension_numbers<[1], [0], [0], [1], [0, 0, 1, 1], [], []>} : vector<2x5xf32>, vector<5x8xf32>, vector<2x8xf32> -> vector<2x8xf32>
    %451 = arith.addf %450, %13 : vector<2x8xf32>
    %c2_177 = arith.constant 2 : index
    %c0_178 = arith.constant 0 : index
    %c0_179 = arith.constant 0 : index
    %452 = vector.load %arg11[%c2_177, %c0_178, %c0_179] : memref<8x2x8xf32, #tpu.memory_space<vmem>>, vector<1x2x8xf32>
    %453 = vector.shape_cast %452 : vector<1x2x8xf32> to vector<2x8xf32>
    %454 = vector.shape_cast %451 : vector<2x8xf32> to vector<1x2x8xf32>
    tpu.vector_store %arg11[%c2_177, %c0_178, %c0_179], %454 {strides = array<i32>} : memref<8x2x8xf32, #tpu.memory_space<vmem>>, vector<1x2x8xf32>,
    %c3_180 = arith.constant 3 : index
    %c0_181 = arith.constant 0 : index
    %c0_182 = arith.constant 0 : index
    %455 = vector.load %arg15[%c3_180, %c0_181, %c0_182] : memref<8x2x5xf32, #tpu.memory_space<vmem>>, vector<1x2x5xf32>
    %456 = vector.shape_cast %455 : vector<1x2x5xf32> to vector<2x5xf32>
    %cst_183 = arith.constant dense<0.000000e+00> : vector<2x8xf32>
    %457 = tpu.matmul %456, %10, %cst_183 {dimension_numbers = #tpu.dot_dimension_numbers<[1], [0], [0], [1], [0, 0, 1, 1], [], []>} : vector<2x5xf32>, vector<5x8xf32>, vector<2x8xf32> -> vector<2x8xf32>
    %458 = arith.addf %457, %13 : vector<2x8xf32>
    %c3_184 = arith.constant 3 : index
    %c0_185 = arith.constant 0 : index
    %c0_186 = arith.constant 0 : index
    %459 = vector.load %arg11[%c3_184, %c0_185, %c0_186] : memref<8x2x8xf32, #tpu.memory_space<vmem>>, vector<1x2x8xf32>
    %460 = vector.shape_cast %459 : vector<1x2x8xf32> to vector<2x8xf32>
    %461 = vector.shape_cast %458 : vector<2x8xf32> to vector<1x2x8xf32>
    tpu.vector_store %arg11[%c3_184, %c0_185, %c0_186], %461 {strides = array<i32>} : memref<8x2x8xf32, #tpu.memory_space<vmem>>, vector<1x2x8xf32>,
    %c4_187 = arith.constant 4 : index
    %c0_188 = arith.constant 0 : index
    %c0_189 = arith.constant 0 : index
    %462 = vector.load %arg15[%c4_187, %c0_188, %c0_189] : memref<8x2x5xf32, #tpu.memory_space<vmem>>, vector<1x2x5xf32>
    %463 = vector.shape_cast %462 : vector<1x2x5xf32> to vector<2x5xf32>
    %cst_190 = arith.constant dense<0.000000e+00> : vector<2x8xf32>
    %464 = tpu.matmul %463, %10, %cst_190 {dimension_numbers = #tpu.dot_dimension_numbers<[1], [0], [0], [1], [0, 0, 1, 1], [], []>} : vector<2x5xf32>, vector<5x8xf32>, vector<2x8xf32> -> vector<2x8xf32>
    %465 = arith.addf %464, %13 : vector<2x8xf32>
    %c4_191 = arith.constant 4 : index
    %c0_192 = arith.constant 0 : index
    %c0_193 = arith.constant 0 : index
    %466 = vector.load %arg11[%c4_191, %c0_192, %c0_193] : memref<8x2x8xf32, #tpu.memory_space<vmem>>, vector<1x2x8xf32>
    %467 = vector.shape_cast %466 : vector<1x2x8xf32> to vector<2x8xf32>
    %468 = vector.shape_cast %465 : vector<2x8xf32> to vector<1x2x8xf32>
    tpu.vector_store %arg11[%c4_191, %c0_192, %c0_193], %468 {strides = array<i32>} : memref<8x2x8xf32, #tpu.memory_space<vmem>>, vector<1x2x8xf32>,
    %c5_194 = arith.constant 5 : index
    %c0_195 = arith.constant 0 : index
    %c0_196 = arith.constant 0 : index
    %469 = vector.load %arg15[%c5_194, %c0_195, %c0_196] : memref<8x2x5xf32, #tpu.memory_space<vmem>>, vector<1x2x5xf32>
    %470 = vector.shape_cast %469 : vector<1x2x5xf32> to vector<2x5xf32>
    %cst_197 = arith.constant dense<0.000000e+00> : vector<2x8xf32>
    %471 = tpu.matmul %470, %10, %cst_197 {dimension_numbers = #tpu.dot_dimension_numbers<[1], [0], [0], [1], [0, 0, 1, 1], [], []>} : vector<2x5xf32>, vector<5x8xf32>, vector<2x8xf32> -> vector<2x8xf32>
    %472 = arith.addf %471, %13 : vector<2x8xf32>
    %c5_198 = arith.constant 5 : index
    %c0_199 = arith.constant 0 : index
    %c0_200 = arith.constant 0 : index
    %473 = vector.load %arg11[%c5_198, %c0_199, %c0_200] : memref<8x2x8xf32, #tpu.memory_space<vmem>>, vector<1x2x8xf32>
    %474 = vector.shape_cast %473 : vector<1x2x8xf32> to vector<2x8xf32>
    %475 = vector.shape_cast %472 : vector<2x8xf32> to vector<1x2x8xf32>
    tpu.vector_store %arg11[%c5_198, %c0_199, %c0_200], %475 {strides = array<i32>} : memref<8x2x8xf32, #tpu.memory_space<vmem>>, vector<1x2x8xf32>,
    %c6_201 = arith.constant 6 : index
    %c0_202 = arith.constant 0 : index
    %c0_203 = arith.constant 0 : index
    %476 = vector.load %arg15[%c6_201, %c0_202, %c0_203] : memref<8x2x5xf32, #tpu.memory_space<vmem>>, vector<1x2x5xf32>
    %477 = vector.shape_cast %476 : vector<1x2x5xf32> to vector<2x5xf32>
    %cst_204 = arith.constant dense<0.000000e+00> : vector<2x8xf32>
    %478 = tpu.matmul %477, %10, %cst_204 {dimension_numbers = #tpu.dot_dimension_numbers<[1], [0], [0], [1], [0, 0, 1, 1], [], []>} : vector<2x5xf32>, vector<5x8xf32>, vector<2x8xf32> -> vector<2x8xf32>
    %479 = arith.addf %478, %13 : vector<2x8xf32>
    %c6_205 = arith.constant 6 : index
    %c0_206 = arith.constant 0 : index
    %c0_207 = arith.constant 0 : index
    %480 = vector.load %arg11[%c6_205, %c0_206, %c0_207] : memref<8x2x8xf32, #tpu.memory_space<vmem>>, vector<1x2x8xf32>
    %481 = vector.shape_cast %480 : vector<1x2x8xf32> to vector<2x8xf32>
    %482 = vector.shape_cast %479 : vector<2x8xf32> to vector<1x2x8xf32>
    tpu.vector_store %arg11[%c6_205, %c0_206, %c0_207], %482 {strides = array<i32>} : memref<8x2x8xf32, #tpu.memory_space<vmem>>, vector<1x2x8xf32>,
    %c7_208 = arith.constant 7 : index
    %c0_209 = arith.constant 0 : index
    %c0_210 = arith.constant 0 : index
    %483 = vector.load %arg15[%c7_208, %c0_209, %c0_210] : memref<8x2x5xf32, #tpu.memory_space<vmem>>, vector<1x2x5xf32>
    %484 = vector.shape_cast %483 : vector<1x2x5xf32> to vector<2x5xf32>
    %cst_211 = arith.constant dense<0.000000e+00> : vector<2x8xf32>
    %485 = tpu.matmul %484, %10, %cst_211 {dimension_numbers = #tpu.dot_dimension_numbers<[1], [0], [0], [1], [0, 0, 1, 1], [], []>} : vector<2x5xf32>, vector<5x8xf32>, vector<2x8xf32> -> vector<2x8xf32>
    %486 = arith.addf %485, %13 : vector<2x8xf32>
    %c7_212 = arith.constant 7 : index
    %c0_213 = arith.constant 0 : index
    %c0_214 = arith.constant 0 : index
    %487 = vector.load %arg11[%c7_212, %c0_213, %c0_214] : memref<8x2x8xf32, #tpu.memory_space<vmem>>, vector<1x2x8xf32>
    %488 = vector.shape_cast %487 : vector<1x2x8xf32> to vector<2x8xf32>
    %489 = vector.shape_cast %486 : vector<2x8xf32> to vector<1x2x8xf32>
    tpu.vector_store %arg11[%c7_212, %c0_213, %c0_214], %489 {strides = array<i32>} : memref<8x2x8xf32, #tpu.memory_space<vmem>>, vector<1x2x8xf32>,
    return
  }
}

</mosaic_0001>

<llo_original>
// kernel: lstm_auto_decoder.1
$region0: #{lstm_auto_decoder.1}
  #allocation0 [shape = 'u32[]', space=smem, size = 0x4, offset = 0x4, fixed_abs, tag = 'smem constant byte address 0x4 - core index']
  #allocation1 [shape = 'u32[144,128]{1,0:T(1,128)}', space=vmem, size = 0x12000, scoped, tag = 'internal scratch']
  #allocation2 [shape = 'f32[8,2,20]{2,1,0:T(2,128)}', space=vmem, size = 0x2000, scoped, tag = 'scratch operand']
  #allocation3 [shape = 'f32[8,2,5]{2,1,0:T(2,128)}', space=vmem, size = 0x2000, scoped, tag = 'scratch operand']
  %s0 = inlined_call_operand.vmem [shape: f32[8,2,8], index: 0, kind: input, shape index: {}]
  %s1 = inlined_call_operand.vmem [shape: f32[2,2,5], index: 1, kind: input, shape index: {}]
  %s2 = inlined_call_operand.vmem [shape: f32[2,2,5], index: 2, kind: input, shape index: {}]
  %s3 = inlined_call_operand.vmem [shape: f32[8,20], index: 3, kind: input, shape index: {}]
  %s4 = inlined_call_operand.vmem [shape: f32[5,20], index: 4, kind: input, shape index: {}]
  %s5 = inlined_call_operand.vmem [shape: f32[1,20], index: 5, kind: input, shape index: {}]
  %s6 = inlined_call_operand.vmem [shape: f32[5,20], index: 6, kind: input, shape index: {}]
  %s7 = inlined_call_operand.vmem [shape: f32[5,20], index: 7, kind: input, shape index: {}]
  %s8 = inlined_call_operand.vmem [shape: f32[1,20], index: 8, kind: input, shape index: {}]
  %s9 = inlined_call_operand.vmem [shape: f32[5,8], index: 9, kind: input, shape index: {}]
  %s10 = inlined_call_operand.hbm [shape: f32[1,8], index: 10, kind: input, shape index: {}]
  %s11 = inlined_call_operand.vmem [shape: f32[8,2,8], index: 11, kind: output, shape index: {0}]
  %s12 = inlined_call_operand.hbm [shape: f32[2,2,5], index: 12, kind: output, shape index: {1}]
  %s13 = inlined_call_operand.hbm [shape: f32[2,2,5], index: 13, kind: output, shape index: {2}]
  %14 = xla_tuple %s11, %s12, %s13
  %s15 = sld [smem:[#allocation0]]
  $region74: #{lstm_auto_decoder.1} parent=0
    _
  %s17 = ssub.s32 1, %s15
  %s18 = scalar_select 0, %s17, %s15
  $region1: #{lstm_auto_decoder.1} parent=0
    #allocation4 [shape = 'u8[512]{0}', space=vmem, size = 0x400, scoped, tag = 'input window, operand 10, single buffered']
    #allocation5 [shape = 's32[1]{0}', space=sflag, size = 0x4, scoped, tag = 'scoped memory for lstm_auto_decoder.1']
    #allocation6 [shape = 's32[1]{0}', space=sflag, size = 0x4, scoped, tag = 'scoped memory for lstm_auto_decoder.1']
    #allocation7 [shape = 'u8[2048]{0}', space=vmem, size = 0x800, scoped, tag = 'output window, operand 1, single buffered']
    #allocation8 [shape = 'u8[2048]{0}', space=vmem, size = 0x800, scoped, tag = 'output window, operand 2, single buffered']
    #allocation9 [shape = 's32[1]{0}', space=sflag, size = 0x4, scoped, tag = 'scoped memory for lstm_auto_decoder.1']
    %19 = vsyncpa [#allocation5], 0
    %20 = vsyncpa [#allocation6], 0
    %21 = vsyncpa [#allocation9], 0
    // Predicated region
    $region2: #{lstm_auto_decoder.1} parent=1 // pred_check
      _
    $region3: #{lstm_auto_decoder.1} parent=1 // pred_check_branch
      %23 = sbr.rel (0) target = $region5
    $region4: #{lstm_auto_decoder.1} parent=1 // pred_region
      _
    $region5: #{lstm_auto_decoder.1} parent=1 // pred_fallthru
      _
    // Predicated region
    $region6: #{lstm_auto_decoder.1} parent=1 // pred_check
      _
    $region7: #{lstm_auto_decoder.1} parent=1 // pred_check_branch
      %25 = sbr.rel (0) target = $region9
    $region8: #{lstm_auto_decoder.1} parent=1 // pred_region
      _
    $region9: #{lstm_auto_decoder.1} parent=1 // pred_fallthru
      _
    // Predicated region
    $region10: #{lstm_auto_decoder.1} parent=1 // pred_check
      _
    $region11: #{lstm_auto_decoder.1} parent=1 // pred_check_branch
      %27 = sbr.rel (0) target = $region13
    $region12: #{lstm_auto_decoder.1} parent=1 // pred_region
      _
    $region13: #{lstm_auto_decoder.1} parent=1 // pred_fallthru
      _
    // Predicated region
    $region14: #{lstm_auto_decoder.1} parent=1 // pred_check
      _
    $region15: #{lstm_auto_decoder.1} parent=1 // pred_check_branch
      %29 = sbr.rel (0) target = $region17
    $region16: #{lstm_auto_decoder.1} parent=1 // pred_region
      _
    $region17: #{lstm_auto_decoder.1} parent=1 // pred_fallthru
      _
    // Predicated region
    $region18: #{lstm_auto_decoder.1} parent=1 // pred_check
      _
    $region19: #{lstm_auto_decoder.1} parent=1 // pred_check_branch
      %31 = sbr.rel (0) target = $region21
    $region20: #{lstm_auto_decoder.1} parent=1 // pred_region
      _
    $region21: #{lstm_auto_decoder.1} parent=1 // pred_fallthru
      _
    // Predicated region
    $region22: #{lstm_auto_decoder.1} parent=1 // pred_check
      _
    $region23: #{lstm_auto_decoder.1} parent=1 // pred_check_branch
      %33 = sbr.rel (0) target = $region25
    $region24: #{lstm_auto_decoder.1} parent=1 // pred_region
      _
    $region25: #{lstm_auto_decoder.1} parent=1 // pred_fallthru
      _
    // Predicated region
    $region26: #{lstm_auto_decoder.1} parent=1 // pred_check
      _
    $region27: #{lstm_auto_decoder.1} parent=1 // pred_check_branch
      %35 = sbr.rel (0) target = $region29
    $region28: #{lstm_auto_decoder.1} parent=1 // pred_region
      _
    $region29: #{lstm_auto_decoder.1} parent=1 // pred_fallthru
      _
    // Predicated region
    $region30: #{lstm_auto_decoder.1} parent=1 // pred_check
      _
    $region31: #{lstm_auto_decoder.1} parent=1 // pred_check_branch
      %37 = sbr.rel (0) target = $region33
    $region32: #{lstm_auto_decoder.1} parent=1 // pred_region
      _
    $region33: #{lstm_auto_decoder.1} parent=1 // pred_fallthru
      _
    // Predicated region
    $region34: #{lstm_auto_decoder.1} parent=1 // pred_check
      _
    $region35: #{lstm_auto_decoder.1} parent=1 // pred_check_branch
      %39 = sbr.rel (0) target = $region37
    $region36: #{lstm_auto_decoder.1} parent=1 // pred_region
      _
    $region37: #{lstm_auto_decoder.1} parent=1 // pred_fallthru
      _
    // Predicated region
    $region38: #{lstm_auto_decoder.1} parent=1 // pred_check
      _
    $region39: #{lstm_auto_decoder.1} parent=1 // pred_check_branch
      %41 = sbr.rel (0) target = $region41
    $region40: #{lstm_auto_decoder.1} parent=1 // pred_region
      _
    $region41: #{lstm_auto_decoder.1} parent=1 // pred_fallthru
      _
    // Predicated region
    $region42: #{lstm_auto_decoder.1} parent=1 // pred_check
      _
    $region43: #{lstm_auto_decoder.1} parent=1 // pred_check_branch
      %43 = sbr.rel (0) target = $region45
    $region44: #{lstm_auto_decoder.1} parent=1 // pred_region
      %s45 = ssub.s32 16, 16
      %46 = vsyncadd [#allocation5], %s45
      %s48 = sshll.u32 [#allocation4], 4
      %s49 = int_to_ptr.vmem [resolvable:$true] %s48
      %51 = dma.hbm_to_vmem [thread:$0]  %s10, 16, %s49, [#allocation5]
    $region45: #{lstm_auto_decoder.1} parent=1 // pred_fallthru
      _
    // Predicated region
    $region46: #{lstm_auto_decoder.1} parent=1 // pred_check
      _
    $region47: #{lstm_auto_decoder.1} parent=1 // pred_check_branch
      %53 = sbr.rel (0) target = $region49
    $region48: #{lstm_auto_decoder.1} parent=1 // pred_region
      %54 = dma.done [#allocation5], 16
    $region49: #{lstm_auto_decoder.1} parent=1 // pred_fallthru
      _
    %v55 = vld [vmem:[%s3] sm:$0xff]
    %v56 = vld [vmem:[%s4] sm:$0x1f]
    %v57 = vld [vmem:[%s6] sm:$0x1f]
    %v58 = vld [vmem:[%s7] sm:$0x1f]
    %v59 = vld [vmem:[%s5] sm:$0x1]
    %v61 = vlaneseq
    %v62 = vshrl.u32 %v61, 7
    %v63 = vsub.s32 0, %v62
    %v64 = vrot.slane %v59, %v63
    %v66 = vld [vmem:[%s8] sm:$0x1]
    %v68 = vlaneseq
    %v69 = vshrl.u32 %v68, 7
    %v70 = vsub.s32 0, %v69
    %v71 = vrot.slane %v66, %v70
    %v73 = vld [vmem:[%s9] sm:$0x1f]
    %v74 = vld [vmem:[#allocation4] sm:$0x1]
    %v76 = vlaneseq
    %v77 = vshrl.u32 %v76, 7
    %v78 = vsub.s32 0, %v77
    %v79 = vrot.slane %v74, %v78
    %v81 = vld [vmem:[%s0] sm:$0x3]
    %vm82 = vcmask 64512
    %v84 = vsel %vm82, %v81, 0
    %86 = vmatprep.subr.mxu0 0.0
    %87 = vmatpush1.msra.mxu0 %v55
    %88 = vmatprep.subr.mxu0 0.0
    %89 = vmatpush1.msra.mxu0 0.0
    %90 = vmatprep.subr.mxu0 0.0
    %91 = vmatpush1.msra.mxu0 0.0
    %92 = vmatprep.subr.mxu0 0.0
    %93 = vmatpush1.msra.mxu0 0.0
    %94 = vmatprep.subr.mxu0 0.0
    %95 = vmatpush1.msra.mxu0 0.0
    %96 = vmatprep.subr.mxu0 0.0
    %97 = vmatpush1.msra.mxu0 0.0
    %98 = vmatprep.subr.mxu0 0.0
    %99 = vmatpush1.msra.mxu0 0.0
    %100 = vmatprep.subr.mxu0 0.0
    %101 = vmatpush1.msra.mxu0 0.0
    %102 = vmatprep.subr.mxu0 0.0
    %103 = vmatpush1.msra.mxu0 0.0
    %104 = vmatprep.subr.mxu0 0.0
    %105 = vmatpush1.msra.mxu0 0.0
    %106 = vmatprep.subr.mxu0 0.0
    %107 = vmatpush1.msra.mxu0 0.0
    %108 = vmatprep.subr.mxu0 0.0
    %109 = vmatpush1.msra.mxu0 0.0
    %110 = vmatprep.subr.mxu0 0.0
    %111 = vmatpush1.msra.mxu0 0.0
    %112 = vmatprep.subr.mxu0 0.0
    %113 = vmatpush1.msra.mxu0 0.0
    %114 = vmatprep.subr.mxu0 0.0
    %115 = vmatpush1.msra.mxu0 0.0
    %116 = vmatprep.subr.mxu0 0.0
    %117 = vmatpush1.msra.mxu0 0.0
    %118 = vmatprep.subr.mxu0 0.0
    %119 = vmatpush1.msra.mxu0 0.0
    %120 = vmatprep.subr.mxu0 0.0
    %121 = vmatpush1.msra.mxu0 0.0
    %122 = vmatprep.subr.mxu0 0.0
    %123 = vmatpush1.msra.mxu0 0.0
    %124 = vmatprep.subr.mxu0 0.0
    %125 = vmatpush1.msra.mxu0 0.0
    %126 = vmatprep.subr.mxu0 0.0
    %127 = vmatpush1.msra.mxu0 0.0
    %128 = vmatprep.subr.mxu0 0.0
    %129 = vmatpush1.msra.mxu0 0.0
    %130 = vmatprep.subr.mxu0 0.0
    %131 = vmatpush1.msra.mxu0 0.0
    %132 = vmatprep.subr.mxu0 0.0
    %133 = vmatpush1.msra.mxu0 0.0
    %134 = vmatprep.subr.mxu0 0.0
    %135 = vmatpush1.msra.mxu0 0.0
    %136 = vmatprep.subr.mxu0 0.0
    %137 = vmatpush1.msra.mxu0 0.0
    %138 = vmatprep.subr.mxu0 0.0
    %139 = vmatpush1.msra.mxu0 0.0
    %140 = vmatprep.subr.mxu0 0.0
    %141 = vmatpush1.msra.mxu0 0.0
    %142 = vmatprep.subr.mxu0 0.0
    %143 = vmatpush1.msra.mxu0 0.0
    %144 = vmatprep.subr.mxu0 0.0
    %145 = vmatpush1.msra.mxu0 0.0
    %146 = vmatprep.subr.mxu0 0.0
    %147 = vmatpush1.msra.mxu0 0.0
    %148 = vmatprep.subr.mxu0 0.0
    %149 = vmatpush1.msra.mxu0 0.0
    %150 = vmatprep.mubr.f32.mxu0 0.0
    %151 = vmatmul.mubr.f32.gmra.mrb[0].mxu0 %v84
    %v152 = vpop.f32.mrb[0].mxu0
    %v153 = vadd.f32 %v64, %v152
    %v154 = vpop.f32.mrb[0].mxu0
    %155 = vdwg.mxu0
    %vm156 = vcmask 156672
    %157 = vst.msk [vmem:[#allocation2] sm:$0x3] %vm156, %v153
    %s158 = scalar_lea.vmem %s0, 2
    %v159 = vld [vmem:[%s158] sm:$0x3]
    %v161 = vsel %vm82, %v159, 0
    %163 = vmatprep.subr.mxu0 0.0
    %164 = vmatpush1.msra.mxu0 %v55
    %165 = vmatprep.subr.mxu0 0.0
    %166 = vmatpush1.msra.mxu0 0.0
    %167 = vmatprep.subr.mxu0 0.0
    %168 = vmatpush1.msra.mxu0 0.0
    %169 = vmatprep.subr.mxu0 0.0
    %170 = vmatpush1.msra.mxu0 0.0
    %171 = vmatprep.subr.mxu0 0.0
    %172 = vmatpush1.msra.mxu0 0.0
    %173 = vmatprep.subr.mxu0 0.0
    %174 = vmatpush1.msra.mxu0 0.0
    %175 = vmatprep.subr.mxu0 0.0
    %176 = vmatpush1.msra.mxu0 0.0
    %177 = vmatprep.subr.mxu0 0.0
    %178 = vmatpush1.msra.mxu0 0.0
    %179 = vmatprep.subr.mxu0 0.0
    %180 = vmatpush1.msra.mxu0 0.0
    %181 = vmatprep.subr.mxu0 0.0
    %182 = vmatpush1.msra.mxu0 0.0
    %183 = vmatprep.subr.mxu0 0.0
    %184 = vmatpush1.msra.mxu0 0.0
    %185 = vmatprep.subr.mxu0 0.0
    %186 = vmatpush1.msra.mxu0 0.0
    %187 = vmatprep.subr.mxu0 0.0
    %188 = vmatpush1.msra.mxu0 0.0
    %189 = vmatprep.subr.mxu0 0.0
    %190 = vmatpush1.msra.mxu0 0.0
    %191 = vmatprep.subr.mxu0 0.0
    %192 = vmatpush1.msra.mxu0 0.0
    %193 = vmatprep.subr.mxu0 0.0
    %194 = vmatpush1.msra.mxu0 0.0
    %195 = vmatprep.subr.mxu0 0.0
    %196 = vmatpush1.msra.mxu0 0.0
    %197 = vmatprep.subr.mxu0 0.0
    %198 = vmatpush1.msra.mxu0 0.0
    %199 = vmatprep.subr.mxu0 0.0
    %200 = vmatpush1.msra.mxu0 0.0
    %201 = vmatprep.subr.mxu0 0.0
    %202 = vmatpush1.msra.mxu0 0.0
    %203 = vmatprep.subr.mxu0 0.0
    %204 = vmatpush1.msra.mxu0 0.0
    %205 = vmatprep.subr.mxu0 0.0
    %206 = vmatpush1.msra.mxu0 0.0
    %207 = vmatprep.subr.mxu0 0.0
    %208 = vmatpush1.msra.mxu0 0.0
    %209 = vmatprep.subr.mxu0 0.0
    %210 = vmatpush1.msra.mxu0 0.0
    %211 = vmatprep.subr.mxu0 0.0
    %212 = vmatpush1.msra.mxu0 0.0
    %213 = vmatprep.subr.mxu0 0.0
    %214 = vmatpush1.msra.mxu0 0.0
    %215 = vmatprep.subr.mxu0 0.0
    %216 = vmatpush1.msra.mxu0 0.0
    %217 = vmatprep.subr.mxu0 0.0
    %218 = vmatpush1.msra.mxu0 0.0
    %219 = vmatprep.subr.mxu0 0.0
    %220 = vmatpush1.msra.mxu0 0.0
    %221 = vmatprep.subr.mxu0 0.0
    %222 = vmatpush1.msra.mxu0 0.0
    %223 = vmatprep.subr.mxu0 0.0
    %224 = vmatpush1.msra.mxu0 0.0
    %225 = vmatprep.subr.mxu0 0.0
    %226 = vmatpush1.msra.mxu0 0.0
    %227 = vmatprep.mubr.f32.mxu0 0.0
    %228 = vmatmul.mubr.f32.gmra.mrb[0].mxu0 %v161
    %v229 = vpop.f32.mrb[0].mxu0
    %v230 = vadd.f32 %v64, %v229
    %v231 = vpop.f32.mrb[0].mxu0
    %232 = vdwg.mxu0
    %s233 = scalar_lea.vmem [#allocation2], 2
    %234 = vst.msk [vmem:[%s233] sm:$0x3] %vm156, %v230
    %s235 = scalar_lea.vmem %s0, 4
    %v236 = vld [vmem:[%s235] sm:$0x3]
    %v238 = vsel %vm82, %v236, 0
    %240 = vmatprep.subr.mxu0 0.0
    %241 = vmatpush1.msra.mxu0 %v55
    %242 = vmatprep.subr.mxu0 0.0
    %243 = vmatpush1.msra.mxu0 0.0
    %244 = vmatprep.subr.mxu0 0.0
    %245 = vmatpush1.msra.mxu0 0.0
    %246 = vmatprep.subr.mxu0 0.0
    %247 = vmatpush1.msra.mxu0 0.0
    %248 = vmatprep.subr.mxu0 0.0
    %249 = vmatpush1.msra.mxu0 0.0
    %250 = vmatprep.subr.mxu0 0.0
    %251 = vmatpush1.msra.mxu0 0.0
    %252 = vmatprep.subr.mxu0 0.0
    %253 = vmatpush1.msra.mxu0 0.0
    %254 = vmatprep.subr.mxu0 0.0
    %255 = vmatpush1.msra.mxu0 0.0
    %256 = vmatprep.subr.mxu0 0.0
    %257 = vmatpush1.msra.mxu0 0.0
    %258 = vmatprep.subr.mxu0 0.0
    %259 = vmatpush1.msra.mxu0 0.0
    %260 = vmatprep.subr.mxu0 0.0
    %261 = vmatpush1.msra.mxu0 0.0
    %262 = vmatprep.subr.mxu0 0.0
    %263 = vmatpush1.msra.mxu0 0.0
    %264 = vmatprep.subr.mxu0 0.0
    %265 = vmatpush1.msra.mxu0 0.0
    %266 = vmatprep.subr.mxu0 0.0
    %267 = vmatpush1.msra.mxu0 0.0
    %268 = vmatprep.subr.mxu0 0.0
    %269 = vmatpush1.msra.mxu0 0.0
    %270 = vmatprep.subr.mxu0 0.0
    %271 = vmatpush1.msra.mxu0 0.0
    %272 = vmatprep.subr.mxu0 0.0
    %273 = vmatpush1.msra.mxu0 0.0
    %274 = vmatprep.subr.mxu0 0.0
    %275 = vmatpush1.msra.mxu0 0.0
    %276 = vmatprep.subr.mxu0 0.0
    %277 = vmatpush1.msra.mxu0 0.0
    %278 = vmatprep.subr.mxu0 0.0
    %279 = vmatpush1.msra.mxu0 0.0
    %280 = vmatprep.subr.mxu0 0.0
    %281 = vmatpush1.msra.mxu0 0.0
    %282 = vmatprep.subr.mxu0 0.0
    %283 = vmatpush1.msra.mxu0 0.0
    %284 = vmatprep.subr.mxu0 0.0
    %285 = vmatpush1.msra.mxu0 0.0
    %286 = vmatprep.subr.mxu0 0.0
    %287 = vmatpush1.msra.mxu0 0.0
    %288 = vmatprep.subr.mxu0 0.0
    %289 = vmatpush1.msra.mxu0 0.0
    %290 = vmatprep.subr.mxu0 0.0
    %291 = vmatpush1.msra.mxu0 0.0
    %292 = vmatprep.subr.mxu0 0.0
    %293 = vmatpush1.msra.mxu0 0.0
    %294 = vmatprep.subr.mxu0 0.0
    %295 = vmatpush1.msra.mxu0 0.0
    %296 = vmatprep.subr.mxu0 0.0
    %297 = vmatpush1.msra.mxu0 0.0
    %298 = vmatprep.subr.mxu0 0.0
    %299 = vmatpush1.msra.mxu0 0.0
    %300 = vmatprep.subr.mxu0 0.0
    %301 = vmatpush1.msra.mxu0 0.0
    %302 = vmatprep.subr.mxu0 0.0
    %303 = vmatpush1.msra.mxu0 0.0
    %304 = vmatprep.mubr.f32.mxu0 0.0
    %305 = vmatmul.mubr.f32.gmra.mrb[0].mxu0 %v238
    %v306 = vpop.f32.mrb[0].mxu0
    %v307 = vadd.f32 %v64, %v306
    %v308 = vpop.f32.mrb[0].mxu0
    %309 = vdwg.mxu0
    %s310 = scalar_lea.vmem [#allocation2], 4
    %311 = vst.msk [vmem:[%s310] sm:$0x3] %vm156, %v307
    %s312 = scalar_lea.vmem %s0, 6
    %v313 = vld [vmem:[%s312] sm:$0x3]
    %v315 = vsel %vm82, %v313, 0
    %317 = vmatprep.subr.mxu0 0.0
    %318 = vmatpush1.msra.mxu0 %v55
    %319 = vmatprep.subr.mxu0 0.0
    %320 = vmatpush1.msra.mxu0 0.0
    %321 = vmatprep.subr.mxu0 0.0
    %322 = vmatpush1.msra.mxu0 0.0
    %323 = vmatprep.subr.mxu0 0.0
    %324 = vmatpush1.msra.mxu0 0.0
    %325 = vmatprep.subr.mxu0 0.0
    %326 = vmatpush1.msra.mxu0 0.0
    %327 = vmatprep.subr.mxu0 0.0
    %328 = vmatpush1.msra.mxu0 0.0
    %329 = vmatprep.subr.mxu0 0.0
    %330 = vmatpush1.msra.mxu0 0.0
    %331 = vmatprep.subr.mxu0 0.0
    %332 = vmatpush1.msra.mxu0 0.0
    %333 = vmatprep.subr.mxu0 0.0
    %334 = vmatpush1.msra.mxu0 0.0
    %335 = vmatprep.subr.mxu0 0.0
    %336 = vmatpush1.msra.mxu0 0.0
    %337 = vmatprep.subr.mxu0 0.0
    %338 = vmatpush1.msra.mxu0 0.0
    %339 = vmatprep.subr.mxu0 0.0
    %340 = vmatpush1.msra.mxu0 0.0
    %341 = vmatprep.subr.mxu0 0.0
    %342 = vmatpush1.msra.mxu0 0.0
    %343 = vmatprep.subr.mxu0 0.0
    %344 = vmatpush1.msra.mxu0 0.0
    %345 = vmatprep.subr.mxu0 0.0
    %346 = vmatpush1.msra.mxu0 0.0
    %347 = vmatprep.subr.mxu0 0.0
    %348 = vmatpush1.msra.mxu0 0.0
    %349 = vmatprep.subr.mxu0 0.0
    %350 = vmatpush1.msra.mxu0 0.0
    %351 = vmatprep.subr.mxu0 0.0
    %352 = vmatpush1.msra.mxu0 0.0
    %353 = vmatprep.subr.mxu0 0.0
    %354 = vmatpush1.msra.mxu0 0.0
    %355 = vmatprep.subr.mxu0 0.0
    %356 = vmatpush1.msra.mxu0 0.0
    %357 = vmatprep.subr.mxu0 0.0
    %358 = vmatpush1.msra.mxu0 0.0
    %359 = vmatprep.subr.mxu0 0.0
    %360 = vmatpush1.msra.mxu0 0.0
    %361 = vmatprep.subr.mxu0 0.0
    %362 = vmatpush1.msra.mxu0 0.0
    %363 = vmatprep.subr.mxu0 0.0
    %364 = vmatpush1.msra.mxu0 0.0
    %365 = vmatprep.subr.mxu0 0.0
    %366 = vmatpush1.msra.mxu0 0.0
    %367 = vmatprep.subr.mxu0 0.0
    %368 = vmatpush1.msra.mxu0 0.0
    %369 = vmatprep.subr.mxu0 0.0
    %370 = vmatpush1.msra.mxu0 0.0
    %371 = vmatprep.subr.mxu0 0.0
    %372 = vmatpush1.msra.mxu0 0.0
    %373 = vmatprep.subr.mxu0 0.0
    %374 = vmatpush1.msra.mxu0 0.0
    %375 = vmatprep.subr.mxu0 0.0
    %376 = vmatpush1.msra.mxu0 0.0
    %377 = vmatprep.subr.mxu0 0.0
    %378 = vmatpush1.msra.mxu0 0.0
    %379 = vmatprep.subr.mxu0 0.0
    %380 = vmatpush1.msra.mxu0 0.0
    %381 = vmatprep.mubr.f32.mxu0 0.0
    %382 = vmatmul.mubr.f32.gmra.mrb[0].mxu0 %v315
    %v383 = vpop.f32.mrb[0].mxu0
    %v384 = vadd.f32 %v64, %v383
    %v385 = vpop.f32.mrb[0].mxu0
    %386 = vdwg.mxu0
    %s387 = scalar_lea.vmem [#allocation2], 6
    %388 = vst.msk [vmem:[%s387] sm:$0x3] %vm156, %v384
    %s389 = scalar_lea.vmem %s0, 8
    %v390 = vld [vmem:[%s389] sm:$0x3]
    %v392 = vsel %vm82, %v390, 0
    %394 = vmatprep.subr.mxu0 0.0
    %395 = vmatpush1.msra.mxu0 %v55
    %396 = vmatprep.subr.mxu0 0.0
    %397 = vmatpush1.msra.mxu0 0.0
    %398 = vmatprep.subr.mxu0 0.0
    %399 = vmatpush1.msra.mxu0 0.0
    %400 = vmatprep.subr.mxu0 0.0
    %401 = vmatpush1.msra.mxu0 0.0
    %402 = vmatprep.subr.mxu0 0.0
    %403 = vmatpush1.msra.mxu0 0.0
    %404 = vmatprep.subr.mxu0 0.0
    %405 = vmatpush1.msra.mxu0 0.0
    %406 = vmatprep.subr.mxu0 0.0
    %407 = vmatpush1.msra.mxu0 0.0
    %408 = vmatprep.subr.mxu0 0.0
    %409 = vmatpush1.msra.mxu0 0.0
    %410 = vmatprep.subr.mxu0 0.0
    %411 = vmatpush1.msra.mxu0 0.0
    %412 = vmatprep.subr.mxu0 0.0
    %413 = vmatpush1.msra.mxu0 0.0
    %414 = vmatprep.subr.mxu0 0.0
    %415 = vmatpush1.msra.mxu0 0.0
    %416 = vmatprep.subr.mxu0 0.0
    %417 = vmatpush1.msra.mxu0 0.0
    %418 = vmatprep.subr.mxu0 0.0
    %419 = vmatpush1.msra.mxu0 0.0
    %420 = vmatprep.subr.mxu0 0.0
    %421 = vmatpush1.msra.mxu0 0.0
    %422 = vmatprep.subr.mxu0 0.0
    %423 = vmatpush1.msra.mxu0 0.0
    %424 = vmatprep.subr.mxu0 0.0
    %425 = vmatpush1.msra.mxu0 0.0
    %426 = vmatprep.subr.mxu0 0.0
    %427 = vmatpush1.msra.mxu0 0.0
    %428 = vmatprep.subr.mxu0 0.0
    %429 = vmatpush1.msra.mxu0 0.0
    %430 = vmatprep.subr.mxu0 0.0
    %431 = vmatpush1.msra.mxu0 0.0
    %432 = vmatprep.subr.mxu0 0.0
    %433 = vmatpush1.msra.mxu0 0.0
    %434 = vmatprep.subr.mxu0 0.0
    %435 = vmatpush1.msra.mxu0 0.0
    %436 = vmatprep.subr.mxu0 0.0
    %437 = vmatpush1.msra.mxu0 0.0
    %438 = vmatprep.subr.mxu0 0.0
    %439 = vmatpush1.msra.mxu0 0.0
    %440 = vmatprep.subr.mxu0 0.0
    %441 = vmatpush1.msra.mxu0 0.0
    %442 = vmatprep.subr.mxu0 0.0
    %443 = vmatpush1.msra.mxu0 0.0
    %444 = vmatprep.subr.mxu0 0.0
    %445 = vmatpush1.msra.mxu0 0.0
    %446 = vmatprep.subr.mxu0 0.0
    %447 = vmatpush1.msra.mxu0 0.0
    %448 = vmatprep.subr.mxu0 0.0
    %449 = vmatpush1.msra.mxu0 0.0
    %450 = vmatprep.subr.mxu0 0.0
    %451 = vmatpush1.msra.mxu0 0.0
    %452 = vmatprep.subr.mxu0 0.0
    %453 = vmatpush1.msra.mxu0 0.0
    %454 = vmatprep.subr.mxu0 0.0
    %455 = vmatpush1.msra.mxu0 0.0
    %456 = vmatprep.subr.mxu0 0.0
    %457 = vmatpush1.msra.mxu0 0.0
    %458 = vmatprep.mubr.f32.mxu0 0.0
    %459 = vmatmul.mubr.f32.gmra.mrb[0].mxu0 %v392
    %v460 = vpop.f32.mrb[0].mxu0
    %v461 = vadd.f32 %v64, %v460
    %v462 = vpop.f32.mrb[0].mxu0
    %463 = vdwg.mxu0
    %s464 = scalar_lea.vmem [#allocation2], 8
    %465 = vst.msk [vmem:[%s464] sm:$0x3] %vm156, %v461
    %s466 = scalar_lea.vmem %s0, 10
    %v467 = vld [vmem:[%s466] sm:$0x3]
    %v469 = vsel %vm82, %v467, 0
    %471 = vmatprep.subr.mxu0 0.0
    %472 = vmatpush1.msra.mxu0 %v55
    %473 = vmatprep.subr.mxu0 0.0
    %474 = vmatpush1.msra.mxu0 0.0
    %475 = vmatprep.subr.mxu0 0.0
    %476 = vmatpush1.msra.mxu0 0.0
    %477 = vmatprep.subr.mxu0 0.0
    %478 = vmatpush1.msra.mxu0 0.0
    %479 = vmatprep.subr.mxu0 0.0
    %480 = vmatpush1.msra.mxu0 0.0
    %481 = vmatprep.subr.mxu0 0.0
    %482 = vmatpush1.msra.mxu0 0.0
    %483 = vmatprep.subr.mxu0 0.0
    %484 = vmatpush1.msra.mxu0 0.0
    %485 = vmatprep.subr.mxu0 0.0
    %486 = vmatpush1.msra.mxu0 0.0
    %487 = vmatprep.subr.mxu0 0.0
    %488 = vmatpush1.msra.mxu0 0.0
    %489 = vmatprep.subr.mxu0 0.0
    %490 = vmatpush1.msra.mxu0 0.0
    %491 = vmatprep.subr.mxu0 0.0
    %492 = vmatpush1.msra.mxu0 0.0
    %493 = vmatprep.subr.mxu0 0.0
    %494 = vmatpush1.msra.mxu0 0.0
    %495 = vmatprep.subr.mxu0 0.0
    %496 = vmatpush1.msra.mxu0 0.0
    %497 = vmatprep.subr.mxu0 0.0
    %498 = vmatpush1.msra.mxu0 0.0
    %499 = vmatprep.subr.mxu0 0.0
    %500 = vmatpush1.msra.mxu0 0.0
    %501 = vmatprep.subr.mxu0 0.0
    %502 = vmatpush1.msra.mxu0 0.0
    %503 = vmatprep.subr.mxu0 0.0
    %504 = vmatpush1.msra.mxu0 0.0
    %505 = vmatprep.subr.mxu0 0.0
    %506 = vmatpush1.msra.mxu0 0.0
    %507 = vmatprep.subr.mxu0 0.0
    %508 = vmatpush1.msra.mxu0 0.0
    %509 = vmatprep.subr.mxu0 0.0
    %510 = vmatpush1.msra.mxu0 0.0
    %511 = vmatprep.subr.mxu0 0.0
    %512 = vmatpush1.msra.mxu0 0.0
    %513 = vmatprep.subr.mxu0 0.0
    %514 = vmatpush1.msra.mxu0 0.0
    %515 = vmatprep.subr.mxu0 0.0
    %516 = vmatpush1.msra.mxu0 0.0
    %517 = vmatprep.subr.mxu0 0.0
    %518 = vmatpush1.msra.mxu0 0.0
    %519 = vmatprep.subr.mxu0 0.0
    %520 = vmatpush1.msra.mxu0 0.0
    %521 = vmatprep.subr.mxu0 0.0
    %522 = vmatpush1.msra.mxu0 0.0
    %523 = vmatprep.subr.mxu0 0.0
    %524 = vmatpush1.msra.mxu0 0.0
    %525 = vmatprep.subr.mxu0 0.0
    %526 = vmatpush1.msra.mxu0 0.0
    %527 = vmatprep.subr.mxu0 0.0
    %528 = vmatpush1.msra.mxu0 0.0
    %529 = vmatprep.subr.mxu0 0.0
    %530 = vmatpush1.msra.mxu0 0.0
    %531 = vmatprep.subr.mxu0 0.0
    %532 = vmatpush1.msra.mxu0 0.0
    %533 = vmatprep.subr.mxu0 0.0
    %534 = vmatpush1.msra.mxu0 0.0
    %535 = vmatprep.mubr.f32.mxu0 0.0
    %536 = vmatmul.mubr.f32.gmra.mrb[0].mxu0 %v469
    %v537 = vpop.f32.mrb[0].mxu0
    %v538 = vadd.f32 %v64, %v537
    %v539 = vpop.f32.mrb[0].mxu0
    %540 = vdwg.mxu0
    %s541 = scalar_lea.vmem [#allocation2], 10
    %542 = vst.msk [vmem:[%s541] sm:$0x3] %vm156, %v538
    %s543 = scalar_lea.vmem %s0, 12
    %v544 = vld [vmem:[%s543] sm:$0x3]
    %v546 = vsel %vm82, %v544, 0
    %548 = vmatprep.subr.mxu0 0.0
    %549 = vmatpush1.msra.mxu0 %v55
    %550 = vmatprep.subr.mxu0 0.0
    %551 = vmatpush1.msra.mxu0 0.0
    %552 = vmatprep.subr.mxu0 0.0
    %553 = vmatpush1.msra.mxu0 0.0
    %554 = vmatprep.subr.mxu0 0.0
    %555 = vmatpush1.msra.mxu0 0.0
    %556 = vmatprep.subr.mxu0 0.0
    %557 = vmatpush1.msra.mxu0 0.0
    %558 = vmatprep.subr.mxu0 0.0
    %559 = vmatpush1.msra.mxu0 0.0
    %560 = vmatprep.subr.mxu0 0.0
    %561 = vmatpush1.msra.mxu0 0.0
    %562 = vmatprep.subr.mxu0 0.0
    %563 = vmatpush1.msra.mxu0 0.0
    %564 = vmatprep.subr.mxu0 0.0
    %565 = vmatpush1.msra.mxu0 0.0
    %566 = vmatprep.subr.mxu0 0.0
    %567 = vmatpush1.msra.mxu0 0.0
    %568 = vmatprep.subr.mxu0 0.0
    %569 = vmatpush1.msra.mxu0 0.0
    %570 = vmatprep.subr.mxu0 0.0
    %571 = vmatpush1.msra.mxu0 0.0
    %572 = vmatprep.subr.mxu0 0.0
    %573 = vmatpush1.msra.mxu0 0.0
    %574 = vmatprep.subr.mxu0 0.0
    %575 = vmatpush1.msra.mxu0 0.0
    %576 = vmatprep.subr.mxu0 0.0
    %577 = vmatpush1.msra.mxu0 0.0
    %578 = vmatprep.subr.mxu0 0.0
    %579 = vmatpush1.msra.mxu0 0.0
    %580 = vmatprep.subr.mxu0 0.0
    %581 = vmatpush1.msra.mxu0 0.0
    %582 = vmatprep.subr.mxu0 0.0
    %583 = vmatpush1.msra.mxu0 0.0
    %584 = vmatprep.subr.mxu0 0.0
    %585 = vmatpush1.msra.mxu0 0.0
    %586 = vmatprep.subr.mxu0 0.0
    %587 = vmatpush1.msra.mxu0 0.0
    %588 = vmatprep.subr.mxu0 0.0
    %589 = vmatpush1.msra.mxu0 0.0
    %590 = vmatprep.subr.mxu0 0.0
    %591 = vmatpush1.msra.mxu0 0.0
    %592 = vmatprep.subr.mxu0 0.0
    %593 = vmatpush1.msra.mxu0 0.0
    %594 = vmatprep.subr.mxu0 0.0
    %595 = vmatpush1.msra.mxu0 0.0
    %596 = vmatprep.subr.mxu0 0.0
    %597 = vmatpush1.msra.mxu0 0.0
    %598 = vmatprep.subr.mxu0 0.0
    %599 = vmatpush1.msra.mxu0 0.0
    %600 = vmatprep.subr.mxu0 0.0
    %601 = vmatpush1.msra.mxu0 0.0
    %602 = vmatprep.subr.mxu0 0.0
    %603 = vmatpush1.msra.mxu0 0.0
    %604 = vmatprep.subr.mxu0 0.0
    %605 = vmatpush1.msra.mxu0 0.0
    %606 = vmatprep.subr.mxu0 0.0
    %607 = vmatpush1.msra.mxu0 0.0
    %608 = vmatprep.subr.mxu0 0.0
    %609 = vmatpush1.msra.mxu0 0.0
    %610 = vmatprep.subr.mxu0 0.0
    %611 = vmatpush1.msra.mxu0 0.0
    %612 = vmatprep.mubr.f32.mxu0 0.0
    %613 = vmatmul.mubr.f32.gmra.mrb[0].mxu0 %v546
    %v614 = vpop.f32.mrb[0].mxu0
    %v615 = vadd.f32 %v64, %v614
    %v616 = vpop.f32.mrb[0].mxu0
    %617 = vdwg.mxu0
    %s618 = scalar_lea.vmem [#allocation2], 12
    %619 = vst.msk [vmem:[%s618] sm:$0x3] %vm156, %v615
    %s620 = scalar_lea.vmem %s0, 14
    %v621 = vld [vmem:[%s620] sm:$0x3]
    %v623 = vsel %vm82, %v621, 0
    %625 = vmatprep.subr.mxu0 0.0
    %626 = vmatpush1.msra.mxu0 %v55
    %627 = vmatprep.subr.mxu0 0.0
    %628 = vmatpush1.msra.mxu0 0.0
    %629 = vmatprep.subr.mxu0 0.0
    %630 = vmatpush1.msra.mxu0 0.0
    %631 = vmatprep.subr.mxu0 0.0
    %632 = vmatpush1.msra.mxu0 0.0
    %633 = vmatprep.subr.mxu0 0.0
    %634 = vmatpush1.msra.mxu0 0.0
    %635 = vmatprep.subr.mxu0 0.0
    %636 = vmatpush1.msra.mxu0 0.0
    %637 = vmatprep.subr.mxu0 0.0
    %638 = vmatpush1.msra.mxu0 0.0
    %639 = vmatprep.subr.mxu0 0.0
    %640 = vmatpush1.msra.mxu0 0.0
    %641 = vmatprep.subr.mxu0 0.0
    %642 = vmatpush1.msra.mxu0 0.0
    %643 = vmatprep.subr.mxu0 0.0
    %644 = vmatpush1.msra.mxu0 0.0
    %645 = vmatprep.subr.mxu0 0.0
    %646 = vmatpush1.msra.mxu0 0.0
    %647 = vmatprep.subr.mxu0 0.0
    %648 = vmatpush1.msra.mxu0 0.0
    %649 = vmatprep.subr.mxu0 0.0
    %650 = vmatpush1.msra.mxu0 0.0
    %651 = vmatprep.subr.mxu0 0.0
    %652 = vmatpush1.msra.mxu0 0.0
    %653 = vmatprep.subr.mxu0 0.0
    %654 = vmatpush1.msra.mxu0 0.0
    %655 = vmatprep.subr.mxu0 0.0
    %656 = vmatpush1.msra.mxu0 0.0
    %657 = vmatprep.subr.mxu0 0.0
    %658 = vmatpush1.msra.mxu0 0.0
    %659 = vmatprep.subr.mxu0 0.0
    %660 = vmatpush1.msra.mxu0 0.0
    %661 = vmatprep.subr.mxu0 0.0
    %662 = vmatpush1.msra.mxu0 0.0
    %663 = vmatprep.subr.mxu0 0.0
    %664 = vmatpush1.msra.mxu0 0.0
    %665 = vmatprep.subr.mxu0 0.0
    %666 = vmatpush1.msra.mxu0 0.0
    %667 = vmatprep.subr.mxu0 0.0
    %668 = vmatpush1.msra.mxu0 0.0
    %669 = vmatprep.subr.mxu0 0.0
    %670 = vmatpush1.msra.mxu0 0.0
    %671 = vmatprep.subr.mxu0 0.0
    %672 = vmatpush1.msra.mxu0 0.0
    %673 = vmatprep.subr.mxu0 0.0
    %674 = vmatpush1.msra.mxu0 0.0
    %675 = vmatprep.subr.mxu0 0.0
    %676 = vmatpush1.msra.mxu0 0.0
    %677 = vmatprep.subr.mxu0 0.0
    %678 = vmatpush1.msra.mxu0 0.0
    %679 = vmatprep.subr.mxu0 0.0
    %680 = vmatpush1.msra.mxu0 0.0
    %681 = vmatprep.subr.mxu0 0.0
    %682 = vmatpush1.msra.mxu0 0.0
    %683 = vmatprep.subr.mxu0 0.0
    %684 = vmatpush1.msra.mxu0 0.0
    %685 = vmatprep.subr.mxu0 0.0
    %686 = vmatpush1.msra.mxu0 0.0
    %687 = vmatprep.subr.mxu0 0.0
    %688 = vmatpush1.msra.mxu0 0.0
    %689 = vmatprep.mubr.f32.mxu0 0.0
    %690 = vmatmul.mubr.f32.gmra.mrb[0].mxu0 %v623
    %v691 = vpop.f32.mrb[0].mxu0
    %v692 = vadd.f32 %v64, %v691
    %v693 = vpop.f32.mrb[0].mxu0
    %694 = vdwg.mxu0
    %s695 = scalar_lea.vmem [#allocation2], 14
    %696 = vst.msk [vmem:[%s695] sm:$0x3] %vm156, %v692
    %v697 = vld [vmem:[%s1] sm:$0x3]
    %v698 = vld [vmem:[%s2] sm:$0x3]
    %s699 = scalar_lea.vmem %s1, 2
    %v700 = vld [vmem:[%s699] sm:$0x3]
    %s701 = scalar_lea.vmem %s2, 2
    %v702 = vld [vmem:[%s701] sm:$0x3]
    %v703 = vld [vmem:[#allocation2] sm:$0x3]
    %vm704 = vcmask 39936
    %v706 = vsel %vm704, %v697, 0
    %vm708 = vcmask 1044480
    %v710 = vsel %vm708, %v56, 0
    %712 = vmatprep.subr.mxu0 0.0
    %713 = vmatpush1.msra.mxu0 %v710
    %714 = vmatprep.subr.mxu0 0.0
    %715 = vmatpush1.msra.mxu0 0.0
    %716 = vmatprep.subr.mxu0 0.0
    %717 = vmatpush1.msra.mxu0 0.0
    %718 = vmatprep.subr.mxu0 0.0
    %719 = vmatpush1.msra.mxu0 0.0
    %720 = vmatprep.subr.mxu0 0.0
    %721 = vmatpush1.msra.mxu0 0.0
    %722 = vmatprep.subr.mxu0 0.0
    %723 = vmatpush1.msra.mxu0 0.0
    %724 = vmatprep.subr.mxu0 0.0
    %725 = vmatpush1.msra.mxu0 0.0
    %726 = vmatprep.subr.mxu0 0.0
    %727 = vmatpush1.msra.mxu0 0.0
    %728 = vmatprep.subr.mxu0 0.0
    %729 = vmatpush1.msra.mxu0 0.0
    %730 = vmatprep.subr.mxu0 0.0
    %731 = vmatpush1.msra.mxu0 0.0
    %732 = vmatprep.subr.mxu0 0.0
    %733 = vmatpush1.msra.mxu0 0.0
    %734 = vmatprep.subr.mxu0 0.0
    %735 = vmatpush1.msra.mxu0 0.0
    %736 = vmatprep.subr.mxu0 0.0
    %737 = vmatpush1.msra.mxu0 0.0
    %738 = vmatprep.subr.mxu0 0.0
    %739 = vmatpush1.msra.mxu0 0.0
    %740 = vmatprep.subr.mxu0 0.0
    %741 = vmatpush1.msra.mxu0 0.0
    %742 = vmatprep.subr.mxu0 0.0
    %743 = vmatpush1.msra.mxu0 0.0
    %744 = vmatprep.subr.mxu0 0.0
    %745 = vmatpush1.msra.mxu0 0.0
    %746 = vmatprep.subr.mxu0 0.0
    %747 = vmatpush1.msra.mxu0 0.0
    %748 = vmatprep.subr.mxu0 0.0
    %749 = vmatpush1.msra.mxu0 0.0
    %750 = vmatprep.subr.mxu0 0.0
    %751 = vmatpush1.msra.mxu0 0.0
    %752 = vmatprep.subr.mxu0 0.0
    %753 = vmatpush1.msra.mxu0 0.0
    %754 = vmatprep.subr.mxu0 0.0
    %755 = vmatpush1.msra.mxu0 0.0
    %756 = vmatprep.subr.mxu0 0.0
    %757 = vmatpush1.msra.mxu0 0.0
    %758 = vmatprep.subr.mxu0 0.0
    %759 = vmatpush1.msra.mxu0 0.0
    %760 = vmatprep.subr.mxu0 0.0
    %761 = vmatpush1.msra.mxu0 0.0
    %762 = vmatprep.subr.mxu0 0.0
    %763 = vmatpush1.msra.mxu0 0.0
    %764 = vmatprep.subr.mxu0 0.0
    %765 = vmatpush1.msra.mxu0 0.0
    %766 = vmatprep.subr.mxu0 0.0
    %767 = vmatpush1.msra.mxu0 0.0
    %768 = vmatprep.subr.mxu0 0.0
    %769 = vmatpush1.msra.mxu0 0.0
    %770 = vmatprep.subr.mxu0 0.0
    %771 = vmatpush1.msra.mxu0 0.0
    %772 = vmatprep.subr.mxu0 0.0
    %773 = vmatpush1.msra.mxu0 0.0
    %774 = vmatprep.subr.mxu0 0.0
    %775 = vmatpush1.msra.mxu0 0.0
    %776 = vmatprep.mubr.f32.mxu0 0.0
    %777 = vmatmul.mubr.f32.gmra.mrb[0].mxu0 %v706
    %v778 = vpop.f32.mrb[0].mxu0
    %v779 = vadd.f32 0.0, %v778
    %v780 = vpop.f32.mrb[0].mxu0
    %781 = vdwg.mxu0
    %v782 = vadd.f32 %v703, %v779
    %v783 = vxor.u32 %v782, 2147483648
    %v784 = vmul.f32 %v783, 1.442695
    %v785 = vpow.pop %v784
    %v786 = vadd.f32 %v785, 1.0
    %v787 = vrcp.pop %v786
    %v788 = vmul.f32 1.0, %v787
    %v789 = vtanh.pop %v782
    %791 = vrot.lane.b32.xlu0 %v698, 5
    %v792 = vpop.permute.xlu0 %791
    %v794 = vmul.f32 %v788, %v792
    %796 = vrot.lane.b32.xlu0 %v789, 118
    %v797 = vpop.permute.xlu0 %796
    %v799 = vmul.f32 %v788, %v797
    %801 = vrot.lane.b32.xlu0 %v799, 5
    %v802 = vpop.permute.xlu0 %801
    %v804 = vadd.f32 %v794, %v802
    %v805 = vtanh.pop %v804
    %807 = vrot.lane.b32.xlu0 %v805, 10
    %v808 = vpop.permute.xlu0 %807
    %v810 = vmul.f32 %v788, %v808
    %v812 = vsel %vm704, %v700, 0
    %v815 = vsel %vm708, %v58, 0
    %817 = vmatprep.subr.mxu0 0.0
    %818 = vmatpush1.msra.mxu0 %v815
    %819 = vmatprep.subr.mxu0 0.0
    %820 = vmatpush1.msra.mxu0 0.0
    %821 = vmatprep.subr.mxu0 0.0
    %822 = vmatpush1.msra.mxu0 0.0
    %823 = vmatprep.subr.mxu0 0.0
    %824 = vmatpush1.msra.mxu0 0.0
    %825 = vmatprep.subr.mxu0 0.0
    %826 = vmatpush1.msra.mxu0 0.0
    %827 = vmatprep.subr.mxu0 0.0
    %828 = vmatpush1.msra.mxu0 0.0
    %829 = vmatprep.subr.mxu0 0.0
    %830 = vmatpush1.msra.mxu0 0.0
    %831 = vmatprep.subr.mxu0 0.0
    %832 = vmatpush1.msra.mxu0 0.0
    %833 = vmatprep.subr.mxu0 0.0
    %834 = vmatpush1.msra.mxu0 0.0
    %835 = vmatprep.subr.mxu0 0.0
    %836 = vmatpush1.msra.mxu0 0.0
    %837 = vmatprep.subr.mxu0 0.0
    %838 = vmatpush1.msra.mxu0 0.0
    %839 = vmatprep.subr.mxu0 0.0
    %840 = vmatpush1.msra.mxu0 0.0
    %841 = vmatprep.subr.mxu0 0.0
    %842 = vmatpush1.msra.mxu0 0.0
    %843 = vmatprep.subr.mxu0 0.0
    %844 = vmatpush1.msra.mxu0 0.0
    %845 = vmatprep.subr.mxu0 0.0
    %846 = vmatpush1.msra.mxu0 0.0
    %847 = vmatprep.subr.mxu0 0.0
    %848 = vmatpush1.msra.mxu0 0.0
    %849 = vmatprep.subr.mxu0 0.0
    %850 = vmatpush1.msra.mxu0 0.0
    %851 = vmatprep.subr.mxu0 0.0
    %852 = vmatpush1.msra.mxu0 0.0
    %853 = vmatprep.subr.mxu0 0.0
    %854 = vmatpush1.msra.mxu0 0.0
    %855 = vmatprep.subr.mxu0 0.0
    %856 = vmatpush1.msra.mxu0 0.0
    %857 = vmatprep.subr.mxu0 0.0
    %858 = vmatpush1.msra.mxu0 0.0
    %859 = vmatprep.subr.mxu0 0.0
    %860 = vmatpush1.msra.mxu0 0.0
    %861 = vmatprep.subr.mxu0 0.0
    %862 = vmatpush1.msra.mxu0 0.0
    %863 = vmatprep.subr.mxu0 0.0
    %864 = vmatpush1.msra.mxu0 0.0
    %865 = vmatprep.subr.mxu0 0.0
    %866 = vmatpush1.msra.mxu0 0.0
    %867 = vmatprep.subr.mxu0 0.0
    %868 = vmatpush1.msra.mxu0 0.0
    %869 = vmatprep.subr.mxu0 0.0
    %870 = vmatpush1.msra.mxu0 0.0
    %871 = vmatprep.subr.mxu0 0.0
    %872 = vmatpush1.msra.mxu0 0.0
    %873 = vmatprep.subr.mxu0 0.0
    %874 = vmatpush1.msra.mxu0 0.0
    %875 = vmatprep.subr.mxu0 0.0
    %876 = vmatpush1.msra.mxu0 0.0
    %877 = vmatprep.subr.mxu0 0.0
    %878 = vmatpush1.msra.mxu0 0.0
    %879 = vmatprep.subr.mxu0 0.0
    %880 = vmatpush1.msra.mxu0 0.0
    %881 = vmatprep.mubr.f32.mxu0 0.0
    %882 = vmatmul.mubr.f32.gmra.mrb[0].mxu0 %v812
    %v883 = vpop.f32.mrb[0].mxu0
    %v884 = vadd.f32 0.0, %v883
    %v885 = vpop.f32.mrb[0].mxu0
    %886 = vdwg.mxu0
    %888 = vrot.lane.b32.xlu0 %v810, 113
    %v889 = vpop.permute.xlu0 %888
    %v890 = vsel %vm704, %v889, 0
    %v893 = vsel %vm708, %v57, 0
    %895 = vmatprep.subr.mxu0 0.0
    %896 = vmatpush1.msra.mxu0 %v893
    %897 = vmatprep.subr.mxu0 0.0
    %898 = vmatpush1.msra.mxu0 0.0
    %899 = vmatprep.subr.mxu0 0.0
    %900 = vmatpush1.msra.mxu0 0.0
    %901 = vmatprep.subr.mxu0 0.0
    %902 = vmatpush1.msra.mxu0 0.0
    %903 = vmatprep.subr.mxu0 0.0
    %904 = vmatpush1.msra.mxu0 0.0
    %905 = vmatprep.subr.mxu0 0.0
    %906 = vmatpush1.msra.mxu0 0.0
    %907 = vmatprep.subr.mxu0 0.0
    %908 = vmatpush1.msra.mxu0 0.0
    %909 = vmatprep.subr.mxu0 0.0
    %910 = vmatpush1.msra.mxu0 0.0
    %911 = vmatprep.subr.mxu0 0.0
    %912 = vmatpush1.msra.mxu0 0.0
    %913 = vmatprep.subr.mxu0 0.0
    %914 = vmatpush1.msra.mxu0 0.0
    %915 = vmatprep.subr.mxu0 0.0
    %916 = vmatpush1.msra.mxu0 0.0
    %917 = vmatprep.subr.mxu0 0.0
    %918 = vmatpush1.msra.mxu0 0.0
    %919 = vmatprep.subr.mxu0 0.0
    %920 = vmatpush1.msra.mxu0 0.0
    %921 = vmatprep.subr.mxu0 0.0
    %922 = vmatpush1.msra.mxu0 0.0
    %923 = vmatprep.subr.mxu0 0.0
    %924 = vmatpush1.msra.mxu0 0.0
    %925 = vmatprep.subr.mxu0 0.0
    %926 = vmatpush1.msra.mxu0 0.0
    %927 = vmatprep.subr.mxu0 0.0
    %928 = vmatpush1.msra.mxu0 0.0
    %929 = vmatprep.subr.mxu0 0.0
    %930 = vmatpush1.msra.mxu0 0.0
    %931 = vmatprep.subr.mxu0 0.0
    %932 = vmatpush1.msra.mxu0 0.0
    %933 = vmatprep.subr.mxu0 0.0
    %934 = vmatpush1.msra.mxu0 0.0
    %935 = vmatprep.subr.mxu0 0.0
    %936 = vmatpush1.msra.mxu0 0.0
    %937 = vmatprep.subr.mxu0 0.0
    %938 = vmatpush1.msra.mxu0 0.0
    %939 = vmatprep.subr.mxu0 0.0
    %940 = vmatpush1.msra.mxu0 0.0
    %941 = vmatprep.subr.mxu0 0.0
    %942 = vmatpush1.msra.mxu0 0.0
    %943 = vmatprep.subr.mxu0 0.0
    %944 = vmatpush1.msra.mxu0 0.0
    %945 = vmatprep.subr.mxu0 0.0
    %946 = vmatpush1.msra.mxu0 0.0
    %947 = vmatprep.subr.mxu0 0.0
    %948 = vmatpush1.msra.mxu0 0.0
    %949 = vmatprep.subr.mxu0 0.0
    %950 = vmatpush1.msra.mxu0 0.0
    %951 = vmatprep.subr.mxu0 0.0
    %952 = vmatpush1.msra.mxu0 0.0
    %953 = vmatprep.subr.mxu0 0.0
    %954 = vmatpush1.msra.mxu0 0.0
    %955 = vmatprep.subr.mxu0 0.0
    %956 = vmatpush1.msra.mxu0 0.0
    %957 = vmatprep.subr.mxu0 0.0
    %958 = vmatpush1.msra.mxu0 0.0
    %959 = vmatprep.mubr.f32.mxu0 0.0
    %960 = vmatmul.mubr.f32.gmra.mrb[0].mxu0 %v890
    %v961 = vpop.f32.mrb[0].mxu0
    %v962 = vadd.f32 %v884, %v961
    %v963 = vpop.f32.mrb[0].mxu0
    %964 = vdwg.mxu0
    %v965 = vadd.f32 %v962, %v71
    %v966 = vxor.u32 %v965, 2147483648
    %v967 = vmul.f32 %v966, 1.442695
    %v968 = vpow.pop %v967
    %v969 = vadd.f32 %v968, 1.0
    %v970 = vrcp.pop %v969
    %v971 = vmul.f32 1.0, %v970
    %v972 = vtanh.pop %v965
    %974 = vrot.lane.b32.xlu0 %v702, 5
    %v975 = vpop.permute.xlu0 %974
    %v977 = vmul.f32 %v971, %v975
    %979 = vrot.lane.b32.xlu0 %v972, 118
    %v980 = vpop.permute.xlu0 %979
    %v982 = vmul.f32 %v971, %v980
    %984 = vrot.lane.b32.xlu0 %v982, 5
    %v985 = vpop.permute.xlu0 %984
    %v987 = vadd.f32 %v977, %v985
    %v988 = vtanh.pop %v987
    %990 = vrot.lane.b32.xlu0 %v988, 10
    %v991 = vpop.permute.xlu0 %990
    %v993 = vmul.f32 %v971, %v991
    %995 = vrot.lane.b32.xlu0 %v993, 113
    %v996 = vpop.permute.xlu0 %995
    %vm998 = vcmask 33792
    %999 = vst.msk [vmem:[#allocation3] sm:$0x3] %vm998, %v996
    %v1000 = vld [vmem:[%s233] sm:$0x3]
    %1001 = vmatprep.subr.mxu0 0.0
    %1002 = vmatpush1.msra.mxu0 %v710
    %1003 = vmatprep.subr.mxu0 0.0
    %1004 = vmatpush1.msra.mxu0 0.0
    %1005 = vmatprep.subr.mxu0 0.0
    %1006 = vmatpush1.msra.mxu0 0.0
    %1007 = vmatprep.subr.mxu0 0.0
    %1008 = vmatpush1.msra.mxu0 0.0
    %1009 = vmatprep.subr.mxu0 0.0
    %1010 = vmatpush1.msra.mxu0 0.0
    %1011 = vmatprep.subr.mxu0 0.0
    %1012 = vmatpush1.msra.mxu0 0.0
    %1013 = vmatprep.subr.mxu0 0.0
    %1014 = vmatpush1.msra.mxu0 0.0
    %1015 = vmatprep.subr.mxu0 0.0
    %1016 = vmatpush1.msra.mxu0 0.0
    %1017 = vmatprep.subr.mxu0 0.0
    %1018 = vmatpush1.msra.mxu0 0.0
    %1019 = vmatprep.subr.mxu0 0.0
    %1020 = vmatpush1.msra.mxu0 0.0
    %1021 = vmatprep.subr.mxu0 0.0
    %1022 = vmatpush1.msra.mxu0 0.0
    %1023 = vmatprep.subr.mxu0 0.0
    %1024 = vmatpush1.msra.mxu0 0.0
    %1025 = vmatprep.subr.mxu0 0.0
    %1026 = vmatpush1.msra.mxu0 0.0
    %1027 = vmatprep.subr.mxu0 0.0
    %1028 = vmatpush1.msra.mxu0 0.0
    %1029 = vmatprep.subr.mxu0 0.0
    %1030 = vmatpush1.msra.mxu0 0.0
    %1031 = vmatprep.subr.mxu0 0.0
    %1032 = vmatpush1.msra.mxu0 0.0
    %1033 = vmatprep.subr.mxu0 0.0
    %1034 = vmatpush1.msra.mxu0 0.0
    %1035 = vmatprep.subr.mxu0 0.0
    %1036 = vmatpush1.msra.mxu0 0.0
    %1037 = vmatprep.subr.mxu0 0.0
    %1038 = vmatpush1.msra.mxu0 0.0
    %1039 = vmatprep.subr.mxu0 0.0
    %1040 = vmatpush1.msra.mxu0 0.0
    %1041 = vmatprep.subr.mxu0 0.0
    %1042 = vmatpush1.msra.mxu0 0.0
    %1043 = vmatprep.subr.mxu0 0.0
    %1044 = vmatpush1.msra.mxu0 0.0
    %1045 = vmatprep.subr.mxu0 0.0
    %1046 = vmatpush1.msra.mxu0 0.0
    %1047 = vmatprep.subr.mxu0 0.0
    %1048 = vmatpush1.msra.mxu0 0.0
    %1049 = vmatprep.subr.mxu0 0.0
    %1050 = vmatpush1.msra.mxu0 0.0
    %1051 = vmatprep.subr.mxu0 0.0
    %1052 = vmatpush1.msra.mxu0 0.0
    %1053 = vmatprep.subr.mxu0 0.0
    %1054 = vmatpush1.msra.mxu0 0.0
    %1055 = vmatprep.subr.mxu0 0.0
    %1056 = vmatpush1.msra.mxu0 0.0
    %1057 = vmatprep.subr.mxu0 0.0
    %1058 = vmatpush1.msra.mxu0 0.0
    %1059 = vmatprep.subr.mxu0 0.0
    %1060 = vmatpush1.msra.mxu0 0.0
    %1061 = vmatprep.subr.mxu0 0.0
    %1062 = vmatpush1.msra.mxu0 0.0
    %1063 = vmatprep.subr.mxu0 0.0
    %1064 = vmatpush1.msra.mxu0 0.0
    %1065 = vmatprep.mubr.f32.mxu0 0.0
    %1066 = vmatmul.mubr.f32.gmra.mrb[0].mxu0 %v890
    %v1067 = vpop.f32.mrb[0].mxu0
    %v1068 = vadd.f32 0.0, %v1067
    %v1069 = vpop.f32.mrb[0].mxu0
    %1070 = vdwg.mxu0
    %v1071 = vadd.f32 %v1000, %v1068
    %v1072 = vxor.u32 %v1071, 2147483648
    %v1073 = vmul.f32 %v1072, 1.442695
    %v1074 = vpow.pop %v1073
    %v1075 = vadd.f32 %v1074, 1.0
    %v1076 = vrcp.pop %v1075
    %v1077 = vmul.f32 1.0, %v1076
    %v1078 = vtanh.pop %v1071
    %v1079 = vmul.f32 %v1077, %v804
    %1081 = vrot.lane.b32.xlu0 %v1078, 118
    %v1082 = vpop.permute.xlu0 %1081
    %v1084 = vmul.f32 %v1077, %v1082
    %1086 = vrot.lane.b32.xlu0 %v1084, 5
    %v1087 = vpop.permute.xlu0 %1086
    %v1089 = vadd.f32 %v1079, %v1087
    %v1090 = vtanh.pop %v1089
    %1092 = vrot.lane.b32.xlu0 %v1090, 10
    %v1093 = vpop.permute.xlu0 %1092
    %v1095 = vmul.f32 %v1077, %v1093
    %v1096 = vsel %vm704, %v996, 0
    %1098 = vmatprep.subr.mxu0 0.0
    %1099 = vmatpush1.msra.mxu0 %v815
    %1100 = vmatprep.subr.mxu0 0.0
    %1101 = vmatpush1.msra.mxu0 0.0
    %1102 = vmatprep.subr.mxu0 0.0
    %1103 = vmatpush1.msra.mxu0 0.0
    %1104 = vmatprep.subr.mxu0 0.0
    %1105 = vmatpush1.msra.mxu0 0.0
    %1106 = vmatprep.subr.mxu0 0.0
    %1107 = vmatpush1.msra.mxu0 0.0
    %1108 = vmatprep.subr.mxu0 0.0
    %1109 = vmatpush1.msra.mxu0 0.0
    %1110 = vmatprep.subr.mxu0 0.0
    %1111 = vmatpush1.msra.mxu0 0.0
    %1112 = vmatprep.subr.mxu0 0.0
    %1113 = vmatpush1.msra.mxu0 0.0
    %1114 = vmatprep.subr.mxu0 0.0
    %1115 = vmatpush1.msra.mxu0 0.0
    %1116 = vmatprep.subr.mxu0 0.0
    %1117 = vmatpush1.msra.mxu0 0.0
    %1118 = vmatprep.subr.mxu0 0.0
    %1119 = vmatpush1.msra.mxu0 0.0
    %1120 = vmatprep.subr.mxu0 0.0
    %1121 = vmatpush1.msra.mxu0 0.0
    %1122 = vmatprep.subr.mxu0 0.0
    %1123 = vmatpush1.msra.mxu0 0.0
    %1124 = vmatprep.subr.mxu0 0.0
    %1125 = vmatpush1.msra.mxu0 0.0
    %1126 = vmatprep.subr.mxu0 0.0
    %1127 = vmatpush1.msra.mxu0 0.0
    %1128 = vmatprep.subr.mxu0 0.0
    %1129 = vmatpush1.msra.mxu0 0.0
    %1130 = vmatprep.subr.mxu0 0.0
    %1131 = vmatpush1.msra.mxu0 0.0
    %1132 = vmatprep.subr.mxu0 0.0
    %1133 = vmatpush1.msra.mxu0 0.0
    %1134 = vmatprep.subr.mxu0 0.0
    %1135 = vmatpush1.msra.mxu0 0.0
    %1136 = vmatprep.subr.mxu0 0.0
    %1137 = vmatpush1.msra.mxu0 0.0
    %1138 = vmatprep.subr.mxu0 0.0
    %1139 = vmatpush1.msra.mxu0 0.0
    %1140 = vmatprep.subr.mxu0 0.0
    %1141 = vmatpush1.msra.mxu0 0.0
    %1142 = vmatprep.subr.mxu0 0.0
    %1143 = vmatpush1.msra.mxu0 0.0
    %1144 = vmatprep.subr.mxu0 0.0
    %1145 = vmatpush1.msra.mxu0 0.0
    %1146 = vmatprep.subr.mxu0 0.0
    %1147 = vmatpush1.msra.mxu0 0.0
    %1148 = vmatprep.subr.mxu0 0.0
    %1149 = vmatpush1.msra.mxu0 0.0
    %1150 = vmatprep.subr.mxu0 0.0
    %1151 = vmatpush1.msra.mxu0 0.0
    %1152 = vmatprep.subr.mxu0 0.0
    %1153 = vmatpush1.msra.mxu0 0.0
    %1154 = vmatprep.subr.mxu0 0.0
    %1155 = vmatpush1.msra.mxu0 0.0
    %1156 = vmatprep.subr.mxu0 0.0
    %1157 = vmatpush1.msra.mxu0 0.0
    %1158 = vmatprep.subr.mxu0 0.0
    %1159 = vmatpush1.msra.mxu0 0.0
    %1160 = vmatprep.subr.mxu0 0.0
    %1161 = vmatpush1.msra.mxu0 0.0
    %1162 = vmatprep.mubr.f32.mxu0 0.0
    %1163 = vmatmul.mubr.f32.gmra.mrb[0].mxu0 %v1096
    %v1164 = vpop.f32.mrb[0].mxu0
    %v1165 = vadd.f32 0.0, %v1164
    %v1166 = vpop.f32.mrb[0].mxu0
    %1167 = vdwg.mxu0
    %1169 = vrot.lane.b32.xlu0 %v1095, 113
    %v1170 = vpop.permute.xlu0 %1169
    %v1171 = vsel %vm704, %v1170, 0
    %1173 = vmatprep.subr.mxu0 0.0
    %1174 = vmatpush1.msra.mxu0 %v893
    %1175 = vmatprep.subr.mxu0 0.0
    %1176 = vmatpush1.msra.mxu0 0.0
    %1177 = vmatprep.subr.mxu0 0.0
    %1178 = vmatpush1.msra.mxu0 0.0
    %1179 = vmatprep.subr.mxu0 0.0
    %1180 = vmatpush1.msra.mxu0 0.0
    %1181 = vmatprep.subr.mxu0 0.0
    %1182 = vmatpush1.msra.mxu0 0.0
    %1183 = vmatprep.subr.mxu0 0.0
    %1184 = vmatpush1.msra.mxu0 0.0
    %1185 = vmatprep.subr.mxu0 0.0
    %1186 = vmatpush1.msra.mxu0 0.0
    %1187 = vmatprep.subr.mxu0 0.0
    %1188 = vmatpush1.msra.mxu0 0.0
    %1189 = vmatprep.subr.mxu0 0.0
    %1190 = vmatpush1.msra.mxu0 0.0
    %1191 = vmatprep.subr.mxu0 0.0
    %1192 = vmatpush1.msra.mxu0 0.0
    %1193 = vmatprep.subr.mxu0 0.0
    %1194 = vmatpush1.msra.mxu0 0.0
    %1195 = vmatprep.subr.mxu0 0.0
    %1196 = vmatpush1.msra.mxu0 0.0
    %1197 = vmatprep.subr.mxu0 0.0
    %1198 = vmatpush1.msra.mxu0 0.0
    %1199 = vmatprep.subr.mxu0 0.0
    %1200 = vmatpush1.msra.mxu0 0.0
    %1201 = vmatprep.subr.mxu0 0.0
    %1202 = vmatpush1.msra.mxu0 0.0
    %1203 = vmatprep.subr.mxu0 0.0
    %1204 = vmatpush1.msra.mxu0 0.0
    %1205 = vmatprep.subr.mxu0 0.0
    %1206 = vmatpush1.msra.mxu0 0.0
    %1207 = vmatprep.subr.mxu0 0.0
    %1208 = vmatpush1.msra.mxu0 0.0
    %1209 = vmatprep.subr.mxu0 0.0
    %1210 = vmatpush1.msra.mxu0 0.0
    %1211 = vmatprep.subr.mxu0 0.0
    %1212 = vmatpush1.msra.mxu0 0.0
    %1213 = vmatprep.subr.mxu0 0.0
    %1214 = vmatpush1.msra.mxu0 0.0
    %1215 = vmatprep.subr.mxu0 0.0
    %1216 = vmatpush1.msra.mxu0 0.0
    %1217 = vmatprep.subr.mxu0 0.0
    %1218 = vmatpush1.msra.mxu0 0.0
    %1219 = vmatprep.subr.mxu0 0.0
    %1220 = vmatpush1.msra.mxu0 0.0
    %1221 = vmatprep.subr.mxu0 0.0
    %1222 = vmatpush1.msra.mxu0 0.0
    %1223 = vmatprep.subr.mxu0 0.0
    %1224 = vmatpush1.msra.mxu0 0.0
    %1225 = vmatprep.subr.mxu0 0.0
    %1226 = vmatpush1.msra.mxu0 0.0
    %1227 = vmatprep.subr.mxu0 0.0
    %1228 = vmatpush1.msra.mxu0 0.0
    %1229 = vmatprep.subr.mxu0 0.0
    %1230 = vmatpush1.msra.mxu0 0.0
    %1231 = vmatprep.subr.mxu0 0.0
    %1232 = vmatpush1.msra.mxu0 0.0
    %1233 = vmatprep.subr.mxu0 0.0
    %1234 = vmatpush1.msra.mxu0 0.0
    %1235 = vmatprep.subr.mxu0 0.0
    %1236 = vmatpush1.msra.mxu0 0.0
    %1237 = vmatprep.mubr.f32.mxu0 0.0
    %1238 = vmatmul.mubr.f32.gmra.mrb[0].mxu0 %v1171
    %v1239 = vpop.f32.mrb[0].mxu0
    %v1240 = vadd.f32 %v1165, %v1239
    %v1241 = vpop.f32.mrb[0].mxu0
    %1242 = vdwg.mxu0
    %v1243 = vadd.f32 %v1240, %v71
    %v1244 = vxor.u32 %v1243, 2147483648
    %v1245 = vmul.f32 %v1244, 1.442695
    %v1246 = vpow.pop %v1245
    %v1247 = vadd.f32 %v1246, 1.0
    %v1248 = vrcp.pop %v1247
    %v1249 = vmul.f32 1.0, %v1248
    %v1250 = vtanh.pop %v1243
    %v1251 = vmul.f32 %v1249, %v987
    %1253 = vrot.lane.b32.xlu0 %v1250, 118
    %v1254 = vpop.permute.xlu0 %1253
    %v1256 = vmul.f32 %v1249, %v1254
    %1258 = vrot.lane.b32.xlu0 %v1256, 5
    %v1259 = vpop.permute.xlu0 %1258
    %v1261 = vadd.f32 %v1251, %v1259
    %v1262 = vtanh.pop %v1261
    %1264 = vrot.lane.b32.xlu0 %v1262, 10
    %v1265 = vpop.permute.xlu0 %1264
    %v1267 = vmul.f32 %v1249, %v1265
    %1269 = vrot.lane.b32.xlu0 %v1267, 113
    %v1270 = vpop.permute.xlu0 %1269
    %s1272 = scalar_lea.vmem [#allocation3], 2
    %1273 = vst.msk [vmem:[%s1272] sm:$0x3] %vm998, %v1270
    %v1274 = vld [vmem:[%s310] sm:$0x3]
    %1275 = vmatprep.subr.mxu0 0.0
    %1276 = vmatpush1.msra.mxu0 %v710
    %1277 = vmatprep.subr.mxu0 0.0
    %1278 = vmatpush1.msra.mxu0 0.0
    %1279 = vmatprep.subr.mxu0 0.0
    %1280 = vmatpush1.msra.mxu0 0.0
    %1281 = vmatprep.subr.mxu0 0.0
    %1282 = vmatpush1.msra.mxu0 0.0
    %1283 = vmatprep.subr.mxu0 0.0
    %1284 = vmatpush1.msra.mxu0 0.0
    %1285 = vmatprep.subr.mxu0 0.0
    %1286 = vmatpush1.msra.mxu0 0.0
    %1287 = vmatprep.subr.mxu0 0.0
    %1288 = vmatpush1.msra.mxu0 0.0
    %1289 = vmatprep.subr.mxu0 0.0
    %1290 = vmatpush1.msra.mxu0 0.0
    %1291 = vmatprep.subr.mxu0 0.0
    %1292 = vmatpush1.msra.mxu0 0.0
    %1293 = vmatprep.subr.mxu0 0.0
    %1294 = vmatpush1.msra.mxu0 0.0
    %1295 = vmatprep.subr.mxu0 0.0
    %1296 = vmatpush1.msra.mxu0 0.0
    %1297 = vmatprep.subr.mxu0 0.0
    %1298 = vmatpush1.msra.mxu0 0.0
    %1299 = vmatprep.subr.mxu0 0.0
    %1300 = vmatpush1.msra.mxu0 0.0
    %1301 = vmatprep.subr.mxu0 0.0
    %1302 = vmatpush1.msra.mxu0 0.0
    %1303 = vmatprep.subr.mxu0 0.0
    %1304 = vmatpush1.msra.mxu0 0.0
    %1305 = vmatprep.subr.mxu0 0.0
    %1306 = vmatpush1.msra.mxu0 0.0
    %1307 = vmatprep.subr.mxu0 0.0
    %1308 = vmatpush1.msra.mxu0 0.0
    %1309 = vmatprep.subr.mxu0 0.0
    %1310 = vmatpush1.msra.mxu0 0.0
    %1311 = vmatprep.subr.mxu0 0.0
    %1312 = vmatpush1.msra.mxu0 0.0
    %1313 = vmatprep.subr.mxu0 0.0
    %1314 = vmatpush1.msra.mxu0 0.0
    %1315 = vmatprep.subr.mxu0 0.0
    %1316 = vmatpush1.msra.mxu0 0.0
    %1317 = vmatprep.subr.mxu0 0.0
    %1318 = vmatpush1.msra.mxu0 0.0
    %1319 = vmatprep.subr.mxu0 0.0
    %1320 = vmatpush1.msra.mxu0 0.0
    %1321 = vmatprep.subr.mxu0 0.0
    %1322 = vmatpush1.msra.mxu0 0.0
    %1323 = vmatprep.subr.mxu0 0.0
    %1324 = vmatpush1.msra.mxu0 0.0
    %1325 = vmatprep.subr.mxu0 0.0
    %1326 = vmatpush1.msra.mxu0 0.0
    %1327 = vmatprep.subr.mxu0 0.0
    %1328 = vmatpush1.msra.mxu0 0.0
    %1329 = vmatprep.subr.mxu0 0.0
    %1330 = vmatpush1.msra.mxu0 0.0
    %1331 = vmatprep.subr.mxu0 0.0
    %1332 = vmatpush1.msra.mxu0 0.0
    %1333 = vmatprep.subr.mxu0 0.0
    %1334 = vmatpush1.msra.mxu0 0.0
    %1335 = vmatprep.subr.mxu0 0.0
    %1336 = vmatpush1.msra.mxu0 0.0
    %1337 = vmatprep.subr.mxu0 0.0
    %1338 = vmatpush1.msra.mxu0 0.0
    %1339 = vmatprep.mubr.f32.mxu0 0.0
    %1340 = vmatmul.mubr.f32.gmra.mrb[0].mxu0 %v1171
    %v1341 = vpop.f32.mrb[0].mxu0
    %v1342 = vadd.f32 0.0, %v1341
    %v1343 = vpop.f32.mrb[0].mxu0
    %1344 = vdwg.mxu0
    %v1345 = vadd.f32 %v1274, %v1342
    %v1346 = vxor.u32 %v1345, 2147483648
    %v1347 = vmul.f32 %v1346, 1.442695
    %v1348 = vpow.pop %v1347
    %v1349 = vadd.f32 %v1348, 1.0
    %v1350 = vrcp.pop %v1349
    %v1351 = vmul.f32 1.0, %v1350
    %v1352 = vtanh.pop %v1345
    %v1353 = vmul.f32 %v1351, %v1089
    %1355 = vrot.lane.b32.xlu0 %v1352, 118
    %v1356 = vpop.permute.xlu0 %1355
    %v1358 = vmul.f32 %v1351, %v1356
    %1360 = vrot.lane.b32.xlu0 %v1358, 5
    %v1361 = vpop.permute.xlu0 %1360
    %v1363 = vadd.f32 %v1353, %v1361
    %v1364 = vtanh.pop %v1363
    %1366 = vrot.lane.b32.xlu0 %v1364, 10
    %v1367 = vpop.permute.xlu0 %1366
    %v1369 = vmul.f32 %v1351, %v1367
    %v1370 = vsel %vm704, %v1270, 0
    %1372 = vmatprep.subr.mxu0 0.0
    %1373 = vmatpush1.msra.mxu0 %v815
    %1374 = vmatprep.subr.mxu0 0.0
    %1375 = vmatpush1.msra.mxu0 0.0
    %1376 = vmatprep.subr.mxu0 0.0
    %1377 = vmatpush1.msra.mxu0 0.0
    %1378 = vmatprep.subr.mxu0 0.0
    %1379 = vmatpush1.msra.mxu0 0.0
    %1380 = vmatprep.subr.mxu0 0.0
    %1381 = vmatpush1.msra.mxu0 0.0
    %1382 = vmatprep.subr.mxu0 0.0
    %1383 = vmatpush1.msra.mxu0 0.0
    %1384 = vmatprep.subr.mxu0 0.0
    %1385 = vmatpush1.msra.mxu0 0.0
    %1386 = vmatprep.subr.mxu0 0.0
    %1387 = vmatpush1.msra.mxu0 0.0
    %1388 = vmatprep.subr.mxu0 0.0
    %1389 = vmatpush1.msra.mxu0 0.0
    %1390 = vmatprep.subr.mxu0 0.0
    %1391 = vmatpush1.msra.mxu0 0.0
    %1392 = vmatprep.subr.mxu0 0.0
    %1393 = vmatpush1.msra.mxu0 0.0
    %1394 = vmatprep.subr.mxu0 0.0
    %1395 = vmatpush1.msra.mxu0 0.0
    %1396 = vmatprep.subr.mxu0 0.0
    %1397 = vmatpush1.msra.mxu0 0.0
    %1398 = vmatprep.subr.mxu0 0.0
    %1399 = vmatpush1.msra.mxu0 0.0
    %1400 = vmatprep.subr.mxu0 0.0
    %1401 = vmatpush1.msra.mxu0 0.0
    %1402 = vmatprep.subr.mxu0 0.0
    %1403 = vmatpush1.msra.mxu0 0.0
    %1404 = vmatprep.subr.mxu0 0.0
    %1405 = vmatpush1.msra.mxu0 0.0
    %1406 = vmatprep.subr.mxu0 0.0
    %1407 = vmatpush1.msra.mxu0 0.0
    %1408 = vmatprep.subr.mxu0 0.0
    %1409 = vmatpush1.msra.mxu0 0.0
    %1410 = vmatprep.subr.mxu0 0.0
    %1411 = vmatpush1.msra.mxu0 0.0
    %1412 = vmatprep.subr.mxu0 0.0
    %1413 = vmatpush1.msra.mxu0 0.0
    %1414 = vmatprep.subr.mxu0 0.0
    %1415 = vmatpush1.msra.mxu0 0.0
    %1416 = vmatprep.subr.mxu0 0.0
    %1417 = vmatpush1.msra.mxu0 0.0
    %1418 = vmatprep.subr.mxu0 0.0
    %1419 = vmatpush1.msra.mxu0 0.0
    %1420 = vmatprep.subr.mxu0 0.0
    %1421 = vmatpush1.msra.mxu0 0.0
    %1422 = vmatprep.subr.mxu0 0.0
    %1423 = vmatpush1.msra.mxu0 0.0
    %1424 = vmatprep.subr.mxu0 0.0
    %1425 = vmatpush1.msra.mxu0 0.0
    %1426 = vmatprep.subr.mxu0 0.0
    %1427 = vmatpush1.msra.mxu0 0.0
    %1428 = vmatprep.subr.mxu0 0.0
    %1429 = vmatpush1.msra.mxu0 0.0
    %1430 = vmatprep.subr.mxu0 0.0
    %1431 = vmatpush1.msra.mxu0 0.0
    %1432 = vmatprep.subr.mxu0 0.0
    %1433 = vmatpush1.msra.mxu0 0.0
    %1434 = vmatprep.subr.mxu0 0.0
    %1435 = vmatpush1.msra.mxu0 0.0
    %1436 = vmatprep.mubr.f32.mxu0 0.0
    %1437 = vmatmul.mubr.f32.gmra.mrb[0].mxu0 %v1370
    %v1438 = vpop.f32.mrb[0].mxu0
    %v1439 = vadd.f32 0.0, %v1438
    %v1440 = vpop.f32.mrb[0].mxu0
    %1441 = vdwg.mxu0
    %1443 = vrot.lane.b32.xlu0 %v1369, 113
    %v1444 = vpop.permute.xlu0 %1443
    %v1445 = vsel %vm704, %v1444, 0
    %1447 = vmatprep.subr.mxu0 0.0
    %1448 = vmatpush1.msra.mxu0 %v893
    %1449 = vmatprep.subr.mxu0 0.0
    %1450 = vmatpush1.msra.mxu0 0.0
    %1451 = vmatprep.subr.mxu0 0.0
    %1452 = vmatpush1.msra.mxu0 0.0
    %1453 = vmatprep.subr.mxu0 0.0
    %1454 = vmatpush1.msra.mxu0 0.0
    %1455 = vmatprep.subr.mxu0 0.0
    %1456 = vmatpush1.msra.mxu0 0.0
    %1457 = vmatprep.subr.mxu0 0.0
    %1458 = vmatpush1.msra.mxu0 0.0
    %1459 = vmatprep.subr.mxu0 0.0
    %1460 = vmatpush1.msra.mxu0 0.0
    %1461 = vmatprep.subr.mxu0 0.0
    %1462 = vmatpush1.msra.mxu0 0.0
    %1463 = vmatprep.subr.mxu0 0.0
    %1464 = vmatpush1.msra.mxu0 0.0
    %1465 = vmatprep.subr.mxu0 0.0
    %1466 = vmatpush1.msra.mxu0 0.0
    %1467 = vmatprep.subr.mxu0 0.0
    %1468 = vmatpush1.msra.mxu0 0.0
    %1469 = vmatprep.subr.mxu0 0.0
    %1470 = vmatpush1.msra.mxu0 0.0
    %1471 = vmatprep.subr.mxu0 0.0
    %1472 = vmatpush1.msra.mxu0 0.0
    %1473 = vmatprep.subr.mxu0 0.0
    %1474 = vmatpush1.msra.mxu0 0.0
    %1475 = vmatprep.subr.mxu0 0.0
    %1476 = vmatpush1.msra.mxu0 0.0
    %1477 = vmatprep.subr.mxu0 0.0
    %1478 = vmatpush1.msra.mxu0 0.0
    %1479 = vmatprep.subr.mxu0 0.0
    %1480 = vmatpush1.msra.mxu0 0.0
    %1481 = vmatprep.subr.mxu0 0.0
    %1482 = vmatpush1.msra.mxu0 0.0
    %1483 = vmatprep.subr.mxu0 0.0
    %1484 = vmatpush1.msra.mxu0 0.0
    %1485 = vmatprep.subr.mxu0 0.0
    %1486 = vmatpush1.msra.mxu0 0.0
    %1487 = vmatprep.subr.mxu0 0.0
    %1488 = vmatpush1.msra.mxu0 0.0
    %1489 = vmatprep.subr.mxu0 0.0
    %1490 = vmatpush1.msra.mxu0 0.0
    %1491 = vmatprep.subr.mxu0 0.0
    %1492 = vmatpush1.msra.mxu0 0.0
    %1493 = vmatprep.subr.mxu0 0.0
    %1494 = vmatpush1.msra.mxu0 0.0
    %1495 = vmatprep.subr.mxu0 0.0
    %1496 = vmatpush1.msra.mxu0 0.0
    %1497 = vmatprep.subr.mxu0 0.0
    %1498 = vmatpush1.msra.mxu0 0.0
    %1499 = vmatprep.subr.mxu0 0.0
    %1500 = vmatpush1.msra.mxu0 0.0
    %1501 = vmatprep.subr.mxu0 0.0
    %1502 = vmatpush1.msra.mxu0 0.0
    %1503 = vmatprep.subr.mxu0 0.0
    %1504 = vmatpush1.msra.mxu0 0.0
    %1505 = vmatprep.subr.mxu0 0.0
    %1506 = vmatpush1.msra.mxu0 0.0
    %1507 = vmatprep.subr.mxu0 0.0
    %1508 = vmatpush1.msra.mxu0 0.0
    %1509 = vmatprep.subr.mxu0 0.0
    %1510 = vmatpush1.msra.mxu0 0.0
    %1511 = vmatprep.mubr.f32.mxu0 0.0
    %1512 = vmatmul.mubr.f32.gmra.mrb[0].mxu0 %v1445
    %v1513 = vpop.f32.mrb[0].mxu0
    %v1514 = vadd.f32 %v1439, %v1513
    %v1515 = vpop.f32.mrb[0].mxu0
    %1516 = vdwg.mxu0
    %v1517 = vadd.f32 %v1514, %v71
    %v1518 = vxor.u32 %v1517, 2147483648
    %v1519 = vmul.f32 %v1518, 1.442695
    %v1520 = vpow.pop %v1519
    %v1521 = vadd.f32 %v1520, 1.0
    %v1522 = vrcp.pop %v1521
    %v1523 = vmul.f32 1.0, %v1522
    %v1524 = vtanh.pop %v1517
    %v1525 = vmul.f32 %v1523, %v1261
    %1527 = vrot.lane.b32.xlu0 %v1524, 118
    %v1528 = vpop.permute.xlu0 %1527
    %v1530 = vmul.f32 %v1523, %v1528
    %1532 = vrot.lane.b32.xlu0 %v1530, 5
    %v1533 = vpop.permute.xlu0 %1532
    %v1535 = vadd.f32 %v1525, %v1533
    %v1536 = vtanh.pop %v1535
    %1538 = vrot.lane.b32.xlu0 %v1536, 10
    %v1539 = vpop.permute.xlu0 %1538
    %v1541 = vmul.f32 %v1523, %v1539
    %1543 = vrot.lane.b32.xlu0 %v1541, 113
    %v1544 = vpop.permute.xlu0 %1543
    %s1546 = scalar_lea.vmem [#allocation3], 4
    %1547 = vst.msk [vmem:[%s1546] sm:$0x3] %vm998, %v1544
    %v1548 = vld [vmem:[%s387] sm:$0x3]
    %1549 = vmatprep.subr.mxu0 0.0
    %1550 = vmatpush1.msra.mxu0 %v710
    %1551 = vmatprep.subr.mxu0 0.0
    %1552 = vmatpush1.msra.mxu0 0.0
    %1553 = vmatprep.subr.mxu0 0.0
    %1554 = vmatpush1.msra.mxu0 0.0
    %1555 = vmatprep.subr.mxu0 0.0
    %1556 = vmatpush1.msra.mxu0 0.0
    %1557 = vmatprep.subr.mxu0 0.0
    %1558 = vmatpush1.msra.mxu0 0.0
    %1559 = vmatprep.subr.mxu0 0.0
    %1560 = vmatpush1.msra.mxu0 0.0
    %1561 = vmatprep.subr.mxu0 0.0
    %1562 = vmatpush1.msra.mxu0 0.0
    %1563 = vmatprep.subr.mxu0 0.0
    %1564 = vmatpush1.msra.mxu0 0.0
    %1565 = vmatprep.subr.mxu0 0.0
    %1566 = vmatpush1.msra.mxu0 0.0
    %1567 = vmatprep.subr.mxu0 0.0
    %1568 = vmatpush1.msra.mxu0 0.0
    %1569 = vmatprep.subr.mxu0 0.0
    %1570 = vmatpush1.msra.mxu0 0.0
    %1571 = vmatprep.subr.mxu0 0.0
    %1572 = vmatpush1.msra.mxu0 0.0
    %1573 = vmatprep.subr.mxu0 0.0
    %1574 = vmatpush1.msra.mxu0 0.0
    %1575 = vmatprep.subr.mxu0 0.0
    %1576 = vmatpush1.msra.mxu0 0.0
    %1577 = vmatprep.subr.mxu0 0.0
    %1578 = vmatpush1.msra.mxu0 0.0
    %1579 = vmatprep.subr.mxu0 0.0
    %1580 = vmatpush1.msra.mxu0 0.0
    %1581 = vmatprep.subr.mxu0 0.0
    %1582 = vmatpush1.msra.mxu0 0.0
    %1583 = vmatprep.subr.mxu0 0.0
    %1584 = vmatpush1.msra.mxu0 0.0
    %1585 = vmatprep.subr.mxu0 0.0
    %1586 = vmatpush1.msra.mxu0 0.0
    %1587 = vmatprep.subr.mxu0 0.0
    %1588 = vmatpush1.msra.mxu0 0.0
    %1589 = vmatprep.subr.mxu0 0.0
    %1590 = vmatpush1.msra.mxu0 0.0
    %1591 = vmatprep.subr.mxu0 0.0
    %1592 = vmatpush1.msra.mxu0 0.0
    %1593 = vmatprep.subr.mxu0 0.0
    %1594 = vmatpush1.msra.mxu0 0.0
    %1595 = vmatprep.subr.mxu0 0.0
    %1596 = vmatpush1.msra.mxu0 0.0
    %1597 = vmatprep.subr.mxu0 0.0
    %1598 = vmatpush1.msra.mxu0 0.0
    %1599 = vmatprep.subr.mxu0 0.0
    %1600 = vmatpush1.msra.mxu0 0.0
    %1601 = vmatprep.subr.mxu0 0.0
    %1602 = vmatpush1.msra.mxu0 0.0
    %1603 = vmatprep.subr.mxu0 0.0
    %1604 = vmatpush1.msra.mxu0 0.0
    %1605 = vmatprep.subr.mxu0 0.0
    %1606 = vmatpush1.msra.mxu0 0.0
    %1607 = vmatprep.subr.mxu0 0.0
    %1608 = vmatpush1.msra.mxu0 0.0
    %1609 = vmatprep.subr.mxu0 0.0
    %1610 = vmatpush1.msra.mxu0 0.0
    %1611 = vmatprep.subr.mxu0 0.0
    %1612 = vmatpush1.msra.mxu0 0.0
    %1613 = vmatprep.mubr.f32.mxu0 0.0
    %1614 = vmatmul.mubr.f32.gmra.mrb[0].mxu0 %v1445
    %v1615 = vpop.f32.mrb[0].mxu0
    %v1616 = vadd.f32 0.0, %v1615
    %v1617 = vpop.f32.mrb[0].mxu0
    %1618 = vdwg.mxu0
    %v1619 = vadd.f32 %v1548, %v1616
    %v1620 = vxor.u32 %v1619, 2147483648
    %v1621 = vmul.f32 %v1620, 1.442695
    %v1622 = vpow.pop %v1621
    %v1623 = vadd.f32 %v1622, 1.0
    %v1624 = vrcp.pop %v1623
    %v1625 = vmul.f32 1.0, %v1624
    %v1626 = vtanh.pop %v1619
    %v1627 = vmul.f32 %v1625, %v1363
    %1629 = vrot.lane.b32.xlu0 %v1626, 118
    %v1630 = vpop.permute.xlu0 %1629
    %v1632 = vmul.f32 %v1625, %v1630
    %1634 = vrot.lane.b32.xlu0 %v1632, 5
    %v1635 = vpop.permute.xlu0 %1634
    %v1637 = vadd.f32 %v1627, %v1635
    %v1638 = vtanh.pop %v1637
    %1640 = vrot.lane.b32.xlu0 %v1638, 10
    %v1641 = vpop.permute.xlu0 %1640
    %v1643 = vmul.f32 %v1625, %v1641
    %v1644 = vsel %vm704, %v1544, 0
    %1646 = vmatprep.subr.mxu0 0.0
    %1647 = vmatpush1.msra.mxu0 %v815
    %1648 = vmatprep.subr.mxu0 0.0
    %1649 = vmatpush1.msra.mxu0 0.0
    %1650 = vmatprep.subr.mxu0 0.0
    %1651 = vmatpush1.msra.mxu0 0.0
    %1652 = vmatprep.subr.mxu0 0.0
    %1653 = vmatpush1.msra.mxu0 0.0
    %1654 = vmatprep.subr.mxu0 0.0
    %1655 = vmatpush1.msra.mxu0 0.0
    %1656 = vmatprep.subr.mxu0 0.0
    %1657 = vmatpush1.msra.mxu0 0.0
    %1658 = vmatprep.subr.mxu0 0.0
    %1659 = vmatpush1.msra.mxu0 0.0
    %1660 = vmatprep.subr.mxu0 0.0
    %1661 = vmatpush1.msra.mxu0 0.0
    %1662 = vmatprep.subr.mxu0 0.0
    %1663 = vmatpush1.msra.mxu0 0.0
    %1664 = vmatprep.subr.mxu0 0.0
    %1665 = vmatpush1.msra.mxu0 0.0
    %1666 = vmatprep.subr.mxu0 0.0
    %1667 = vmatpush1.msra.mxu0 0.0
    %1668 = vmatprep.subr.mxu0 0.0
    %1669 = vmatpush1.msra.mxu0 0.0
    %1670 = vmatprep.subr.mxu0 0.0
    %1671 = vmatpush1.msra.mxu0 0.0
    %1672 = vmatprep.subr.mxu0 0.0
    %1673 = vmatpush1.msra.mxu0 0.0
    %1674 = vmatprep.subr.mxu0 0.0
    %1675 = vmatpush1.msra.mxu0 0.0
    %1676 = vmatprep.subr.mxu0 0.0
    %1677 = vmatpush1.msra.mxu0 0.0
    %1678 = vmatprep.subr.mxu0 0.0
    %1679 = vmatpush1.msra.mxu0 0.0
    %1680 = vmatprep.subr.mxu0 0.0
    %1681 = vmatpush1.msra.mxu0 0.0
    %1682 = vmatprep.subr.mxu0 0.0
    %1683 = vmatpush1.msra.mxu0 0.0
    %1684 = vmatprep.subr.mxu0 0.0
    %1685 = vmatpush1.msra.mxu0 0.0
    %1686 = vmatprep.subr.mxu0 0.0
    %1687 = vmatpush1.msra.mxu0 0.0
    %1688 = vmatprep.subr.mxu0 0.0
    %1689 = vmatpush1.msra.mxu0 0.0
    %1690 = vmatprep.subr.mxu0 0.0
    %1691 = vmatpush1.msra.mxu0 0.0
    %1692 = vmatprep.subr.mxu0 0.0
    %1693 = vmatpush1.msra.mxu0 0.0
    %1694 = vmatprep.subr.mxu0 0.0
    %1695 = vmatpush1.msra.mxu0 0.0
    %1696 = vmatprep.subr.mxu0 0.0
    %1697 = vmatpush1.msra.mxu0 0.0
    %1698 = vmatprep.subr.mxu0 0.0
    %1699 = vmatpush1.msra.mxu0 0.0
    %1700 = vmatprep.subr.mxu0 0.0
    %1701 = vmatpush1.msra.mxu0 0.0
    %1702 = vmatprep.subr.mxu0 0.0
    %1703 = vmatpush1.msra.mxu0 0.0
    %1704 = vmatprep.subr.mxu0 0.0
    %1705 = vmatpush1.msra.mxu0 0.0
    %1706 = vmatprep.subr.mxu0 0.0
    %1707 = vmatpush1.msra.mxu0 0.0
    %1708 = vmatprep.subr.mxu0 0.0
    %1709 = vmatpush1.msra.mxu0 0.0
    %1710 = vmatprep.mubr.f32.mxu0 0.0
    %1711 = vmatmul.mubr.f32.gmra.mrb[0].mxu0 %v1644
    %v1712 = vpop.f32.mrb[0].mxu0
    %v1713 = vadd.f32 0.0, %v1712
    %v1714 = vpop.f32.mrb[0].mxu0
    %1715 = vdwg.mxu0
    %1717 = vrot.lane.b32.xlu0 %v1643, 113
    %v1718 = vpop.permute.xlu0 %1717
    %v1719 = vsel %vm704, %v1718, 0
    %1721 = vmatprep.subr.mxu0 0.0
    %1722 = vmatpush1.msra.mxu0 %v893
    %1723 = vmatprep.subr.mxu0 0.0
    %1724 = vmatpush1.msra.mxu0 0.0
    %1725 = vmatprep.subr.mxu0 0.0
    %1726 = vmatpush1.msra.mxu0 0.0
    %1727 = vmatprep.subr.mxu0 0.0
    %1728 = vmatpush1.msra.mxu0 0.0
    %1729 = vmatprep.subr.mxu0 0.0
    %1730 = vmatpush1.msra.mxu0 0.0
    %1731 = vmatprep.subr.mxu0 0.0
    %1732 = vmatpush1.msra.mxu0 0.0
    %1733 = vmatprep.subr.mxu0 0.0
    %1734 = vmatpush1.msra.mxu0 0.0
    %1735 = vmatprep.subr.mxu0 0.0
    %1736 = vmatpush1.msra.mxu0 0.0
    %1737 = vmatprep.subr.mxu0 0.0
    %1738 = vmatpush1.msra.mxu0 0.0
    %1739 = vmatprep.subr.mxu0 0.0
    %1740 = vmatpush1.msra.mxu0 0.0
    %1741 = vmatprep.subr.mxu0 0.0
    %1742 = vmatpush1.msra.mxu0 0.0
    %1743 = vmatprep.subr.mxu0 0.0
    %1744 = vmatpush1.msra.mxu0 0.0
    %1745 = vmatprep.subr.mxu0 0.0
    %1746 = vmatpush1.msra.mxu0 0.0
    %1747 = vmatprep.subr.mxu0 0.0
    %1748 = vmatpush1.msra.mxu0 0.0
    %1749 = vmatprep.subr.mxu0 0.0
    %1750 = vmatpush1.msra.mxu0 0.0
    %1751 = vmatprep.subr.mxu0 0.0
    %1752 = vmatpush1.msra.mxu0 0.0
    %1753 = vmatprep.subr.mxu0 0.0
    %1754 = vmatpush1.msra.mxu0 0.0
    %1755 = vmatprep.subr.mxu0 0.0
    %1756 = vmatpush1.msra.mxu0 0.0
    %1757 = vmatprep.subr.mxu0 0.0
    %1758 = vmatpush1.msra.mxu0 0.0
    %1759 = vmatprep.subr.mxu0 0.0
    %1760 = vmatpush1.msra.mxu0 0.0
    %1761 = vmatprep.subr.mxu0 0.0
    %1762 = vmatpush1.msra.mxu0 0.0
    %1763 = vmatprep.subr.mxu0 0.0
    %1764 = vmatpush1.msra.mxu0 0.0
    %1765 = vmatprep.subr.mxu0 0.0
    %1766 = vmatpush1.msra.mxu0 0.0
    %1767 = vmatprep.subr.mxu0 0.0
    %1768 = vmatpush1.msra.mxu0 0.0
    %1769 = vmatprep.subr.mxu0 0.0
    %1770 = vmatpush1.msra.mxu0 0.0
    %1771 = vmatprep.subr.mxu0 0.0
    %1772 = vmatpush1.msra.mxu0 0.0
    %1773 = vmatprep.subr.mxu0 0.0
    %1774 = vmatpush1.msra.mxu0 0.0
    %1775 = vmatprep.subr.mxu0 0.0
    %1776 = vmatpush1.msra.mxu0 0.0
    %1777 = vmatprep.subr.mxu0 0.0
    %1778 = vmatpush1.msra.mxu0 0.0
    %1779 = vmatprep.subr.mxu0 0.0
    %1780 = vmatpush1.msra.mxu0 0.0
    %1781 = vmatprep.subr.mxu0 0.0
    %1782 = vmatpush1.msra.mxu0 0.0
    %1783 = vmatprep.subr.mxu0 0.0
    %1784 = vmatpush1.msra.mxu0 0.0
    %1785 = vmatprep.mubr.f32.mxu0 0.0
    %1786 = vmatmul.mubr.f32.gmra.mrb[0].mxu0 %v1719
    %v1787 = vpop.f32.mrb[0].mxu0
    %v1788 = vadd.f32 %v1713, %v1787
    %v1789 = vpop.f32.mrb[0].mxu0
    %1790 = vdwg.mxu0
    %v1791 = vadd.f32 %v1788, %v71
    %v1792 = vxor.u32 %v1791, 2147483648
    %v1793 = vmul.f32 %v1792, 1.442695
    %v1794 = vpow.pop %v1793
    %v1795 = vadd.f32 %v1794, 1.0
    %v1796 = vrcp.pop %v1795
    %v1797 = vmul.f32 1.0, %v1796
    %v1798 = vtanh.pop %v1791
    %v1799 = vmul.f32 %v1797, %v1535
    %1801 = vrot.lane.b32.xlu0 %v1798, 118
    %v1802 = vpop.permute.xlu0 %1801
    %v1804 = vmul.f32 %v1797, %v1802
    %1806 = vrot.lane.b32.xlu0 %v1804, 5
    %v1807 = vpop.permute.xlu0 %1806
    %v1809 = vadd.f32 %v1799, %v1807
    %v1810 = vtanh.pop %v1809
    %1812 = vrot.lane.b32.xlu0 %v1810, 10
    %v1813 = vpop.permute.xlu0 %1812
    %v1815 = vmul.f32 %v1797, %v1813
    %1817 = vrot.lane.b32.xlu0 %v1815, 113
    %v1818 = vpop.permute.xlu0 %1817
    %s1820 = scalar_lea.vmem [#allocation3], 6
    %1821 = vst.msk [vmem:[%s1820] sm:$0x3] %vm998, %v1818
    %v1822 = vld [vmem:[%s464] sm:$0x3]
    %1823 = vmatprep.subr.mxu0 0.0
    %1824 = vmatpush1.msra.mxu0 %v710
    %1825 = vmatprep.subr.mxu0 0.0
    %1826 = vmatpush1.msra.mxu0 0.0
    %1827 = vmatprep.subr.mxu0 0.0
    %1828 = vmatpush1.msra.mxu0 0.0
    %1829 = vmatprep.subr.mxu0 0.0
    %1830 = vmatpush1.msra.mxu0 0.0
    %1831 = vmatprep.subr.mxu0 0.0
    %1832 = vmatpush1.msra.mxu0 0.0
    %1833 = vmatprep.subr.mxu0 0.0
    %1834 = vmatpush1.msra.mxu0 0.0
    %1835 = vmatprep.subr.mxu0 0.0
    %1836 = vmatpush1.msra.mxu0 0.0
    %1837 = vmatprep.subr.mxu0 0.0
    %1838 = vmatpush1.msra.mxu0 0.0
    %1839 = vmatprep.subr.mxu0 0.0
    %1840 = vmatpush1.msra.mxu0 0.0
    %1841 = vmatprep.subr.mxu0 0.0
    %1842 = vmatpush1.msra.mxu0 0.0
    %1843 = vmatprep.subr.mxu0 0.0
    %1844 = vmatpush1.msra.mxu0 0.0
    %1845 = vmatprep.subr.mxu0 0.0
    %1846 = vmatpush1.msra.mxu0 0.0
    %1847 = vmatprep.subr.mxu0 0.0
    %1848 = vmatpush1.msra.mxu0 0.0
    %1849 = vmatprep.subr.mxu0 0.0
    %1850 = vmatpush1.msra.mxu0 0.0
    %1851 = vmatprep.subr.mxu0 0.0
    %1852 = vmatpush1.msra.mxu0 0.0
    %1853 = vmatprep.subr.mxu0 0.0
    %1854 = vmatpush1.msra.mxu0 0.0
    %1855 = vmatprep.subr.mxu0 0.0
    %1856 = vmatpush1.msra.mxu0 0.0
    %1857 = vmatprep.subr.mxu0 0.0
    %1858 = vmatpush1.msra.mxu0 0.0
    %1859 = vmatprep.subr.mxu0 0.0
    %1860 = vmatpush1.msra.mxu0 0.0
    %1861 = vmatprep.subr.mxu0 0.0
    %1862 = vmatpush1.msra.mxu0 0.0
    %1863 = vmatprep.subr.mxu0 0.0
    %1864 = vmatpush1.msra.mxu0 0.0
    %1865 = vmatprep.subr.mxu0 0.0
    %1866 = vmatpush1.msra.mxu0 0.0
    %1867 = vmatprep.subr.mxu0 0.0
    %1868 = vmatpush1.msra.mxu0 0.0
    %1869 = vmatprep.subr.mxu0 0.0
    %1870 = vmatpush1.msra.mxu0 0.0
    %1871 = vmatprep.subr.mxu0 0.0
    %1872 = vmatpush1.msra.mxu0 0.0
    %1873 = vmatprep.subr.mxu0 0.0
    %1874 = vmatpush1.msra.mxu0 0.0
    %1875 = vmatprep.subr.mxu0 0.0
    %1876 = vmatpush1.msra.mxu0 0.0
    %1877 = vmatprep.subr.mxu0 0.0
    %1878 = vmatpush1.msra.mxu0 0.0
    %1879 = vmatprep.subr.mxu0 0.0
    %1880 = vmatpush1.msra.mxu0 0.0
    %1881 = vmatprep.subr.mxu0 0.0
    %1882 = vmatpush1.msra.mxu0 0.0
    %1883 = vmatprep.subr.mxu0 0.0
    %1884 = vmatpush1.msra.mxu0 0.0
    %1885 = vmatprep.subr.mxu0 0.0
    %1886 = vmatpush1.msra.mxu0 0.0
    %1887 = vmatprep.mubr.f32.mxu0 0.0
    %1888 = vmatmul.mubr.f32.gmra.mrb[0].mxu0 %v1719
    %v1889 = vpop.f32.mrb[0].mxu0
    %v1890 = vadd.f32 0.0, %v1889
    %v1891 = vpop.f32.mrb[0].mxu0
    %1892 = vdwg.mxu0
    %v1893 = vadd.f32 %v1822, %v1890
    %v1894 = vxor.u32 %v1893, 2147483648
    %v1895 = vmul.f32 %v1894, 1.442695
    %v1896 = vpow.pop %v1895
    %v1897 = vadd.f32 %v1896, 1.0
    %v1898 = vrcp.pop %v1897
    %v1899 = vmul.f32 1.0, %v1898
    %v1900 = vtanh.pop %v1893
    %v1901 = vmul.f32 %v1899, %v1637
    %1903 = vrot.lane.b32.xlu0 %v1900, 118
    %v1904 = vpop.permute.xlu0 %1903
    %v1906 = vmul.f32 %v1899, %v1904
    %1908 = vrot.lane.b32.xlu0 %v1906, 5
    %v1909 = vpop.permute.xlu0 %1908
    %v1911 = vadd.f32 %v1901, %v1909
    %v1912 = vtanh.pop %v1911
    %1914 = vrot.lane.b32.xlu0 %v1912, 10
    %v1915 = vpop.permute.xlu0 %1914
    %v1917 = vmul.f32 %v1899, %v1915
    %v1918 = vsel %vm704, %v1818, 0
    %1920 = vmatprep.subr.mxu0 0.0
    %1921 = vmatpush1.msra.mxu0 %v815
    %1922 = vmatprep.subr.mxu0 0.0
    %1923 = vmatpush1.msra.mxu0 0.0
    %1924 = vmatprep.subr.mxu0 0.0
    %1925 = vmatpush1.msra.mxu0 0.0
    %1926 = vmatprep.subr.mxu0 0.0
    %1927 = vmatpush1.msra.mxu0 0.0
    %1928 = vmatprep.subr.mxu0 0.0
    %1929 = vmatpush1.msra.mxu0 0.0
    %1930 = vmatprep.subr.mxu0 0.0
    %1931 = vmatpush1.msra.mxu0 0.0
    %1932 = vmatprep.subr.mxu0 0.0
    %1933 = vmatpush1.msra.mxu0 0.0
    %1934 = vmatprep.subr.mxu0 0.0
    %1935 = vmatpush1.msra.mxu0 0.0
    %1936 = vmatprep.subr.mxu0 0.0
    %1937 = vmatpush1.msra.mxu0 0.0
    %1938 = vmatprep.subr.mxu0 0.0
    %1939 = vmatpush1.msra.mxu0 0.0
    %1940 = vmatprep.subr.mxu0 0.0
    %1941 = vmatpush1.msra.mxu0 0.0
    %1942 = vmatprep.subr.mxu0 0.0
    %1943 = vmatpush1.msra.mxu0 0.0
    %1944 = vmatprep.subr.mxu0 0.0
    %1945 = vmatpush1.msra.mxu0 0.0
    %1946 = vmatprep.subr.mxu0 0.0
    %1947 = vmatpush1.msra.mxu0 0.0
    %1948 = vmatprep.subr.mxu0 0.0
    %1949 = vmatpush1.msra.mxu0 0.0
    %1950 = vmatprep.subr.mxu0 0.0
    %1951 = vmatpush1.msra.mxu0 0.0
    %1952 = vmatprep.subr.mxu0 0.0
    %1953 = vmatpush1.msra.mxu0 0.0
    %1954 = vmatprep.subr.mxu0 0.0
    %1955 = vmatpush1.msra.mxu0 0.0
    %1956 = vmatprep.subr.mxu0 0.0
    %1957 = vmatpush1.msra.mxu0 0.0
    %1958 = vmatprep.subr.mxu0 0.0
    %1959 = vmatpush1.msra.mxu0 0.0
    %1960 = vmatprep.subr.mxu0 0.0
    %1961 = vmatpush1.msra.mxu0 0.0
    %1962 = vmatprep.subr.mxu0 0.0
    %1963 = vmatpush1.msra.mxu0 0.0
    %1964 = vmatprep.subr.mxu0 0.0
    %1965 = vmatpush1.msra.mxu0 0.0
    %1966 = vmatprep.subr.mxu0 0.0
    %1967 = vmatpush1.msra.mxu0 0.0
    %1968 = vmatprep.subr.mxu0 0.0
    %1969 = vmatpush1.msra.mxu0 0.0
    %1970 = vmatprep.subr.mxu0 0.0
    %1971 = vmatpush1.msra.mxu0 0.0
    %1972 = vmatprep.subr.mxu0 0.0
    %1973 = vmatpush1.msra.mxu0 0.0
    %1974 = vmatprep.subr.mxu0 0.0
    %1975 = vmatpush1.msra.mxu0 0.0
    %1976 = vmatprep.subr.mxu0 0.0
    %1977 = vmatpush1.msra.mxu0 0.0
    %1978 = vmatprep.subr.mxu0 0.0
    %1979 = vmatpush1.msra.mxu0 0.0
    %1980 = vmatprep.subr.mxu0 0.0
    %1981 = vmatpush1.msra.mxu0 0.0
    %1982 = vmatprep.subr.mxu0 0.0
    %1983 = vmatpush1.msra.mxu0 0.0
    %1984 = vmatprep.mubr.f32.mxu0 0.0
    %1985 = vmatmul.mubr.f32.gmra.mrb[0].mxu0 %v1918
    %v1986 = vpop.f32.mrb[0].mxu0
    %v1987 = vadd.f32 0.0, %v1986
    %v1988 = vpop.f32.mrb[0].mxu0
    %1989 = vdwg.mxu0
    %1991 = vrot.lane.b32.xlu0 %v1917, 113
    %v1992 = vpop.permute.xlu0 %1991
    %v1993 = vsel %vm704, %v1992, 0
    %1995 = vmatprep.subr.mxu0 0.0
    %1996 = vmatpush1.msra.mxu0 %v893
    %1997 = vmatprep.subr.mxu0 0.0
    %1998 = vmatpush1.msra.mxu0 0.0
    %1999 = vmatprep.subr.mxu0 0.0
    %2000 = vmatpush1.msra.mxu0 0.0
    %2001 = vmatprep.subr.mxu0 0.0
    %2002 = vmatpush1.msra.mxu0 0.0
    %2003 = vmatprep.subr.mxu0 0.0
    %2004 = vmatpush1.msra.mxu0 0.0
    %2005 = vmatprep.subr.mxu0 0.0
    %2006 = vmatpush1.msra.mxu0 0.0
    %2007 = vmatprep.subr.mxu0 0.0
    %2008 = vmatpush1.msra.mxu0 0.0
    %2009 = vmatprep.subr.mxu0 0.0
    %2010 = vmatpush1.msra.mxu0 0.0
    %2011 = vmatprep.subr.mxu0 0.0
    %2012 = vmatpush1.msra.mxu0 0.0
    %2013 = vmatprep.subr.mxu0 0.0
    %2014 = vmatpush1.msra.mxu0 0.0
    %2015 = vmatprep.subr.mxu0 0.0
    %2016 = vmatpush1.msra.mxu0 0.0
    %2017 = vmatprep.subr.mxu0 0.0
    %2018 = vmatpush1.msra.mxu0 0.0
    %2019 = vmatprep.subr.mxu0 0.0
    %2020 = vmatpush1.msra.mxu0 0.0
    %2021 = vmatprep.subr.mxu0 0.0
    %2022 = vmatpush1.msra.mxu0 0.0
    %2023 = vmatprep.subr.mxu0 0.0
    %2024 = vmatpush1.msra.mxu0 0.0
    %2025 = vmatprep.subr.mxu0 0.0
    %2026 = vmatpush1.msra.mxu0 0.0
    %2027 = vmatprep.subr.mxu0 0.0
    %2028 = vmatpush1.msra.mxu0 0.0
    %2029 = vmatprep.subr.mxu0 0.0
    %2030 = vmatpush1.msra.mxu0 0.0
    %2031 = vmatprep.subr.mxu0 0.0
    %2032 = vmatpush1.msra.mxu0 0.0
    %2033 = vmatprep.subr.mxu0 0.0
    %2034 = vmatpush1.msra.mxu0 0.0
    %2035 = vmatprep.subr.mxu0 0.0
    %2036 = vmatpush1.msra.mxu0 0.0
    %2037 = vmatprep.subr.mxu0 0.0
    %2038 = vmatpush1.msra.mxu0 0.0
    %2039 = vmatprep.subr.mxu0 0.0
    %2040 = vmatpush1.msra.mxu0 0.0
    %2041 = vmatprep.subr.mxu0 0.0
    %2042 = vmatpush1.msra.mxu0 0.0
    %2043 = vmatprep.subr.mxu0 0.0
    %2044 = vmatpush1.msra.mxu0 0.0
    %2045 = vmatprep.subr.mxu0 0.0
    %2046 = vmatpush1.msra.mxu0 0.0
    %2047 = vmatprep.subr.mxu0 0.0
    %2048 = vmatpush1.msra.mxu0 0.0
    %2049 = vmatprep.subr.mxu0 0.0
    %2050 = vmatpush1.msra.mxu0 0.0
    %2051 = vmatprep.subr.mxu0 0.0
    %2052 = vmatpush1.msra.mxu0 0.0
    %2053 = vmatprep.subr.mxu0 0.0
    %2054 = vmatpush1.msra.mxu0 0.0
    %2055 = vmatprep.subr.mxu0 0.0
    %2056 = vmatpush1.msra.mxu0 0.0
    %2057 = vmatprep.subr.mxu0 0.0
    %2058 = vmatpush1.msra.mxu0 0.0
    %2059 = vmatprep.mubr.f32.mxu0 0.0
    %2060 = vmatmul.mubr.f32.gmra.mrb[0].mxu0 %v1993
    %v2061 = vpop.f32.mrb[0].mxu0
    %v2062 = vadd.f32 %v1987, %v2061
    %v2063 = vpop.f32.mrb[0].mxu0
    %2064 = vdwg.mxu0
    %v2065 = vadd.f32 %v2062, %v71
    %v2066 = vxor.u32 %v2065, 2147483648
    %v2067 = vmul.f32 %v2066, 1.442695
    %v2068 = vpow.pop %v2067
    %v2069 = vadd.f32 %v2068, 1.0
    %v2070 = vrcp.pop %v2069
    %v2071 = vmul.f32 1.0, %v2070
    %v2072 = vtanh.pop %v2065
    %v2073 = vmul.f32 %v2071, %v1809
    %2075 = vrot.lane.b32.xlu0 %v2072, 118
    %v2076 = vpop.permute.xlu0 %2075
    %v2078 = vmul.f32 %v2071, %v2076
    %2080 = vrot.lane.b32.xlu0 %v2078, 5
    %v2081 = vpop.permute.xlu0 %2080
    %v2083 = vadd.f32 %v2073, %v2081
    %v2084 = vtanh.pop %v2083
    %2086 = vrot.lane.b32.xlu0 %v2084, 10
    %v2087 = vpop.permute.xlu0 %2086
    %v2089 = vmul.f32 %v2071, %v2087
    %2091 = vrot.lane.b32.xlu0 %v2089, 113
    %v2092 = vpop.permute.xlu0 %2091
    %s2094 = scalar_lea.vmem [#allocation3], 8
    %2095 = vst.msk [vmem:[%s2094] sm:$0x3] %vm998, %v2092
    %v2096 = vld [vmem:[%s541] sm:$0x3]
    %2097 = vmatprep.subr.mxu0 0.0
    %2098 = vmatpush1.msra.mxu0 %v710
    %2099 = vmatprep.subr.mxu0 0.0
    %2100 = vmatpush1.msra.mxu0 0.0
    %2101 = vmatprep.subr.mxu0 0.0
    %2102 = vmatpush1.msra.mxu0 0.0
    %2103 = vmatprep.subr.mxu0 0.0
    %2104 = vmatpush1.msra.mxu0 0.0
    %2105 = vmatprep.subr.mxu0 0.0
    %2106 = vmatpush1.msra.mxu0 0.0
    %2107 = vmatprep.subr.mxu0 0.0
    %2108 = vmatpush1.msra.mxu0 0.0
    %2109 = vmatprep.subr.mxu0 0.0
    %2110 = vmatpush1.msra.mxu0 0.0
    %2111 = vmatprep.subr.mxu0 0.0
    %2112 = vmatpush1.msra.mxu0 0.0
    %2113 = vmatprep.subr.mxu0 0.0
    %2114 = vmatpush1.msra.mxu0 0.0
    %2115 = vmatprep.subr.mxu0 0.0
    %2116 = vmatpush1.msra.mxu0 0.0
    %2117 = vmatprep.subr.mxu0 0.0
    %2118 = vmatpush1.msra.mxu0 0.0
    %2119 = vmatprep.subr.mxu0 0.0
    %2120 = vmatpush1.msra.mxu0 0.0
    %2121 = vmatprep.subr.mxu0 0.0
    %2122 = vmatpush1.msra.mxu0 0.0
    %2123 = vmatprep.subr.mxu0 0.0
    %2124 = vmatpush1.msra.mxu0 0.0
    %2125 = vmatprep.subr.mxu0 0.0
    %2126 = vmatpush1.msra.mxu0 0.0
    %2127 = vmatprep.subr.mxu0 0.0
    %2128 = vmatpush1.msra.mxu0 0.0
    %2129 = vmatprep.subr.mxu0 0.0
    %2130 = vmatpush1.msra.mxu0 0.0
    %2131 = vmatprep.subr.mxu0 0.0
    %2132 = vmatpush1.msra.mxu0 0.0
    %2133 = vmatprep.subr.mxu0 0.0
    %2134 = vmatpush1.msra.mxu0 0.0
    %2135 = vmatprep.subr.mxu0 0.0
    %2136 = vmatpush1.msra.mxu0 0.0
    %2137 = vmatprep.subr.mxu0 0.0
    %2138 = vmatpush1.msra.mxu0 0.0
    %2139 = vmatprep.subr.mxu0 0.0
    %2140 = vmatpush1.msra.mxu0 0.0
    %2141 = vmatprep.subr.mxu0 0.0
    %2142 = vmatpush1.msra.mxu0 0.0
    %2143 = vmatprep.subr.mxu0 0.0
    %2144 = vmatpush1.msra.mxu0 0.0
    %2145 = vmatprep.subr.mxu0 0.0
    %2146 = vmatpush1.msra.mxu0 0.0
    %2147 = vmatprep.subr.mxu0 0.0
    %2148 = vmatpush1.msra.mxu0 0.0
    %2149 = vmatprep.subr.mxu0 0.0
    %2150 = vmatpush1.msra.mxu0 0.0
    %2151 = vmatprep.subr.mxu0 0.0
    %2152 = vmatpush1.msra.mxu0 0.0
    %2153 = vmatprep.subr.mxu0 0.0
    %2154 = vmatpush1.msra.mxu0 0.0
    %2155 = vmatprep.subr.mxu0 0.0
    %2156 = vmatpush1.msra.mxu0 0.0
    %2157 = vmatprep.subr.mxu0 0.0
    %2158 = vmatpush1.msra.mxu0 0.0
    %2159 = vmatprep.subr.mxu0 0.0
    %2160 = vmatpush1.msra.mxu0 0.0
    %2161 = vmatprep.mubr.f32.mxu0 0.0
    %2162 = vmatmul.mubr.f32.gmra.mrb[0].mxu0 %v1993
    %v2163 = vpop.f32.mrb[0].mxu0
    %v2164 = vadd.f32 0.0, %v2163
    %v2165 = vpop.f32.mrb[0].mxu0
    %2166 = vdwg.mxu0
    %v2167 = vadd.f32 %v2096, %v2164
    %v2168 = vxor.u32 %v2167, 2147483648
    %v2169 = vmul.f32 %v2168, 1.442695
    %v2170 = vpow.pop %v2169
    %v2171 = vadd.f32 %v2170, 1.0
    %v2172 = vrcp.pop %v2171
    %v2173 = vmul.f32 1.0, %v2172
    %v2174 = vtanh.pop %v2167
    %v2175 = vmul.f32 %v2173, %v1911
    %2177 = vrot.lane.b32.xlu0 %v2174, 118
    %v2178 = vpop.permute.xlu0 %2177
    %v2180 = vmul.f32 %v2173, %v2178
    %2182 = vrot.lane.b32.xlu0 %v2180, 5
    %v2183 = vpop.permute.xlu0 %2182
    %v2185 = vadd.f32 %v2175, %v2183
    %v2186 = vtanh.pop %v2185
    %2188 = vrot.lane.b32.xlu0 %v2186, 10
    %v2189 = vpop.permute.xlu0 %2188
    %v2191 = vmul.f32 %v2173, %v2189
    %v2192 = vsel %vm704, %v2092, 0
    %2194 = vmatprep.subr.mxu0 0.0
    %2195 = vmatpush1.msra.mxu0 %v815
    %2196 = vmatprep.subr.mxu0 0.0
    %2197 = vmatpush1.msra.mxu0 0.0
    %2198 = vmatprep.subr.mxu0 0.0
    %2199 = vmatpush1.msra.mxu0 0.0
    %2200 = vmatprep.subr.mxu0 0.0
    %2201 = vmatpush1.msra.mxu0 0.0
    %2202 = vmatprep.subr.mxu0 0.0
    %2203 = vmatpush1.msra.mxu0 0.0
    %2204 = vmatprep.subr.mxu0 0.0
    %2205 = vmatpush1.msra.mxu0 0.0
    %2206 = vmatprep.subr.mxu0 0.0
    %2207 = vmatpush1.msra.mxu0 0.0
    %2208 = vmatprep.subr.mxu0 0.0
    %2209 = vmatpush1.msra.mxu0 0.0
    %2210 = vmatprep.subr.mxu0 0.0
    %2211 = vmatpush1.msra.mxu0 0.0
    %2212 = vmatprep.subr.mxu0 0.0
    %2213 = vmatpush1.msra.mxu0 0.0
    %2214 = vmatprep.subr.mxu0 0.0
    %2215 = vmatpush1.msra.mxu0 0.0
    %2216 = vmatprep.subr.mxu0 0.0
    %2217 = vmatpush1.msra.mxu0 0.0
    %2218 = vmatprep.subr.mxu0 0.0
    %2219 = vmatpush1.msra.mxu0 0.0
    %2220 = vmatprep.subr.mxu0 0.0
    %2221 = vmatpush1.msra.mxu0 0.0
    %2222 = vmatprep.subr.mxu0 0.0
    %2223 = vmatpush1.msra.mxu0 0.0
    %2224 = vmatprep.subr.mxu0 0.0
    %2225 = vmatpush1.msra.mxu0 0.0
    %2226 = vmatprep.subr.mxu0 0.0
    %2227 = vmatpush1.msra.mxu0 0.0
    %2228 = vmatprep.subr.mxu0 0.0
    %2229 = vmatpush1.msra.mxu0 0.0
    %2230 = vmatprep.subr.mxu0 0.0
    %2231 = vmatpush1.msra.mxu0 0.0
    %2232 = vmatprep.subr.mxu0 0.0
    %2233 = vmatpush1.msra.mxu0 0.0
    %2234 = vmatprep.subr.mxu0 0.0
    %2235 = vmatpush1.msra.mxu0 0.0
    %2236 = vmatprep.subr.mxu0 0.0
    %2237 = vmatpush1.msra.mxu0 0.0
    %2238 = vmatprep.subr.mxu0 0.0
    %2239 = vmatpush1.msra.mxu0 0.0
    %2240 = vmatprep.subr.mxu0 0.0
    %2241 = vmatpush1.msra.mxu0 0.0
    %2242 = vmatprep.subr.mxu0 0.0
    %2243 = vmatpush1.msra.mxu0 0.0
    %2244 = vmatprep.subr.mxu0 0.0
    %2245 = vmatpush1.msra.mxu0 0.0
    %2246 = vmatprep.subr.mxu0 0.0
    %2247 = vmatpush1.msra.mxu0 0.0
    %2248 = vmatprep.subr.mxu0 0.0
    %2249 = vmatpush1.msra.mxu0 0.0
    %2250 = vmatprep.subr.mxu0 0.0
    %2251 = vmatpush1.msra.mxu0 0.0
    %2252 = vmatprep.subr.mxu0 0.0
    %2253 = vmatpush1.msra.mxu0 0.0
    %2254 = vmatprep.subr.mxu0 0.0
    %2255 = vmatpush1.msra.mxu0 0.0
    %2256 = vmatprep.subr.mxu0 0.0
    %2257 = vmatpush1.msra.mxu0 0.0
    %2258 = vmatprep.mubr.f32.mxu0 0.0
    %2259 = vmatmul.mubr.f32.gmra.mrb[0].mxu0 %v2192
    %v2260 = vpop.f32.mrb[0].mxu0
    %v2261 = vadd.f32 0.0, %v2260
    %v2262 = vpop.f32.mrb[0].mxu0
    %2263 = vdwg.mxu0
    %2265 = vrot.lane.b32.xlu0 %v2191, 113
    %v2266 = vpop.permute.xlu0 %2265
    %v2267 = vsel %vm704, %v2266, 0
    %2269 = vmatprep.subr.mxu0 0.0
    %2270 = vmatpush1.msra.mxu0 %v893
    %2271 = vmatprep.subr.mxu0 0.0
    %2272 = vmatpush1.msra.mxu0 0.0
    %2273 = vmatprep.subr.mxu0 0.0
    %2274 = vmatpush1.msra.mxu0 0.0
    %2275 = vmatprep.subr.mxu0 0.0
    %2276 = vmatpush1.msra.mxu0 0.0
    %2277 = vmatprep.subr.mxu0 0.0
    %2278 = vmatpush1.msra.mxu0 0.0
    %2279 = vmatprep.subr.mxu0 0.0
    %2280 = vmatpush1.msra.mxu0 0.0
    %2281 = vmatprep.subr.mxu0 0.0
    %2282 = vmatpush1.msra.mxu0 0.0
    %2283 = vmatprep.subr.mxu0 0.0
    %2284 = vmatpush1.msra.mxu0 0.0
    %2285 = vmatprep.subr.mxu0 0.0
    %2286 = vmatpush1.msra.mxu0 0.0
    %2287 = vmatprep.subr.mxu0 0.0
    %2288 = vmatpush1.msra.mxu0 0.0
    %2289 = vmatprep.subr.mxu0 0.0
    %2290 = vmatpush1.msra.mxu0 0.0
    %2291 = vmatprep.subr.mxu0 0.0
    %2292 = vmatpush1.msra.mxu0 0.0
    %2293 = vmatprep.subr.mxu0 0.0
    %2294 = vmatpush1.msra.mxu0 0.0
    %2295 = vmatprep.subr.mxu0 0.0
    %2296 = vmatpush1.msra.mxu0 0.0
    %2297 = vmatprep.subr.mxu0 0.0
    %2298 = vmatpush1.msra.mxu0 0.0
    %2299 = vmatprep.subr.mxu0 0.0
    %2300 = vmatpush1.msra.mxu0 0.0
    %2301 = vmatprep.subr.mxu0 0.0
    %2302 = vmatpush1.msra.mxu0 0.0
    %2303 = vmatprep.subr.mxu0 0.0
    %2304 = vmatpush1.msra.mxu0 0.0
    %2305 = vmatprep.subr.mxu0 0.0
    %2306 = vmatpush1.msra.mxu0 0.0
    %2307 = vmatprep.subr.mxu0 0.0
    %2308 = vmatpush1.msra.mxu0 0.0
    %2309 = vmatprep.subr.mxu0 0.0
    %2310 = vmatpush1.msra.mxu0 0.0
    %2311 = vmatprep.subr.mxu0 0.0
    %2312 = vmatpush1.msra.mxu0 0.0
    %2313 = vmatprep.subr.mxu0 0.0
    %2314 = vmatpush1.msra.mxu0 0.0
    %2315 = vmatprep.subr.mxu0 0.0
    %2316 = vmatpush1.msra.mxu0 0.0
    %2317 = vmatprep.subr.mxu0 0.0
    %2318 = vmatpush1.msra.mxu0 0.0
    %2319 = vmatprep.subr.mxu0 0.0
    %2320 = vmatpush1.msra.mxu0 0.0
    %2321 = vmatprep.subr.mxu0 0.0
    %2322 = vmatpush1.msra.mxu0 0.0
    %2323 = vmatprep.subr.mxu0 0.0
    %2324 = vmatpush1.msra.mxu0 0.0
    %2325 = vmatprep.subr.mxu0 0.0
    %2326 = vmatpush1.msra.mxu0 0.0
    %2327 = vmatprep.subr.mxu0 0.0
    %2328 = vmatpush1.msra.mxu0 0.0
    %2329 = vmatprep.subr.mxu0 0.0
    %2330 = vmatpush1.msra.mxu0 0.0
    %2331 = vmatprep.subr.mxu0 0.0
    %2332 = vmatpush1.msra.mxu0 0.0
    %2333 = vmatprep.mubr.f32.mxu0 0.0
    %2334 = vmatmul.mubr.f32.gmra.mrb[0].mxu0 %v2267
    %v2335 = vpop.f32.mrb[0].mxu0
    %v2336 = vadd.f32 %v2261, %v2335
    %v2337 = vpop.f32.mrb[0].mxu0
    %2338 = vdwg.mxu0
    %v2339 = vadd.f32 %v2336, %v71
    %v2340 = vxor.u32 %v2339, 2147483648
    %v2341 = vmul.f32 %v2340, 1.442695
    %v2342 = vpow.pop %v2341
    %v2343 = vadd.f32 %v2342, 1.0
    %v2344 = vrcp.pop %v2343
    %v2345 = vmul.f32 1.0, %v2344
    %v2346 = vtanh.pop %v2339
    %v2347 = vmul.f32 %v2345, %v2083
    %2349 = vrot.lane.b32.xlu0 %v2346, 118
    %v2350 = vpop.permute.xlu0 %2349
    %v2352 = vmul.f32 %v2345, %v2350
    %2354 = vrot.lane.b32.xlu0 %v2352, 5
    %v2355 = vpop.permute.xlu0 %2354
    %v2357 = vadd.f32 %v2347, %v2355
    %v2358 = vtanh.pop %v2357
    %2360 = vrot.lane.b32.xlu0 %v2358, 10
    %v2361 = vpop.permute.xlu0 %2360
    %v2363 = vmul.f32 %v2345, %v2361
    %2365 = vrot.lane.b32.xlu0 %v2363, 113
    %v2366 = vpop.permute.xlu0 %2365
    %s2368 = scalar_lea.vmem [#allocation3], 10
    %2369 = vst.msk [vmem:[%s2368] sm:$0x3] %vm998, %v2366
    %v2370 = vld [vmem:[%s618] sm:$0x3]
    %2371 = vmatprep.subr.mxu0 0.0
    %2372 = vmatpush1.msra.mxu0 %v710
    %2373 = vmatprep.subr.mxu0 0.0
    %2374 = vmatpush1.msra.mxu0 0.0
    %2375 = vmatprep.subr.mxu0 0.0
    %2376 = vmatpush1.msra.mxu0 0.0
    %2377 = vmatprep.subr.mxu0 0.0
    %2378 = vmatpush1.msra.mxu0 0.0
    %2379 = vmatprep.subr.mxu0 0.0
    %2380 = vmatpush1.msra.mxu0 0.0
    %2381 = vmatprep.subr.mxu0 0.0
    %2382 = vmatpush1.msra.mxu0 0.0
    %2383 = vmatprep.subr.mxu0 0.0
    %2384 = vmatpush1.msra.mxu0 0.0
    %2385 = vmatprep.subr.mxu0 0.0
    %2386 = vmatpush1.msra.mxu0 0.0
    %2387 = vmatprep.subr.mxu0 0.0
    %2388 = vmatpush1.msra.mxu0 0.0
    %2389 = vmatprep.subr.mxu0 0.0
    %2390 = vmatpush1.msra.mxu0 0.0
    %2391 = vmatprep.subr.mxu0 0.0
    %2392 = vmatpush1.msra.mxu0 0.0
    %2393 = vmatprep.subr.mxu0 0.0
    %2394 = vmatpush1.msra.mxu0 0.0
    %2395 = vmatprep.subr.mxu0 0.0
    %2396 = vmatpush1.msra.mxu0 0.0
    %2397 = vmatprep.subr.mxu0 0.0
    %2398 = vmatpush1.msra.mxu0 0.0
    %2399 = vmatprep.subr.mxu0 0.0
    %2400 = vmatpush1.msra.mxu0 0.0
    %2401 = vmatprep.subr.mxu0 0.0
    %2402 = vmatpush1.msra.mxu0 0.0
    %2403 = vmatprep.subr.mxu0 0.0
    %2404 = vmatpush1.msra.mxu0 0.0
    %2405 = vmatprep.subr.mxu0 0.0
    %2406 = vmatpush1.msra.mxu0 0.0
    %2407 = vmatprep.subr.mxu0 0.0
    %2408 = vmatpush1.msra.mxu0 0.0
    %2409 = vmatprep.subr.mxu0 0.0
    %2410 = vmatpush1.msra.mxu0 0.0
    %2411 = vmatprep.subr.mxu0 0.0
    %2412 = vmatpush1.msra.mxu0 0.0
    %2413 = vmatprep.subr.mxu0 0.0
    %2414 = vmatpush1.msra.mxu0 0.0
    %2415 = vmatprep.subr.mxu0 0.0
    %2416 = vmatpush1.msra.mxu0 0.0
    %2417 = vmatprep.subr.mxu0 0.0
    %2418 = vmatpush1.msra.mxu0 0.0
    %2419 = vmatprep.subr.mxu0 0.0
    %2420 = vmatpush1.msra.mxu0 0.0
    %2421 = vmatprep.subr.mxu0 0.0
    %2422 = vmatpush1.msra.mxu0 0.0
    %2423 = vmatprep.subr.mxu0 0.0
    %2424 = vmatpush1.msra.mxu0 0.0
    %2425 = vmatprep.subr.mxu0 0.0
    %2426 = vmatpush1.msra.mxu0 0.0
    %2427 = vmatprep.subr.mxu0 0.0
    %2428 = vmatpush1.msra.mxu0 0.0
    %2429 = vmatprep.subr.mxu0 0.0
    %2430 = vmatpush1.msra.mxu0 0.0
    %2431 = vmatprep.subr.mxu0 0.0
    %2432 = vmatpush1.msra.mxu0 0.0
    %2433 = vmatprep.subr.mxu0 0.0
    %2434 = vmatpush1.msra.mxu0 0.0
    %2435 = vmatprep.mubr.f32.mxu0 0.0
    %2436 = vmatmul.mubr.f32.gmra.mrb[0].mxu0 %v2267
    %v2437 = vpop.f32.mrb[0].mxu0
    %v2438 = vadd.f32 0.0, %v2437
    %v2439 = vpop.f32.mrb[0].mxu0
    %2440 = vdwg.mxu0
    %v2441 = vadd.f32 %v2370, %v2438
    %v2442 = vxor.u32 %v2441, 2147483648
    %v2443 = vmul.f32 %v2442, 1.442695
    %v2444 = vpow.pop %v2443
    %v2445 = vadd.f32 %v2444, 1.0
    %v2446 = vrcp.pop %v2445
    %v2447 = vmul.f32 1.0, %v2446
    %v2448 = vtanh.pop %v2441
    %v2449 = vmul.f32 %v2447, %v2185
    %2451 = vrot.lane.b32.xlu0 %v2448, 118
    %v2452 = vpop.permute.xlu0 %2451
    %v2454 = vmul.f32 %v2447, %v2452
    %2456 = vrot.lane.b32.xlu0 %v2454, 5
    %v2457 = vpop.permute.xlu0 %2456
    %v2459 = vadd.f32 %v2449, %v2457
    %v2460 = vtanh.pop %v2459
    %2462 = vrot.lane.b32.xlu0 %v2460, 10
    %v2463 = vpop.permute.xlu0 %2462
    %v2465 = vmul.f32 %v2447, %v2463
    %v2466 = vsel %vm704, %v2366, 0
    %2468 = vmatprep.subr.mxu0 0.0
    %2469 = vmatpush1.msra.mxu0 %v815
    %2470 = vmatprep.subr.mxu0 0.0
    %2471 = vmatpush1.msra.mxu0 0.0
    %2472 = vmatprep.subr.mxu0 0.0
    %2473 = vmatpush1.msra.mxu0 0.0
    %2474 = vmatprep.subr.mxu0 0.0
    %2475 = vmatpush1.msra.mxu0 0.0
    %2476 = vmatprep.subr.mxu0 0.0
    %2477 = vmatpush1.msra.mxu0 0.0
    %2478 = vmatprep.subr.mxu0 0.0
    %2479 = vmatpush1.msra.mxu0 0.0
    %2480 = vmatprep.subr.mxu0 0.0
    %2481 = vmatpush1.msra.mxu0 0.0
    %2482 = vmatprep.subr.mxu0 0.0
    %2483 = vmatpush1.msra.mxu0 0.0
    %2484 = vmatprep.subr.mxu0 0.0
    %2485 = vmatpush1.msra.mxu0 0.0
    %2486 = vmatprep.subr.mxu0 0.0
    %2487 = vmatpush1.msra.mxu0 0.0
    %2488 = vmatprep.subr.mxu0 0.0
    %2489 = vmatpush1.msra.mxu0 0.0
    %2490 = vmatprep.subr.mxu0 0.0
    %2491 = vmatpush1.msra.mxu0 0.0
    %2492 = vmatprep.subr.mxu0 0.0
    %2493 = vmatpush1.msra.mxu0 0.0
    %2494 = vmatprep.subr.mxu0 0.0
    %2495 = vmatpush1.msra.mxu0 0.0
    %2496 = vmatprep.subr.mxu0 0.0
    %2497 = vmatpush1.msra.mxu0 0.0
    %2498 = vmatprep.subr.mxu0 0.0
    %2499 = vmatpush1.msra.mxu0 0.0
    %2500 = vmatprep.subr.mxu0 0.0
    %2501 = vmatpush1.msra.mxu0 0.0
    %2502 = vmatprep.subr.mxu0 0.0
    %2503 = vmatpush1.msra.mxu0 0.0
    %2504 = vmatprep.subr.mxu0 0.0
    %2505 = vmatpush1.msra.mxu0 0.0
    %2506 = vmatprep.subr.mxu0 0.0
    %2507 = vmatpush1.msra.mxu0 0.0
    %2508 = vmatprep.subr.mxu0 0.0
    %2509 = vmatpush1.msra.mxu0 0.0
    %2510 = vmatprep.subr.mxu0 0.0
    %2511 = vmatpush1.msra.mxu0 0.0
    %2512 = vmatprep.subr.mxu0 0.0
    %2513 = vmatpush1.msra.mxu0 0.0
    %2514 = vmatprep.subr.mxu0 0.0
    %2515 = vmatpush1.msra.mxu0 0.0
    %2516 = vmatprep.subr.mxu0 0.0
    %2517 = vmatpush1.msra.mxu0 0.0
    %2518 = vmatprep.subr.mxu0 0.0
    %2519 = vmatpush1.msra.mxu0 0.0
    %2520 = vmatprep.subr.mxu0 0.0
    %2521 = vmatpush1.msra.mxu0 0.0
    %2522 = vmatprep.subr.mxu0 0.0
    %2523 = vmatpush1.msra.mxu0 0.0
    %2524 = vmatprep.subr.mxu0 0.0
    %2525 = vmatpush1.msra.mxu0 0.0
    %2526 = vmatprep.subr.mxu0 0.0
    %2527 = vmatpush1.msra.mxu0 0.0
    %2528 = vmatprep.subr.mxu0 0.0
    %2529 = vmatpush1.msra.mxu0 0.0
    %2530 = vmatprep.subr.mxu0 0.0
    %2531 = vmatpush1.msra.mxu0 0.0
    %2532 = vmatprep.mubr.f32.mxu0 0.0
    %2533 = vmatmul.mubr.f32.gmra.mrb[0].mxu0 %v2466
    %v2534 = vpop.f32.mrb[0].mxu0
    %v2535 = vadd.f32 0.0, %v2534
    %v2536 = vpop.f32.mrb[0].mxu0
    %2537 = vdwg.mxu0
    %2539 = vrot.lane.b32.xlu0 %v2465, 113
    %v2540 = vpop.permute.xlu0 %2539
    %v2541 = vsel %vm704, %v2540, 0
    %2543 = vmatprep.subr.mxu0 0.0
    %2544 = vmatpush1.msra.mxu0 %v893
    %2545 = vmatprep.subr.mxu0 0.0
    %2546 = vmatpush1.msra.mxu0 0.0
    %2547 = vmatprep.subr.mxu0 0.0
    %2548 = vmatpush1.msra.mxu0 0.0
    %2549 = vmatprep.subr.mxu0 0.0
    %2550 = vmatpush1.msra.mxu0 0.0
    %2551 = vmatprep.subr.mxu0 0.0
    %2552 = vmatpush1.msra.mxu0 0.0
    %2553 = vmatprep.subr.mxu0 0.0
    %2554 = vmatpush1.msra.mxu0 0.0
    %2555 = vmatprep.subr.mxu0 0.0
    %2556 = vmatpush1.msra.mxu0 0.0
    %2557 = vmatprep.subr.mxu0 0.0
    %2558 = vmatpush1.msra.mxu0 0.0
    %2559 = vmatprep.subr.mxu0 0.0
    %2560 = vmatpush1.msra.mxu0 0.0
    %2561 = vmatprep.subr.mxu0 0.0
    %2562 = vmatpush1.msra.mxu0 0.0
    %2563 = vmatprep.subr.mxu0 0.0
    %2564 = vmatpush1.msra.mxu0 0.0
    %2565 = vmatprep.subr.mxu0 0.0
    %2566 = vmatpush1.msra.mxu0 0.0
    %2567 = vmatprep.subr.mxu0 0.0
    %2568 = vmatpush1.msra.mxu0 0.0
    %2569 = vmatprep.subr.mxu0 0.0
    %2570 = vmatpush1.msra.mxu0 0.0
    %2571 = vmatprep.subr.mxu0 0.0
    %2572 = vmatpush1.msra.mxu0 0.0
    %2573 = vmatprep.subr.mxu0 0.0
    %2574 = vmatpush1.msra.mxu0 0.0
    %2575 = vmatprep.subr.mxu0 0.0
    %2576 = vmatpush1.msra.mxu0 0.0
    %2577 = vmatprep.subr.mxu0 0.0
    %2578 = vmatpush1.msra.mxu0 0.0
    %2579 = vmatprep.subr.mxu0 0.0
    %2580 = vmatpush1.msra.mxu0 0.0
    %2581 = vmatprep.subr.mxu0 0.0
    %2582 = vmatpush1.msra.mxu0 0.0
    %2583 = vmatprep.subr.mxu0 0.0
    %2584 = vmatpush1.msra.mxu0 0.0
    %2585 = vmatprep.subr.mxu0 0.0
    %2586 = vmatpush1.msra.mxu0 0.0
    %2587 = vmatprep.subr.mxu0 0.0
    %2588 = vmatpush1.msra.mxu0 0.0
    %2589 = vmatprep.subr.mxu0 0.0
    %2590 = vmatpush1.msra.mxu0 0.0
    %2591 = vmatprep.subr.mxu0 0.0
    %2592 = vmatpush1.msra.mxu0 0.0
    %2593 = vmatprep.subr.mxu0 0.0
    %2594 = vmatpush1.msra.mxu0 0.0
    %2595 = vmatprep.subr.mxu0 0.0
    %2596 = vmatpush1.msra.mxu0 0.0
    %2597 = vmatprep.subr.mxu0 0.0
    %2598 = vmatpush1.msra.mxu0 0.0
    %2599 = vmatprep.subr.mxu0 0.0
    %2600 = vmatpush1.msra.mxu0 0.0
    %2601 = vmatprep.subr.mxu0 0.0
    %2602 = vmatpush1.msra.mxu0 0.0
    %2603 = vmatprep.subr.mxu0 0.0
    %2604 = vmatpush1.msra.mxu0 0.0
    %2605 = vmatprep.subr.mxu0 0.0
    %2606 = vmatpush1.msra.mxu0 0.0
    %2607 = vmatprep.mubr.f32.mxu0 0.0
    %2608 = vmatmul.mubr.f32.gmra.mrb[0].mxu0 %v2541
    %v2609 = vpop.f32.mrb[0].mxu0
    %v2610 = vadd.f32 %v2535, %v2609
    %v2611 = vpop.f32.mrb[0].mxu0
    %2612 = vdwg.mxu0
    %v2613 = vadd.f32 %v2610, %v71
    %v2614 = vxor.u32 %v2613, 2147483648
    %v2615 = vmul.f32 %v2614, 1.442695
    %v2616 = vpow.pop %v2615
    %v2617 = vadd.f32 %v2616, 1.0
    %v2618 = vrcp.pop %v2617
    %v2619 = vmul.f32 1.0, %v2618
    %v2620 = vtanh.pop %v2613
    %v2621 = vmul.f32 %v2619, %v2357
    %2623 = vrot.lane.b32.xlu0 %v2620, 118
    %v2624 = vpop.permute.xlu0 %2623
    %v2626 = vmul.f32 %v2619, %v2624
    %2628 = vrot.lane.b32.xlu0 %v2626, 5
    %v2629 = vpop.permute.xlu0 %2628
    %v2631 = vadd.f32 %v2621, %v2629
    %v2632 = vtanh.pop %v2631
    %2634 = vrot.lane.b32.xlu0 %v2632, 10
    %v2635 = vpop.permute.xlu0 %2634
    %v2637 = vmul.f32 %v2619, %v2635
    %2639 = vrot.lane.b32.xlu0 %v2637, 113
    %v2640 = vpop.permute.xlu0 %2639
    %s2642 = scalar_lea.vmem [#allocation3], 12
    %2643 = vst.msk [vmem:[%s2642] sm:$0x3] %vm998, %v2640
    %v2644 = vld [vmem:[%s695] sm:$0x3]
    %2645 = vmatprep.subr.mxu0 0.0
    %2646 = vmatpush1.msra.mxu0 %v710
    %2647 = vmatprep.subr.mxu0 0.0
    %2648 = vmatpush1.msra.mxu0 0.0
    %2649 = vmatprep.subr.mxu0 0.0
    %2650 = vmatpush1.msra.mxu0 0.0
    %2651 = vmatprep.subr.mxu0 0.0
    %2652 = vmatpush1.msra.mxu0 0.0
    %2653 = vmatprep.subr.mxu0 0.0
    %2654 = vmatpush1.msra.mxu0 0.0
    %2655 = vmatprep.subr.mxu0 0.0
    %2656 = vmatpush1.msra.mxu0 0.0
    %2657 = vmatprep.subr.mxu0 0.0
    %2658 = vmatpush1.msra.mxu0 0.0
    %2659 = vmatprep.subr.mxu0 0.0
    %2660 = vmatpush1.msra.mxu0 0.0
    %2661 = vmatprep.subr.mxu0 0.0
    %2662 = vmatpush1.msra.mxu0 0.0
    %2663 = vmatprep.subr.mxu0 0.0
    %2664 = vmatpush1.msra.mxu0 0.0
    %2665 = vmatprep.subr.mxu0 0.0
    %2666 = vmatpush1.msra.mxu0 0.0
    %2667 = vmatprep.subr.mxu0 0.0
    %2668 = vmatpush1.msra.mxu0 0.0
    %2669 = vmatprep.subr.mxu0 0.0
    %2670 = vmatpush1.msra.mxu0 0.0
    %2671 = vmatprep.subr.mxu0 0.0
    %2672 = vmatpush1.msra.mxu0 0.0
    %2673 = vmatprep.subr.mxu0 0.0
    %2674 = vmatpush1.msra.mxu0 0.0
    %2675 = vmatprep.subr.mxu0 0.0
    %2676 = vmatpush1.msra.mxu0 0.0
    %2677 = vmatprep.subr.mxu0 0.0
    %2678 = vmatpush1.msra.mxu0 0.0
    %2679 = vmatprep.subr.mxu0 0.0
    %2680 = vmatpush1.msra.mxu0 0.0
    %2681 = vmatprep.subr.mxu0 0.0
    %2682 = vmatpush1.msra.mxu0 0.0
    %2683 = vmatprep.subr.mxu0 0.0
    %2684 = vmatpush1.msra.mxu0 0.0
    %2685 = vmatprep.subr.mxu0 0.0
    %2686 = vmatpush1.msra.mxu0 0.0
    %2687 = vmatprep.subr.mxu0 0.0
    %2688 = vmatpush1.msra.mxu0 0.0
    %2689 = vmatprep.subr.mxu0 0.0
    %2690 = vmatpush1.msra.mxu0 0.0
    %2691 = vmatprep.subr.mxu0 0.0
    %2692 = vmatpush1.msra.mxu0 0.0
    %2693 = vmatprep.subr.mxu0 0.0
    %2694 = vmatpush1.msra.mxu0 0.0
    %2695 = vmatprep.subr.mxu0 0.0
    %2696 = vmatpush1.msra.mxu0 0.0
    %2697 = vmatprep.subr.mxu0 0.0
    %2698 = vmatpush1.msra.mxu0 0.0
    %2699 = vmatprep.subr.mxu0 0.0
    %2700 = vmatpush1.msra.mxu0 0.0
    %2701 = vmatprep.subr.mxu0 0.0
    %2702 = vmatpush1.msra.mxu0 0.0
    %2703 = vmatprep.subr.mxu0 0.0
    %2704 = vmatpush1.msra.mxu0 0.0
    %2705 = vmatprep.subr.mxu0 0.0
    %2706 = vmatpush1.msra.mxu0 0.0
    %2707 = vmatprep.subr.mxu0 0.0
    %2708 = vmatpush1.msra.mxu0 0.0
    %2709 = vmatprep.mubr.f32.mxu0 0.0
    %2710 = vmatmul.mubr.f32.gmra.mrb[0].mxu0 %v2541
    %v2711 = vpop.f32.mrb[0].mxu0
    %v2712 = vadd.f32 0.0, %v2711
    %v2713 = vpop.f32.mrb[0].mxu0
    %2714 = vdwg.mxu0
    %v2715 = vadd.f32 %v2644, %v2712
    %v2716 = vxor.u32 %v2715, 2147483648
    %v2717 = vmul.f32 %v2716, 1.442695
    %v2718 = vpow.pop %v2717
    %v2719 = vadd.f32 %v2718, 1.0
    %v2720 = vrcp.pop %v2719
    %v2721 = vmul.f32 1.0, %v2720
    %v2722 = vtanh.pop %v2715
    %v2723 = vmul.f32 %v2721, %v2459
    %2725 = vrot.lane.b32.xlu0 %v2722, 118
    %v2726 = vpop.permute.xlu0 %2725
    %v2728 = vmul.f32 %v2721, %v2726
    %2730 = vrot.lane.b32.xlu0 %v2728, 5
    %v2731 = vpop.permute.xlu0 %2730
    %v2733 = vadd.f32 %v2723, %v2731
    %v2734 = vtanh.pop %v2733
    %2736 = vrot.lane.b32.xlu0 %v2734, 10
    %v2737 = vpop.permute.xlu0 %2736
    %v2739 = vmul.f32 %v2721, %v2737
    %v2740 = vsel %vm704, %v2640, 0
    %2742 = vmatprep.subr.mxu0 0.0
    %2743 = vmatpush1.msra.mxu0 %v815
    %2744 = vmatprep.subr.mxu0 0.0
    %2745 = vmatpush1.msra.mxu0 0.0
    %2746 = vmatprep.subr.mxu0 0.0
    %2747 = vmatpush1.msra.mxu0 0.0
    %2748 = vmatprep.subr.mxu0 0.0
    %2749 = vmatpush1.msra.mxu0 0.0
    %2750 = vmatprep.subr.mxu0 0.0
    %2751 = vmatpush1.msra.mxu0 0.0
    %2752 = vmatprep.subr.mxu0 0.0
    %2753 = vmatpush1.msra.mxu0 0.0
    %2754 = vmatprep.subr.mxu0 0.0
    %2755 = vmatpush1.msra.mxu0 0.0
    %2756 = vmatprep.subr.mxu0 0.0
    %2757 = vmatpush1.msra.mxu0 0.0
    %2758 = vmatprep.subr.mxu0 0.0
    %2759 = vmatpush1.msra.mxu0 0.0
    %2760 = vmatprep.subr.mxu0 0.0
    %2761 = vmatpush1.msra.mxu0 0.0
    %2762 = vmatprep.subr.mxu0 0.0
    %2763 = vmatpush1.msra.mxu0 0.0
    %2764 = vmatprep.subr.mxu0 0.0
    %2765 = vmatpush1.msra.mxu0 0.0
    %2766 = vmatprep.subr.mxu0 0.0
    %2767 = vmatpush1.msra.mxu0 0.0
    %2768 = vmatprep.subr.mxu0 0.0
    %2769 = vmatpush1.msra.mxu0 0.0
    %2770 = vmatprep.subr.mxu0 0.0
    %2771 = vmatpush1.msra.mxu0 0.0
    %2772 = vmatprep.subr.mxu0 0.0
    %2773 = vmatpush1.msra.mxu0 0.0
    %2774 = vmatprep.subr.mxu0 0.0
    %2775 = vmatpush1.msra.mxu0 0.0
    %2776 = vmatprep.subr.mxu0 0.0
    %2777 = vmatpush1.msra.mxu0 0.0
    %2778 = vmatprep.subr.mxu0 0.0
    %2779 = vmatpush1.msra.mxu0 0.0
    %2780 = vmatprep.subr.mxu0 0.0
    %2781 = vmatpush1.msra.mxu0 0.0
    %2782 = vmatprep.subr.mxu0 0.0
    %2783 = vmatpush1.msra.mxu0 0.0
    %2784 = vmatprep.subr.mxu0 0.0
    %2785 = vmatpush1.msra.mxu0 0.0
    %2786 = vmatprep.subr.mxu0 0.0
    %2787 = vmatpush1.msra.mxu0 0.0
    %2788 = vmatprep.subr.mxu0 0.0
    %2789 = vmatpush1.msra.mxu0 0.0
    %2790 = vmatprep.subr.mxu0 0.0
    %2791 = vmatpush1.msra.mxu0 0.0
    %2792 = vmatprep.subr.mxu0 0.0
    %2793 = vmatpush1.msra.mxu0 0.0
    %2794 = vmatprep.subr.mxu0 0.0
    %2795 = vmatpush1.msra.mxu0 0.0
    %2796 = vmatprep.subr.mxu0 0.0
    %2797 = vmatpush1.msra.mxu0 0.0
    %2798 = vmatprep.subr.mxu0 0.0
    %2799 = vmatpush1.msra.mxu0 0.0
    %2800 = vmatprep.subr.mxu0 0.0
    %2801 = vmatpush1.msra.mxu0 0.0
    %2802 = vmatprep.subr.mxu0 0.0
    %2803 = vmatpush1.msra.mxu0 0.0
    %2804 = vmatprep.subr.mxu0 0.0
    %2805 = vmatpush1.msra.mxu0 0.0
    %2806 = vmatprep.mubr.f32.mxu0 0.0
    %2807 = vmatmul.mubr.f32.gmra.mrb[0].mxu0 %v2740
    %v2808 = vpop.f32.mrb[0].mxu0
    %v2809 = vadd.f32 0.0, %v2808
    %v2810 = vpop.f32.mrb[0].mxu0
    %2811 = vdwg.mxu0
    %2813 = vrot.lane.b32.xlu0 %v2739, 113
    %v2814 = vpop.permute.xlu0 %2813
    %v2815 = vsel %vm704, %v2814, 0
    %2817 = vmatprep.subr.mxu0 0.0
    %2818 = vmatpush1.msra.mxu0 %v893
    %2819 = vmatprep.subr.mxu0 0.0
    %2820 = vmatpush1.msra.mxu0 0.0
    %2821 = vmatprep.subr.mxu0 0.0
    %2822 = vmatpush1.msra.mxu0 0.0
    %2823 = vmatprep.subr.mxu0 0.0
    %2824 = vmatpush1.msra.mxu0 0.0
    %2825 = vmatprep.subr.mxu0 0.0
    %2826 = vmatpush1.msra.mxu0 0.0
    %2827 = vmatprep.subr.mxu0 0.0
    %2828 = vmatpush1.msra.mxu0 0.0
    %2829 = vmatprep.subr.mxu0 0.0
    %2830 = vmatpush1.msra.mxu0 0.0
    %2831 = vmatprep.subr.mxu0 0.0
    %2832 = vmatpush1.msra.mxu0 0.0
    %2833 = vmatprep.subr.mxu0 0.0
    %2834 = vmatpush1.msra.mxu0 0.0
    %2835 = vmatprep.subr.mxu0 0.0
    %2836 = vmatpush1.msra.mxu0 0.0
    %2837 = vmatprep.subr.mxu0 0.0
    %2838 = vmatpush1.msra.mxu0 0.0
    %2839 = vmatprep.subr.mxu0 0.0
    %2840 = vmatpush1.msra.mxu0 0.0
    %2841 = vmatprep.subr.mxu0 0.0
    %2842 = vmatpush1.msra.mxu0 0.0
    %2843 = vmatprep.subr.mxu0 0.0
    %2844 = vmatpush1.msra.mxu0 0.0
    %2845 = vmatprep.subr.mxu0 0.0
    %2846 = vmatpush1.msra.mxu0 0.0
    %2847 = vmatprep.subr.mxu0 0.0
    %2848 = vmatpush1.msra.mxu0 0.0
    %2849 = vmatprep.subr.mxu0 0.0
    %2850 = vmatpush1.msra.mxu0 0.0
    %2851 = vmatprep.subr.mxu0 0.0
    %2852 = vmatpush1.msra.mxu0 0.0
    %2853 = vmatprep.subr.mxu0 0.0
    %2854 = vmatpush1.msra.mxu0 0.0
    %2855 = vmatprep.subr.mxu0 0.0
    %2856 = vmatpush1.msra.mxu0 0.0
    %2857 = vmatprep.subr.mxu0 0.0
    %2858 = vmatpush1.msra.mxu0 0.0
    %2859 = vmatprep.subr.mxu0 0.0
    %2860 = vmatpush1.msra.mxu0 0.0
    %2861 = vmatprep.subr.mxu0 0.0
    %2862 = vmatpush1.msra.mxu0 0.0
    %2863 = vmatprep.subr.mxu0 0.0
    %2864 = vmatpush1.msra.mxu0 0.0
    %2865 = vmatprep.subr.mxu0 0.0
    %2866 = vmatpush1.msra.mxu0 0.0
    %2867 = vmatprep.subr.mxu0 0.0
    %2868 = vmatpush1.msra.mxu0 0.0
    %2869 = vmatprep.subr.mxu0 0.0
    %2870 = vmatpush1.msra.mxu0 0.0
    %2871 = vmatprep.subr.mxu0 0.0
    %2872 = vmatpush1.msra.mxu0 0.0
    %2873 = vmatprep.subr.mxu0 0.0
    %2874 = vmatpush1.msra.mxu0 0.0
    %2875 = vmatprep.subr.mxu0 0.0
    %2876 = vmatpush1.msra.mxu0 0.0
    %2877 = vmatprep.subr.mxu0 0.0
    %2878 = vmatpush1.msra.mxu0 0.0
    %2879 = vmatprep.subr.mxu0 0.0
    %2880 = vmatpush1.msra.mxu0 0.0
    %2881 = vmatprep.mubr.f32.mxu0 0.0
    %2882 = vmatmul.mubr.f32.gmra.mrb[0].mxu0 %v2815
    %v2883 = vpop.f32.mrb[0].mxu0
    %v2884 = vadd.f32 %v2809, %v2883
    %v2885 = vpop.f32.mrb[0].mxu0
    %2886 = vdwg.mxu0
    %v2887 = vadd.f32 %v2884, %v71
    %v2888 = vxor.u32 %v2887, 2147483648
    %v2889 = vmul.f32 %v2888, 1.442695
    %v2890 = vpow.pop %v2889
    %v2891 = vadd.f32 %v2890, 1.0
    %v2892 = vrcp.pop %v2891
    %v2893 = vmul.f32 1.0, %v2892
    %v2894 = vtanh.pop %v2887
    %v2895 = vmul.f32 %v2893, %v2631
    %2897 = vrot.lane.b32.xlu0 %v2894, 118
    %v2898 = vpop.permute.xlu0 %2897
    %v2900 = vmul.f32 %v2893, %v2898
    %2902 = vrot.lane.b32.xlu0 %v2900, 5
    %v2903 = vpop.permute.xlu0 %2902
    %v2905 = vadd.f32 %v2895, %v2903
    %v2906 = vtanh.pop %v2905
    %2908 = vrot.lane.b32.xlu0 %v2906, 10
    %v2909 = vpop.permute.xlu0 %2908
    %v2911 = vmul.f32 %v2893, %v2909
    %2913 = vrot.lane.b32.xlu0 %v2911, 113
    %v2914 = vpop.permute.xlu0 %2913
    %s2916 = scalar_lea.vmem [#allocation3], 14
    %2917 = vst.msk [vmem:[%s2916] sm:$0x3] %vm998, %v2914
    %2919 = vst.msk [vmem:[#allocation7] sm:$0x3] %vm998, %v2814
    %s2920 = scalar_lea.vmem [#allocation7], 2
    %2921 = vst.msk [vmem:[%s2920] sm:$0x3] %vm998, %v2914
    %2923 = vrot.lane.b32.xlu0 %v2733, 123
    %v2924 = vpop.permute.xlu0 %2923
    %2926 = vst.msk [vmem:[#allocation8] sm:$0x3] %vm998, %v2924
    %2928 = vrot.lane.b32.xlu0 %v2905, 123
    %v2929 = vpop.permute.xlu0 %2928
    %s2931 = scalar_lea.vmem [#allocation8], 2
    %2932 = vst.msk [vmem:[%s2931] sm:$0x3] %vm998, %v2929
    %v2933 = vld [vmem:[#allocation3] sm:$0x3]
    %v2935 = vsel %vm704, %v2933, 0
    %v2938 = vsel %vm708, %v73, 0
    %2940 = vmatprep.subr.mxu0 0.0
    %2941 = vmatpush1.msra.mxu0 %v2938
    %2942 = vmatprep.subr.mxu0 0.0
    %2943 = vmatpush1.msra.mxu0 0.0
    %2944 = vmatprep.subr.mxu0 0.0
    %2945 = vmatpush1.msra.mxu0 0.0
    %2946 = vmatprep.subr.mxu0 0.0
    %2947 = vmatpush1.msra.mxu0 0.0
    %2948 = vmatprep.subr.mxu0 0.0
    %2949 = vmatpush1.msra.mxu0 0.0
    %2950 = vmatprep.subr.mxu0 0.0
    %2951 = vmatpush1.msra.mxu0 0.0
    %2952 = vmatprep.subr.mxu0 0.0
    %2953 = vmatpush1.msra.mxu0 0.0
    %2954 = vmatprep.subr.mxu0 0.0
    %2955 = vmatpush1.msra.mxu0 0.0
    %2956 = vmatprep.subr.mxu0 0.0
    %2957 = vmatpush1.msra.mxu0 0.0
    %2958 = vmatprep.subr.mxu0 0.0
    %2959 = vmatpush1.msra.mxu0 0.0
    %2960 = vmatprep.subr.mxu0 0.0
    %2961 = vmatpush1.msra.mxu0 0.0
    %2962 = vmatprep.subr.mxu0 0.0
    %2963 = vmatpush1.msra.mxu0 0.0
    %2964 = vmatprep.subr.mxu0 0.0
    %2965 = vmatpush1.msra.mxu0 0.0
    %2966 = vmatprep.subr.mxu0 0.0
    %2967 = vmatpush1.msra.mxu0 0.0
    %2968 = vmatprep.subr.mxu0 0.0
    %2969 = vmatpush1.msra.mxu0 0.0
    %2970 = vmatprep.subr.mxu0 0.0
    %2971 = vmatpush1.msra.mxu0 0.0
    %2972 = vmatprep.subr.mxu0 0.0
    %2973 = vmatpush1.msra.mxu0 0.0
    %2974 = vmatprep.subr.mxu0 0.0
    %2975 = vmatpush1.msra.mxu0 0.0
    %2976 = vmatprep.subr.mxu0 0.0
    %2977 = vmatpush1.msra.mxu0 0.0
    %2978 = vmatprep.subr.mxu0 0.0
    %2979 = vmatpush1.msra.mxu0 0.0
    %2980 = vmatprep.subr.mxu0 0.0
    %2981 = vmatpush1.msra.mxu0 0.0
    %2982 = vmatprep.subr.mxu0 0.0
    %2983 = vmatpush1.msra.mxu0 0.0
    %2984 = vmatprep.subr.mxu0 0.0
    %2985 = vmatpush1.msra.mxu0 0.0
    %2986 = vmatprep.subr.mxu0 0.0
    %2987 = vmatpush1.msra.mxu0 0.0
    %2988 = vmatprep.subr.mxu0 0.0
    %2989 = vmatpush1.msra.mxu0 0.0
    %2990 = vmatprep.subr.mxu0 0.0
    %2991 = vmatpush1.msra.mxu0 0.0
    %2992 = vmatprep.subr.mxu0 0.0
    %2993 = vmatpush1.msra.mxu0 0.0
    %2994 = vmatprep.subr.mxu0 0.0
    %2995 = vmatpush1.msra.mxu0 0.0
    %2996 = vmatprep.subr.mxu0 0.0
    %2997 = vmatpush1.msra.mxu0 0.0
    %2998 = vmatprep.subr.mxu0 0.0
    %2999 = vmatpush1.msra.mxu0 0.0
    %3000 = vmatprep.subr.mxu0 0.0
    %3001 = vmatpush1.msra.mxu0 0.0
    %3002 = vmatprep.subr.mxu0 0.0
    %3003 = vmatpush1.msra.mxu0 0.0
    %3004 = vmatprep.mubr.f32.mxu0 0.0
    %3005 = vmatmul.mubr.f32.gmra.mrb[0].mxu0 %v2935
    %v3006 = vpop.f32.mrb[0].mxu0
    %v3007 = vadd.f32 %v79, %v3006
    %v3008 = vpop.f32.mrb[0].mxu0
    %3009 = vdwg.mxu0
    %vm3010 = vcmask 58368
    %3011 = vst.msk [vmem:[%s11] sm:$0x3] %vm3010, %v3007
    %v3012 = vld [vmem:[%s1272] sm:$0x3]
    %v3014 = vsel %vm704, %v3012, 0
    %3016 = vmatprep.subr.mxu0 0.0
    %3017 = vmatpush1.msra.mxu0 %v2938
    %3018 = vmatprep.subr.mxu0 0.0
    %3019 = vmatpush1.msra.mxu0 0.0
    %3020 = vmatprep.subr.mxu0 0.0
    %3021 = vmatpush1.msra.mxu0 0.0
    %3022 = vmatprep.subr.mxu0 0.0
    %3023 = vmatpush1.msra.mxu0 0.0
    %3024 = vmatprep.subr.mxu0 0.0
    %3025 = vmatpush1.msra.mxu0 0.0
    %3026 = vmatprep.subr.mxu0 0.0
    %3027 = vmatpush1.msra.mxu0 0.0
    %3028 = vmatprep.subr.mxu0 0.0
    %3029 = vmatpush1.msra.mxu0 0.0
    %3030 = vmatprep.subr.mxu0 0.0
    %3031 = vmatpush1.msra.mxu0 0.0
    %3032 = vmatprep.subr.mxu0 0.0
    %3033 = vmatpush1.msra.mxu0 0.0
    %3034 = vmatprep.subr.mxu0 0.0
    %3035 = vmatpush1.msra.mxu0 0.0
    %3036 = vmatprep.subr.mxu0 0.0
    %3037 = vmatpush1.msra.mxu0 0.0
    %3038 = vmatprep.subr.mxu0 0.0
    %3039 = vmatpush1.msra.mxu0 0.0
    %3040 = vmatprep.subr.mxu0 0.0
    %3041 = vmatpush1.msra.mxu0 0.0
    %3042 = vmatprep.subr.mxu0 0.0
    %3043 = vmatpush1.msra.mxu0 0.0
    %3044 = vmatprep.subr.mxu0 0.0
    %3045 = vmatpush1.msra.mxu0 0.0
    %3046 = vmatprep.subr.mxu0 0.0
    %3047 = vmatpush1.msra.mxu0 0.0
    %3048 = vmatprep.subr.mxu0 0.0
    %3049 = vmatpush1.msra.mxu0 0.0
    %3050 = vmatprep.subr.mxu0 0.0
    %3051 = vmatpush1.msra.mxu0 0.0
    %3052 = vmatprep.subr.mxu0 0.0
    %3053 = vmatpush1.msra.mxu0 0.0
    %3054 = vmatprep.subr.mxu0 0.0
    %3055 = vmatpush1.msra.mxu0 0.0
    %3056 = vmatprep.subr.mxu0 0.0
    %3057 = vmatpush1.msra.mxu0 0.0
    %3058 = vmatprep.subr.mxu0 0.0
    %3059 = vmatpush1.msra.mxu0 0.0
    %3060 = vmatprep.subr.mxu0 0.0
    %3061 = vmatpush1.msra.mxu0 0.0
    %3062 = vmatprep.subr.mxu0 0.0
    %3063 = vmatpush1.msra.mxu0 0.0
    %3064 = vmatprep.subr.mxu0 0.0
    %3065 = vmatpush1.msra.mxu0 0.0
    %3066 = vmatprep.subr.mxu0 0.0
    %3067 = vmatpush1.msra.mxu0 0.0
    %3068 = vmatprep.subr.mxu0 0.0
    %3069 = vmatpush1.msra.mxu0 0.0
    %3070 = vmatprep.subr.mxu0 0.0
    %3071 = vmatpush1.msra.mxu0 0.0
    %3072 = vmatprep.subr.mxu0 0.0
    %3073 = vmatpush1.msra.mxu0 0.0
    %3074 = vmatprep.subr.mxu0 0.0
    %3075 = vmatpush1.msra.mxu0 0.0
    %3076 = vmatprep.subr.mxu0 0.0
    %3077 = vmatpush1.msra.mxu0 0.0
    %3078 = vmatprep.subr.mxu0 0.0
    %3079 = vmatpush1.msra.mxu0 0.0
    %3080 = vmatprep.mubr.f32.mxu0 0.0
    %3081 = vmatmul.mubr.f32.gmra.mrb[0].mxu0 %v3014
    %v3082 = vpop.f32.mrb[0].mxu0
    %v3083 = vadd.f32 %v79, %v3082
    %v3084 = vpop.f32.mrb[0].mxu0
    %3085 = vdwg.mxu0
    %s3086 = scalar_lea.vmem %s11, 2
    %3087 = vst.msk [vmem:[%s3086] sm:$0x3] %vm3010, %v3083
    %v3088 = vld [vmem:[%s1546] sm:$0x3]
    %v3090 = vsel %vm704, %v3088, 0
    %3092 = vmatprep.subr.mxu0 0.0
    %3093 = vmatpush1.msra.mxu0 %v2938
    %3094 = vmatprep.subr.mxu0 0.0
    %3095 = vmatpush1.msra.mxu0 0.0
    %3096 = vmatprep.subr.mxu0 0.0
    %3097 = vmatpush1.msra.mxu0 0.0
    %3098 = vmatprep.subr.mxu0 0.0
    %3099 = vmatpush1.msra.mxu0 0.0
    %3100 = vmatprep.subr.mxu0 0.0
    %3101 = vmatpush1.msra.mxu0 0.0
    %3102 = vmatprep.subr.mxu0 0.0
    %3103 = vmatpush1.msra.mxu0 0.0
    %3104 = vmatprep.subr.mxu0 0.0
    %3105 = vmatpush1.msra.mxu0 0.0
    %3106 = vmatprep.subr.mxu0 0.0
    %3107 = vmatpush1.msra.mxu0 0.0
    %3108 = vmatprep.subr.mxu0 0.0
    %3109 = vmatpush1.msra.mxu0 0.0
    %3110 = vmatprep.subr.mxu0 0.0
    %3111 = vmatpush1.msra.mxu0 0.0
    %3112 = vmatprep.subr.mxu0 0.0
    %3113 = vmatpush1.msra.mxu0 0.0
    %3114 = vmatprep.subr.mxu0 0.0
    %3115 = vmatpush1.msra.mxu0 0.0
    %3116 = vmatprep.subr.mxu0 0.0
    %3117 = vmatpush1.msra.mxu0 0.0
    %3118 = vmatprep.subr.mxu0 0.0
    %3119 = vmatpush1.msra.mxu0 0.0
    %3120 = vmatprep.subr.mxu0 0.0
    %3121 = vmatpush1.msra.mxu0 0.0
    %3122 = vmatprep.subr.mxu0 0.0
    %3123 = vmatpush1.msra.mxu0 0.0
    %3124 = vmatprep.subr.mxu0 0.0
    %3125 = vmatpush1.msra.mxu0 0.0
    %3126 = vmatprep.subr.mxu0 0.0
    %3127 = vmatpush1.msra.mxu0 0.0
    %3128 = vmatprep.subr.mxu0 0.0
    %3129 = vmatpush1.msra.mxu0 0.0
    %3130 = vmatprep.subr.mxu0 0.0
    %3131 = vmatpush1.msra.mxu0 0.0
    %3132 = vmatprep.subr.mxu0 0.0
    %3133 = vmatpush1.msra.mxu0 0.0
    %3134 = vmatprep.subr.mxu0 0.0
    %3135 = vmatpush1.msra.mxu0 0.0
    %3136 = vmatprep.subr.mxu0 0.0
    %3137 = vmatpush1.msra.mxu0 0.0
    %3138 = vmatprep.subr.mxu0 0.0
    %3139 = vmatpush1.msra.mxu0 0.0
    %3140 = vmatprep.subr.mxu0 0.0
    %3141 = vmatpush1.msra.mxu0 0.0
    %3142 = vmatprep.subr.mxu0 0.0
    %3143 = vmatpush1.msra.mxu0 0.0
    %3144 = vmatprep.subr.mxu0 0.0
    %3145 = vmatpush1.msra.mxu0 0.0
    %3146 = vmatprep.subr.mxu0 0.0
    %3147 = vmatpush1.msra.mxu0 0.0
    %3148 = vmatprep.subr.mxu0 0.0
    %3149 = vmatpush1.msra.mxu0 0.0
    %3150 = vmatprep.subr.mxu0 0.0
    %3151 = vmatpush1.msra.mxu0 0.0
    %3152 = vmatprep.subr.mxu0 0.0
    %3153 = vmatpush1.msra.mxu0 0.0
    %3154 = vmatprep.subr.mxu0 0.0
    %3155 = vmatpush1.msra.mxu0 0.0
    %3156 = vmatprep.mubr.f32.mxu0 0.0
    %3157 = vmatmul.mubr.f32.gmra.mrb[0].mxu0 %v3090
    %v3158 = vpop.f32.mrb[0].mxu0
    %v3159 = vadd.f32 %v79, %v3158
    %v3160 = vpop.f32.mrb[0].mxu0
    %3161 = vdwg.mxu0
    %s3162 = scalar_lea.vmem %s11, 4
    %3163 = vst.msk [vmem:[%s3162] sm:$0x3] %vm3010, %v3159
    %v3164 = vld [vmem:[%s1820] sm:$0x3]
    %v3166 = vsel %vm704, %v3164, 0
    %3168 = vmatprep.subr.mxu0 0.0
    %3169 = vmatpush1.msra.mxu0 %v2938
    %3170 = vmatprep.subr.mxu0 0.0
    %3171 = vmatpush1.msra.mxu0 0.0
    %3172 = vmatprep.subr.mxu0 0.0
    %3173 = vmatpush1.msra.mxu0 0.0
    %3174 = vmatprep.subr.mxu0 0.0
    %3175 = vmatpush1.msra.mxu0 0.0
    %3176 = vmatprep.subr.mxu0 0.0
    %3177 = vmatpush1.msra.mxu0 0.0
    %3178 = vmatprep.subr.mxu0 0.0
    %3179 = vmatpush1.msra.mxu0 0.0
    %3180 = vmatprep.subr.mxu0 0.0
    %3181 = vmatpush1.msra.mxu0 0.0
    %3182 = vmatprep.subr.mxu0 0.0
    %3183 = vmatpush1.msra.mxu0 0.0
    %3184 = vmatprep.subr.mxu0 0.0
    %3185 = vmatpush1.msra.mxu0 0.0
    %3186 = vmatprep.subr.mxu0 0.0
    %3187 = vmatpush1.msra.mxu0 0.0
    %3188 = vmatprep.subr.mxu0 0.0
    %3189 = vmatpush1.msra.mxu0 0.0
    %3190 = vmatprep.subr.mxu0 0.0
    %3191 = vmatpush1.msra.mxu0 0.0
    %3192 = vmatprep.subr.mxu0 0.0
    %3193 = vmatpush1.msra.mxu0 0.0
    %3194 = vmatprep.subr.mxu0 0.0
    %3195 = vmatpush1.msra.mxu0 0.0
    %3196 = vmatprep.subr.mxu0 0.0
    %3197 = vmatpush1.msra.mxu0 0.0
    %3198 = vmatprep.subr.mxu0 0.0
    %3199 = vmatpush1.msra.mxu0 0.0
    %3200 = vmatprep.subr.mxu0 0.0
    %3201 = vmatpush1.msra.mxu0 0.0
    %3202 = vmatprep.subr.mxu0 0.0
    %3203 = vmatpush1.msra.mxu0 0.0
    %3204 = vmatprep.subr.mxu0 0.0
    %3205 = vmatpush1.msra.mxu0 0.0
    %3206 = vmatprep.subr.mxu0 0.0
    %3207 = vmatpush1.msra.mxu0 0.0
    %3208 = vmatprep.subr.mxu0 0.0
    %3209 = vmatpush1.msra.mxu0 0.0
    %3210 = vmatprep.subr.mxu0 0.0
    %3211 = vmatpush1.msra.mxu0 0.0
    %3212 = vmatprep.subr.mxu0 0.0
    %3213 = vmatpush1.msra.mxu0 0.0
    %3214 = vmatprep.subr.mxu0 0.0
    %3215 = vmatpush1.msra.mxu0 0.0
    %3216 = vmatprep.subr.mxu0 0.0
    %3217 = vmatpush1.msra.mxu0 0.0
    %3218 = vmatprep.subr.mxu0 0.0
    %3219 = vmatpush1.msra.mxu0 0.0
    %3220 = vmatprep.subr.mxu0 0.0
    %3221 = vmatpush1.msra.mxu0 0.0
    %3222 = vmatprep.subr.mxu0 0.0
    %3223 = vmatpush1.msra.mxu0 0.0
    %3224 = vmatprep.subr.mxu0 0.0
    %3225 = vmatpush1.msra.mxu0 0.0
    %3226 = vmatprep.subr.mxu0 0.0
    %3227 = vmatpush1.msra.mxu0 0.0
    %3228 = vmatprep.subr.mxu0 0.0
    %3229 = vmatpush1.msra.mxu0 0.0
    %3230 = vmatprep.subr.mxu0 0.0
    %3231 = vmatpush1.msra.mxu0 0.0
    %3232 = vmatprep.mubr.f32.mxu0 0.0
    %3233 = vmatmul.mubr.f32.gmra.mrb[0].mxu0 %v3166
    %v3234 = vpop.f32.mrb[0].mxu0
    %v3235 = vadd.f32 %v79, %v3234
    %v3236 = vpop.f32.mrb[0].mxu0
    %3237 = vdwg.mxu0
    %s3238 = scalar_lea.vmem %s11, 6
    %3239 = vst.msk [vmem:[%s3238] sm:$0x3] %vm3010, %v3235
    %v3240 = vld [vmem:[%s2094] sm:$0x3]
    %v3242 = vsel %vm704, %v3240, 0
    %3244 = vmatprep.subr.mxu0 0.0
    %3245 = vmatpush1.msra.mxu0 %v2938
    %3246 = vmatprep.subr.mxu0 0.0
    %3247 = vmatpush1.msra.mxu0 0.0
    %3248 = vmatprep.subr.mxu0 0.0
    %3249 = vmatpush1.msra.mxu0 0.0
    %3250 = vmatprep.subr.mxu0 0.0
    %3251 = vmatpush1.msra.mxu0 0.0
    %3252 = vmatprep.subr.mxu0 0.0
    %3253 = vmatpush1.msra.mxu0 0.0
    %3254 = vmatprep.subr.mxu0 0.0
    %3255 = vmatpush1.msra.mxu0 0.0
    %3256 = vmatprep.subr.mxu0 0.0
    %3257 = vmatpush1.msra.mxu0 0.0
    %3258 = vmatprep.subr.mxu0 0.0
    %3259 = vmatpush1.msra.mxu0 0.0
    %3260 = vmatprep.subr.mxu0 0.0
    %3261 = vmatpush1.msra.mxu0 0.0
    %3262 = vmatprep.subr.mxu0 0.0
    %3263 = vmatpush1.msra.mxu0 0.0
    %3264 = vmatprep.subr.mxu0 0.0
    %3265 = vmatpush1.msra.mxu0 0.0
    %3266 = vmatprep.subr.mxu0 0.0
    %3267 = vmatpush1.msra.mxu0 0.0
    %3268 = vmatprep.subr.mxu0 0.0
    %3269 = vmatpush1.msra.mxu0 0.0
    %3270 = vmatprep.subr.mxu0 0.0
    %3271 = vmatpush1.msra.mxu0 0.0
    %3272 = vmatprep.subr.mxu0 0.0
    %3273 = vmatpush1.msra.mxu0 0.0
    %3274 = vmatprep.subr.mxu0 0.0
    %3275 = vmatpush1.msra.mxu0 0.0
    %3276 = vmatprep.subr.mxu0 0.0
    %3277 = vmatpush1.msra.mxu0 0.0
    %3278 = vmatprep.subr.mxu0 0.0
    %3279 = vmatpush1.msra.mxu0 0.0
    %3280 = vmatprep.subr.mxu0 0.0
    %3281 = vmatpush1.msra.mxu0 0.0
    %3282 = vmatprep.subr.mxu0 0.0
    %3283 = vmatpush1.msra.mxu0 0.0
    %3284 = vmatprep.subr.mxu0 0.0
    %3285 = vmatpush1.msra.mxu0 0.0
    %3286 = vmatprep.subr.mxu0 0.0
    %3287 = vmatpush1.msra.mxu0 0.0
    %3288 = vmatprep.subr.mxu0 0.0
    %3289 = vmatpush1.msra.mxu0 0.0
    %3290 = vmatprep.subr.mxu0 0.0
    %3291 = vmatpush1.msra.mxu0 0.0
    %3292 = vmatprep.subr.mxu0 0.0
    %3293 = vmatpush1.msra.mxu0 0.0
    %3294 = vmatprep.subr.mxu0 0.0
    %3295 = vmatpush1.msra.mxu0 0.0
    %3296 = vmatprep.subr.mxu0 0.0
    %3297 = vmatpush1.msra.mxu0 0.0
    %3298 = vmatprep.subr.mxu0 0.0
    %3299 = vmatpush1.msra.mxu0 0.0
    %3300 = vmatprep.subr.mxu0 0.0
    %3301 = vmatpush1.msra.mxu0 0.0
    %3302 = vmatprep.subr.mxu0 0.0
    %3303 = vmatpush1.msra.mxu0 0.0
    %3304 = vmatprep.subr.mxu0 0.0
    %3305 = vmatpush1.msra.mxu0 0.0
    %3306 = vmatprep.subr.mxu0 0.0
    %3307 = vmatpush1.msra.mxu0 0.0
    %3308 = vmatprep.mubr.f32.mxu0 0.0
    %3309 = vmatmul.mubr.f32.gmra.mrb[0].mxu0 %v3242
    %v3310 = vpop.f32.mrb[0].mxu0
    %v3311 = vadd.f32 %v79, %v3310
    %v3312 = vpop.f32.mrb[0].mxu0
    %3313 = vdwg.mxu0
    %s3314 = scalar_lea.vmem %s11, 8
    %3315 = vst.msk [vmem:[%s3314] sm:$0x3] %vm3010, %v3311
    %v3316 = vld [vmem:[%s2368] sm:$0x3]
    %v3318 = vsel %vm704, %v3316, 0
    %3320 = vmatprep.subr.mxu0 0.0
    %3321 = vmatpush1.msra.mxu0 %v2938
    %3322 = vmatprep.subr.mxu0 0.0
    %3323 = vmatpush1.msra.mxu0 0.0
    %3324 = vmatprep.subr.mxu0 0.0
    %3325 = vmatpush1.msra.mxu0 0.0
    %3326 = vmatprep.subr.mxu0 0.0
    %3327 = vmatpush1.msra.mxu0 0.0
    %3328 = vmatprep.subr.mxu0 0.0
    %3329 = vmatpush1.msra.mxu0 0.0
    %3330 = vmatprep.subr.mxu0 0.0
    %3331 = vmatpush1.msra.mxu0 0.0
    %3332 = vmatprep.subr.mxu0 0.0
    %3333 = vmatpush1.msra.mxu0 0.0
    %3334 = vmatprep.subr.mxu0 0.0
    %3335 = vmatpush1.msra.mxu0 0.0
    %3336 = vmatprep.subr.mxu0 0.0
    %3337 = vmatpush1.msra.mxu0 0.0
    %3338 = vmatprep.subr.mxu0 0.0
    %3339 = vmatpush1.msra.mxu0 0.0
    %3340 = vmatprep.subr.mxu0 0.0
    %3341 = vmatpush1.msra.mxu0 0.0
    %3342 = vmatprep.subr.mxu0 0.0
    %3343 = vmatpush1.msra.mxu0 0.0
    %3344 = vmatprep.subr.mxu0 0.0
    %3345 = vmatpush1.msra.mxu0 0.0
    %3346 = vmatprep.subr.mxu0 0.0
    %3347 = vmatpush1.msra.mxu0 0.0
    %3348 = vmatprep.subr.mxu0 0.0
    %3349 = vmatpush1.msra.mxu0 0.0
    %3350 = vmatprep.subr.mxu0 0.0
    %3351 = vmatpush1.msra.mxu0 0.0
    %3352 = vmatprep.subr.mxu0 0.0
    %3353 = vmatpush1.msra.mxu0 0.0
    %3354 = vmatprep.subr.mxu0 0.0
    %3355 = vmatpush1.msra.mxu0 0.0
    %3356 = vmatprep.subr.mxu0 0.0
    %3357 = vmatpush1.msra.mxu0 0.0
    %3358 = vmatprep.subr.mxu0 0.0
    %3359 = vmatpush1.msra.mxu0 0.0
    %3360 = vmatprep.subr.mxu0 0.0
    %3361 = vmatpush1.msra.mxu0 0.0
    %3362 = vmatprep.subr.mxu0 0.0
    %3363 = vmatpush1.msra.mxu0 0.0
    %3364 = vmatprep.subr.mxu0 0.0
    %3365 = vmatpush1.msra.mxu0 0.0
    %3366 = vmatprep.subr.mxu0 0.0
    %3367 = vmatpush1.msra.mxu0 0.0
    %3368 = vmatprep.subr.mxu0 0.0
    %3369 = vmatpush1.msra.mxu0 0.0
    %3370 = vmatprep.subr.mxu0 0.0
    %3371 = vmatpush1.msra.mxu0 0.0
    %3372 = vmatprep.subr.mxu0 0.0
    %3373 = vmatpush1.msra.mxu0 0.0
    %3374 = vmatprep.subr.mxu0 0.0
    %3375 = vmatpush1.msra.mxu0 0.0
    %3376 = vmatprep.subr.mxu0 0.0
    %3377 = vmatpush1.msra.mxu0 0.0
    %3378 = vmatprep.subr.mxu0 0.0
    %3379 = vmatpush1.msra.mxu0 0.0
    %3380 = vmatprep.subr.mxu0 0.0
    %3381 = vmatpush1.msra.mxu0 0.0
    %3382 = vmatprep.subr.mxu0 0.0
    %3383 = vmatpush1.msra.mxu0 0.0
    %3384 = vmatprep.mubr.f32.mxu0 0.0
    %3385 = vmatmul.mubr.f32.gmra.mrb[0].mxu0 %v3318
    %v3386 = vpop.f32.mrb[0].mxu0
    %v3387 = vadd.f32 %v79, %v3386
    %v3388 = vpop.f32.mrb[0].mxu0
    %3389 = vdwg.mxu0
    %s3390 = scalar_lea.vmem %s11, 10
    %3391 = vst.msk [vmem:[%s3390] sm:$0x3] %vm3010, %v3387
    %v3392 = vld [vmem:[%s2642] sm:$0x3]
    %v3394 = vsel %vm704, %v3392, 0
    %3396 = vmatprep.subr.mxu0 0.0
    %3397 = vmatpush1.msra.mxu0 %v2938
    %3398 = vmatprep.subr.mxu0 0.0
    %3399 = vmatpush1.msra.mxu0 0.0
    %3400 = vmatprep.subr.mxu0 0.0
    %3401 = vmatpush1.msra.mxu0 0.0
    %3402 = vmatprep.subr.mxu0 0.0
    %3403 = vmatpush1.msra.mxu0 0.0
    %3404 = vmatprep.subr.mxu0 0.0
    %3405 = vmatpush1.msra.mxu0 0.0
    %3406 = vmatprep.subr.mxu0 0.0
    %3407 = vmatpush1.msra.mxu0 0.0
    %3408 = vmatprep.subr.mxu0 0.0
    %3409 = vmatpush1.msra.mxu0 0.0
    %3410 = vmatprep.subr.mxu0 0.0
    %3411 = vmatpush1.msra.mxu0 0.0
    %3412 = vmatprep.subr.mxu0 0.0
    %3413 = vmatpush1.msra.mxu0 0.0
    %3414 = vmatprep.subr.mxu0 0.0
    %3415 = vmatpush1.msra.mxu0 0.0
    %3416 = vmatprep.subr.mxu0 0.0
    %3417 = vmatpush1.msra.mxu0 0.0
    %3418 = vmatprep.subr.mxu0 0.0
    %3419 = vmatpush1.msra.mxu0 0.0
    %3420 = vmatprep.subr.mxu0 0.0
    %3421 = vmatpush1.msra.mxu0 0.0
    %3422 = vmatprep.subr.mxu0 0.0
    %3423 = vmatpush1.msra.mxu0 0.0
    %3424 = vmatprep.subr.mxu0 0.0
    %3425 = vmatpush1.msra.mxu0 0.0
    %3426 = vmatprep.subr.mxu0 0.0
    %3427 = vmatpush1.msra.mxu0 0.0
    %3428 = vmatprep.subr.mxu0 0.0
    %3429 = vmatpush1.msra.mxu0 0.0
    %3430 = vmatprep.subr.mxu0 0.0
    %3431 = vmatpush1.msra.mxu0 0.0
    %3432 = vmatprep.subr.mxu0 0.0
    %3433 = vmatpush1.msra.mxu0 0.0
    %3434 = vmatprep.subr.mxu0 0.0
    %3435 = vmatpush1.msra.mxu0 0.0
    %3436 = vmatprep.subr.mxu0 0.0
    %3437 = vmatpush1.msra.mxu0 0.0
    %3438 = vmatprep.subr.mxu0 0.0
    %3439 = vmatpush1.msra.mxu0 0.0
    %3440 = vmatprep.subr.mxu0 0.0
    %3441 = vmatpush1.msra.mxu0 0.0
    %3442 = vmatprep.subr.mxu0 0.0
    %3443 = vmatpush1.msra.mxu0 0.0
    %3444 = vmatprep.subr.mxu0 0.0
    %3445 = vmatpush1.msra.mxu0 0.0
    %3446 = vmatprep.subr.mxu0 0.0
    %3447 = vmatpush1.msra.mxu0 0.0
    %3448 = vmatprep.subr.mxu0 0.0
    %3449 = vmatpush1.msra.mxu0 0.0
    %3450 = vmatprep.subr.mxu0 0.0
    %3451 = vmatpush1.msra.mxu0 0.0
    %3452 = vmatprep.subr.mxu0 0.0
    %3453 = vmatpush1.msra.mxu0 0.0
    %3454 = vmatprep.subr.mxu0 0.0
    %3455 = vmatpush1.msra.mxu0 0.0
    %3456 = vmatprep.subr.mxu0 0.0
    %3457 = vmatpush1.msra.mxu0 0.0
    %3458 = vmatprep.subr.mxu0 0.0
    %3459 = vmatpush1.msra.mxu0 0.0
    %3460 = vmatprep.mubr.f32.mxu0 0.0
    %3461 = vmatmul.mubr.f32.gmra.mrb[0].mxu0 %v3394
    %v3462 = vpop.f32.mrb[0].mxu0
    %v3463 = vadd.f32 %v79, %v3462
    %v3464 = vpop.f32.mrb[0].mxu0
    %3465 = vdwg.mxu0
    %s3466 = scalar_lea.vmem %s11, 12
    %3467 = vst.msk [vmem:[%s3466] sm:$0x3] %vm3010, %v3463
    %v3468 = vld [vmem:[%s2916] sm:$0x3]
    %v3470 = vsel %vm704, %v3468, 0
    %3472 = vmatprep.subr.mxu0 0.0
    %3473 = vmatpush1.msra.mxu0 %v2938
    %3474 = vmatprep.subr.mxu0 0.0
    %3475 = vmatpush1.msra.mxu0 0.0
    %3476 = vmatprep.subr.mxu0 0.0
    %3477 = vmatpush1.msra.mxu0 0.0
    %3478 = vmatprep.subr.mxu0 0.0
    %3479 = vmatpush1.msra.mxu0 0.0
    %3480 = vmatprep.subr.mxu0 0.0
    %3481 = vmatpush1.msra.mxu0 0.0
    %3482 = vmatprep.subr.mxu0 0.0
    %3483 = vmatpush1.msra.mxu0 0.0
    %3484 = vmatprep.subr.mxu0 0.0
    %3485 = vmatpush1.msra.mxu0 0.0
    %3486 = vmatprep.subr.mxu0 0.0
    %3487 = vmatpush1.msra.mxu0 0.0
    %3488 = vmatprep.subr.mxu0 0.0
    %3489 = vmatpush1.msra.mxu0 0.0
    %3490 = vmatprep.subr.mxu0 0.0
    %3491 = vmatpush1.msra.mxu0 0.0
    %3492 = vmatprep.subr.mxu0 0.0
    %3493 = vmatpush1.msra.mxu0 0.0
    %3494 = vmatprep.subr.mxu0 0.0
    %3495 = vmatpush1.msra.mxu0 0.0
    %3496 = vmatprep.subr.mxu0 0.0
    %3497 = vmatpush1.msra.mxu0 0.0
    %3498 = vmatprep.subr.mxu0 0.0
    %3499 = vmatpush1.msra.mxu0 0.0
    %3500 = vmatprep.subr.mxu0 0.0
    %3501 = vmatpush1.msra.mxu0 0.0
    %3502 = vmatprep.subr.mxu0 0.0
    %3503 = vmatpush1.msra.mxu0 0.0
    %3504 = vmatprep.subr.mxu0 0.0
    %3505 = vmatpush1.msra.mxu0 0.0
    %3506 = vmatprep.subr.mxu0 0.0
    %3507 = vmatpush1.msra.mxu0 0.0
    %3508 = vmatprep.subr.mxu0 0.0
    %3509 = vmatpush1.msra.mxu0 0.0
    %3510 = vmatprep.subr.mxu0 0.0
    %3511 = vmatpush1.msra.mxu0 0.0
    %3512 = vmatprep.subr.mxu0 0.0
    %3513 = vmatpush1.msra.mxu0 0.0
    %3514 = vmatprep.subr.mxu0 0.0
    %3515 = vmatpush1.msra.mxu0 0.0
    %3516 = vmatprep.subr.mxu0 0.0
    %3517 = vmatpush1.msra.mxu0 0.0
    %3518 = vmatprep.subr.mxu0 0.0
    %3519 = vmatpush1.msra.mxu0 0.0
    %3520 = vmatprep.subr.mxu0 0.0
    %3521 = vmatpush1.msra.mxu0 0.0
    %3522 = vmatprep.subr.mxu0 0.0
    %3523 = vmatpush1.msra.mxu0 0.0
    %3524 = vmatprep.subr.mxu0 0.0
    %3525 = vmatpush1.msra.mxu0 0.0
    %3526 = vmatprep.subr.mxu0 0.0
    %3527 = vmatpush1.msra.mxu0 0.0
    %3528 = vmatprep.subr.mxu0 0.0
    %3529 = vmatpush1.msra.mxu0 0.0
    %3530 = vmatprep.subr.mxu0 0.0
    %3531 = vmatpush1.msra.mxu0 0.0
    %3532 = vmatprep.subr.mxu0 0.0
    %3533 = vmatpush1.msra.mxu0 0.0
    %3534 = vmatprep.subr.mxu0 0.0
    %3535 = vmatpush1.msra.mxu0 0.0
    %3536 = vmatprep.mubr.f32.mxu0 0.0
    %3537 = vmatmul.mubr.f32.gmra.mrb[0].mxu0 %v3470
    %v3538 = vpop.f32.mrb[0].mxu0
    %v3539 = vadd.f32 %v79, %v3538
    %v3540 = vpop.f32.mrb[0].mxu0
    %3541 = vdwg.mxu0
    %s3542 = scalar_lea.vmem %s11, 14
    %3543 = vst.msk [vmem:[%s3542] sm:$0x3] %vm3010, %v3539
    // Predicated region
    $region50: #{lstm_auto_decoder.1} parent=1 // pred_check
      _
    $region51: #{lstm_auto_decoder.1} parent=1 // pred_check_branch
      %3545 = sbr.rel (0) target = $region53
    $region52: #{lstm_auto_decoder.1} parent=1 // pred_region
      _
    $region53: #{lstm_auto_decoder.1} parent=1 // pred_fallthru
      _
    // Predicated region
    $region54: #{lstm_auto_decoder.1} parent=1 // pred_check
      _
    $region55: #{lstm_auto_decoder.1} parent=1 // pred_check_branch
      %3547 = sbr.rel (0) target = $region57
    $region56: #{lstm_auto_decoder.1} parent=1 // pred_region
      %s3549 = ssub.s32 64, 64
      %3550 = vsyncadd [#allocation6], %s3549
      %s3551 = sshll.u32 [#allocation7], 4
      %s3552 = int_to_ptr.vmem [resolvable:$true] %s3551
      %3557 = dma.vmem_to_hbm [thread:$0]  %s3552, 64, %s12, [#allocation6], 32, 32, 2
    $region57: #{lstm_auto_decoder.1} parent=1 // pred_fallthru
      _
    // Predicated region
    $region58: #{lstm_auto_decoder.1} parent=1 // pred_check
      _
    $region59: #{lstm_auto_decoder.1} parent=1 // pred_check_branch
      %3559 = sbr.rel (0) target = $region61
    $region60: #{lstm_auto_decoder.1} parent=1 // pred_region
      %s3561 = ssub.s32 64, 64
      %3562 = vsyncadd [#allocation9], %s3561
      %s3563 = sshll.u32 [#allocation8], 4
      %s3564 = int_to_ptr.vmem [resolvable:$true] %s3563
      %3569 = dma.vmem_to_hbm [thread:$0]  %s3564, 64, %s13, [#allocation9], 32, 32, 2
    $region61: #{lstm_auto_decoder.1} parent=1 // pred_fallthru
      _
    // Predicated region
    $region62: #{lstm_auto_decoder.1} parent=1 // pred_check
      _
    $region63: #{lstm_auto_decoder.1} parent=1 // pred_check_branch
      %3571 = sbr.rel (0) target = $region65
    $region64: #{lstm_auto_decoder.1} parent=1 // pred_region
      _
    $region65: #{lstm_auto_decoder.1} parent=1 // pred_fallthru
      _
    // Predicated region
    $region66: #{lstm_auto_decoder.1} parent=1 // pred_check
      _
    $region67: #{lstm_auto_decoder.1} parent=1 // pred_check_branch
      %3573 = sbr.rel (0) target = $region69
    $region68: #{lstm_auto_decoder.1} parent=1 // pred_region
      %3574 = dma.done [#allocation6], 64
    $region69: #{lstm_auto_decoder.1} parent=1 // pred_fallthru
      _
    // Predicated region
    $region70: #{lstm_auto_decoder.1} parent=1 // pred_check
      _
    $region71: #{lstm_auto_decoder.1} parent=1 // pred_check_branch
      %3576 = sbr.rel (0) target = $region73
    $region72: #{lstm_auto_decoder.1} parent=1 // pred_region
      %3577 = dma.done [#allocation9], 64
    $region73: #{lstm_auto_decoder.1} parent=1 // pred_fallthru
      _
    %3578 = vsyncpa [#allocation5], 1
    %3579 = vsyncpa [#allocation6], 1
    %3580 = vsyncpa [#allocation9], 1

</llo_original>
